<compile_context>
chip_gen: v6e
topology: v6e:2x2x1
jax: 0.10.0
libtpu: 0.0.40
codegen_flags: <defaults>
</compile_context>

<pallas_src>
import functools
import math

import numpy as np
import jax
import jax.numpy as jnp
from jax.experimental import pallas as pl
from jax.experimental.pallas import tpu as pltpu

jax.config.update("jax_default_matmul_precision", "float32")

# ------------------------------- configuration -------------------------------
D_MODEL    = 256                     # fixed by the spec (ref_point_head = MLP(384,256,256))
N_HEADS    = 8
D_HEAD     = D_MODEL // N_HEADS      # 32
N_LEVELS   = 2
N_POINTS   = 4
D_FFN      = 256
NUM_LAYERS = 2
OFF_DIM    = N_HEADS * N_LEVELS * N_POINTS * 2   # 128
ATT_DIM    = N_HEADS * N_LEVELS * N_POINTS       # 64
LN_EPS     = 1e-5


# ------------------------------ shared math -----------------------------------
def _layernorm(x, g, b):
    mu = jnp.mean(x, axis=-1, keepdims=True)
    var = jnp.mean(jnp.square(x - mu), axis=-1, keepdims=True)
    return (x - mu) * jax.lax.rsqrt(var + LN_EPS) * g + b


def _softmax_last(x):
    m = jnp.max(x, axis=-1, keepdims=True)
    e = jnp.exp(x - m)
    return e / jnp.sum(e, axis=-1, keepdims=True)


def _mha_core(q, k, v, wo, bo, bias):
    """Multi-head attention on already-projected q (Nq,C), k/v (Lk,C).
    Heads are processed with static lane slices; head outputs are folded into the
    output projection (sum over per-head row blocks of wo) so no concat is needed."""
    n = q.shape[0]
    acc = jnp.zeros((n, D_MODEL), jnp.float32)
    scale = 1.0 / np.sqrt(D_HEAD)
    for h in range(N_HEADS):
        lo = h * D_HEAD
        qh = q[:, lo:lo + D_HEAD] * scale
        kh = k[:, lo:lo + D_HEAD]
        vh = v[:, lo:lo + D_HEAD]
        logits = jnp.dot(qh, kh.T, preferred_element_type=jnp.float32)
        if bias is not None:
            logits = logits + bias
        p = _softmax_last(logits)
        oh = jnp.dot(p, vh, preferred_element_type=jnp.float32)
        acc = acc + jnp.dot(oh, wo[lo:lo + D_HEAD, :], preferred_element_type=jnp.float32)
    return acc + bo


# ------------------------------- Pallas kernels --------------------------------
def _qprep_kernel(sine_ref, dsc_ref, w1_ref, b1_ref, w2_ref, b2_ref,
                  qpos_out_ref, sined_out_ref):
    """ref_point_head MLP (layer-invariant) + premultiply sine[:, :256] by the
    depth conditioning scale refD / anchor_z."""
    s = sine_ref[0]                                                       # (Nq, 384)
    h = jax.nn.relu(jnp.dot(s, w1_ref[...], preferred_element_type=jnp.float32) + b1_ref[...])
    qpos_out_ref[0] = jnp.dot(h, w2_ref[...], preferred_element_type=jnp.float32) + b2_ref[...]
    sined_out_ref[0] = s[:, :D_MODEL] * dsc_ref[0]


def _layerA_kernel(tgt_ref, qpos_ref, sined_ref, dmem_ref, dbias_ref, src_ref, vkeep_ref,
                   qsw1_ref, qsb1_ref, qsw2_ref, qsb2_ref,
                   cad_wq_ref, cad_bq_ref, cad_wkv_ref, cad_bkv_ref,
                   cad_wo_ref, cad_bo_ref, cad_g_ref, cad_b_ref,
                   sa_wqk_ref, sa_bqk_ref, sa_wv_ref, sa_bv_ref,
                   sa_wo_ref, sa_bo_ref, sa_g_ref, sa_b_ref,
                   ms_wv_ref, ms_bv_ref, ms_woa_ref, ms_boa_ref,
                   tgt_out_ref, value_out_ref, offatt_out_ref, *, use_scale):
    C = D_MODEL
    tgt = tgt_ref[0]                                                      # (Nq, C)
    qpos = qpos_ref[0]
    sined = sined_ref[0]                                                  # sine[:, :C] * dscale

    # pos_transformation (query_scale MLP) -- identity at lid == 0
    if use_scale:
        hqs = jax.nn.relu(jnp.dot(tgt, qsw1_ref[...], preferred_element_type=jnp.float32)
                          + qsb1_ref[...])
        pt = jnp.dot(hqs, qsw2_ref[...], preferred_element_type=jnp.float32) + qsb2_ref[...]
        qse_d = sined * pt
    else:
        qse_d = sined

    # ---- depth cross attention (query = tgt + query_sine_embed_d, K/V = depth tokens)
    dmem = dmem_ref[0]                                                    # (Dlen, C)
    q_d = jnp.dot(tgt + qse_d, cad_wq_ref[...], preferred_element_type=jnp.float32) + cad_bq_ref[...]
    kv_d = jnp.dot(dmem, cad_wkv_ref[...], preferred_element_type=jnp.float32) + cad_bkv_ref[...]
    att = _mha_core(q_d, kv_d[:, :C], kv_d[:, C:], cad_wo_ref[...], cad_bo_ref[...],
                    dbias_ref[0])
    x = _layernorm(tgt + att, cad_g_ref[...], cad_b_ref[...])

    # ---- self attention (q = k = x + query_pos, v = x)
    qk = jnp.dot(x + qpos, sa_wqk_ref[...], preferred_element_type=jnp.float32) + sa_bqk_ref[...]
    v_s = jnp.dot(x, sa_wv_ref[...], preferred_element_type=jnp.float32) + sa_bv_ref[...]
    att = _mha_core(qk[:, :C], qk[:, C:], v_s, sa_wo_ref[...], sa_bo_ref[...], None)
    x = _layernorm(x + att, sa_g_ref[...], sa_b_ref[...])
    tgt_out_ref[0] = x

    # ---- MSDeformAttn projections: sampling offsets | attention logits (packed)
    offatt_out_ref[0] = (jnp.dot(x + qpos, ms_woa_ref[...], preferred_element_type=jnp.float32)
                         + ms_boa_ref[...])

    # ---- src value projection + padding mask (value.masked_fill)
    s = src_ref[0]                                                        # (Len, C)
    val = jnp.dot(s, ms_wv_ref[...], preferred_element_type=jnp.float32) + ms_bv_ref[...]
    value_out_ref[0] = val * vkeep_ref[0]


def _layerB_kernel(tgt_ref, samp_ref,
                   ms_wo_ref, ms_bo_ref, ms_g_ref, ms_b_ref,
                   ffn_w1_ref, ffn_b1_ref, ffn_w2_ref, ffn_b2_ref, ffn_g_ref, ffn_b_ref,
                   o_ref):
    x = tgt_ref[0]
    a = jnp.dot(samp_ref[0], ms_wo_ref[...], preferred_element_type=jnp.float32) + ms_bo_ref[...]
    x = _layernorm(x + a, ms_g_ref[...], ms_b_ref[...])                   # norm after deform attn
    h = jax.nn.relu(jnp.dot(x, ffn_w1_ref[...], preferred_element_type=jnp.float32)
                    + ffn_b1_ref[...])
    y = x + jnp.dot(h, ffn_w2_ref[...], preferred_element_type=jnp.float32) + ffn_b2_ref[...]
    o_ref[0] = _layernorm(y, ffn_g_ref[...], ffn_b_ref[...])              # norm after FFN


# ------------------------------ Pallas wrappers --------------------------------
def _wspec(shape):
    return pl.BlockSpec(shape, lambda b: (0,) * len(shape))


def qprep_pallas(sine, dscale, rp):
    B, Nq, S = sine.shape
    C = D_MODEL
    in_specs = [pl.BlockSpec((1, Nq, S), lambda b: (b, 0, 0)),
                pl.BlockSpec((1, Nq, 1), lambda b: (b, 0, 0)),
                _wspec(rp["w1"].shape), _wspec(rp["b1"].shape),
                _wspec(rp["w2"].shape), _wspec(rp["b2"].shape)]
    return pl.pallas_call(
        _qprep_kernel,
        out_shape=(jax.ShapeDtypeStruct((B, Nq, C), jnp.float32),
                   jax.ShapeDtypeStruct((B, Nq, C), jnp.float32)),
        grid=(B,),
        in_specs=in_specs,
        out_specs=(pl.BlockSpec((1, Nq, C), lambda b: (b, 0, 0)),
                   pl.BlockSpec((1, Nq, C), lambda b: (b, 0, 0))),
        compiler_params=pltpu.CompilerParams(dimension_semantics=("parallel",)),
    )(sine, dscale, rp["w1"], rp["b1"], rp["w2"], rp["b2"])


def layerA_pallas(tgt, qpos, sined, dmem, dbias, src, vkeep, qs, p, use_scale):
    B, Nq, C = tgt.shape
    Dlen = dmem.shape[1]
    Len = src.shape[1]
    data_specs = [
        pl.BlockSpec((1, Nq, C), lambda b: (b, 0, 0)),
        pl.BlockSpec((1, Nq, C), lambda b: (b, 0, 0)),
        pl.BlockSpec((1, Nq, C), lambda b: (b, 0, 0)),
        pl.BlockSpec((1, Dlen, C), lambda b: (b, 0, 0)),
        pl.BlockSpec((1, 1, Dlen), lambda b: (b, 0, 0)),
        pl.BlockSpec((1, Len, C), lambda b: (b, 0, 0)),
        pl.BlockSpec((1, Len, 1), lambda b: (b, 0, 0)),
    ]
    weights = [qs["w1"], qs["b1"], qs["w2"], qs["b2"],
               p["cad_wq"], p["cad_bq"], p["cad_wkv"], p["cad_bkv"],
               p["cad_wo"], p["cad_bo"], p["cad_g"], p["cad_b"],
               p["sa_wqk"], p["sa_bqk"], p["sa_wv"], p["sa_bv"],
               p["sa_wo"], p["sa_bo"], p["sa_g"], p["sa_b"],
               p["ms_wv"], p["ms_bv"], p["ms_woa"], p["ms_boa"]]
    in_specs = data_specs + [_wspec(w.shape) for w in weights]
    out_shape = (jax.ShapeDtypeStruct((B, Nq, C), jnp.float32),
                 jax.ShapeDtypeStruct((B, Len, C), jnp.float32),
                 jax.ShapeDtypeStruct((B, Nq, OFF_DIM + ATT_DIM), jnp.float32))
    out_specs = (pl.BlockSpec((1, Nq, C), lambda b: (b, 0, 0)),
                 pl.BlockSpec((1, Len, C), lambda b: (b, 0, 0)),
                 pl.BlockSpec((1, Nq, OFF_DIM + ATT_DIM), lambda b: (b, 0, 0)))
    return pl.pallas_call(
        functools.partial(_layerA_kernel, use_scale=use_scale),
        out_shape=out_shape,
        grid=(B,),
        in_specs=in_specs,
        out_specs=out_specs,
        compiler_params=pltpu.CompilerParams(dimension_semantics=("parallel",)),
    )(tgt, qpos, sined, dmem, dbias, src, vkeep, *weights)


def layerB_pallas(tgt, sampled, p):
    B, Nq, C = tgt.shape
    weights = [p["ms_wo"], p["ms_bo"], p["ms_g"], p["ms_b"],
               p["ffn_w1"], p["ffn_b1"], p["ffn_w2"], p["ffn_b2"], p["ffn_g"], p["ffn_b"]]
    in_specs = [pl.BlockSpec((1, Nq, C), lambda b: (b, 0, 0)),
                pl.BlockSpec((1, Nq, C), lambda b: (b, 0, 0))] + [_wspec(w.shape) for w in weights]
    return pl.pallas_call(
        _layerB_kernel,
        out_shape=jax.ShapeDtypeStruct((B, Nq, C), jnp.float32),
        grid=(B,),
        in_specs=in_specs,
        out_specs=pl.BlockSpec((1, Nq, C), lambda b: (b, 0, 0)),
        compiler_params=pltpu.CompilerParams(dimension_semantics=("parallel",)),
    )(tgt, sampled, *weights)


# --------------------------------- JAX glue ------------------------------------
def gen_sineembed_for_position(pos_tensor):
    """Faithful port of gen_sineembed_for_position: cat(pos_y, pos_x, pos_d), 3*128."""
    scale = 2.0 * math.pi
    i = jnp.arange(128, dtype=jnp.float32)
    dim_t = 20.0 ** (2.0 * jnp.floor(i / 2.0) / 128.0)

    def interleave(v):
        p = v[..., None] / dim_t
        s = jnp.sin(p[..., 0::2])
        c = jnp.cos(p[..., 1::2])
        return jnp.stack((s, c), axis=-1).reshape(p.shape[:-1] + (128,))

    pos_y = interleave(pos_tensor[..., 1] * scale)
    pos_x = interleave(pos_tensor[..., 0] * scale)
    pos_d = interleave(pos_tensor[..., 2])
    return jnp.concatenate((pos_y, pos_x, pos_d), axis=-1)


def grid_sample_bilinear_align_corners(img, grid):
    """F.grid_sample(img[:,None], grid[:,:,None], bilinear, align_corners=True) -> (B,N)."""
    B, Hd, Wd = img.shape
    px = (grid[..., 0] + 1.0) * 0.5 * (Wd - 1)
    py = (grid[..., 1] + 1.0) * 0.5 * (Hd - 1)
    x0 = jnp.floor(px); y0 = jnp.floor(py)
    fx = px - x0; fy = py - y0
    flat = img.reshape(B, Hd * Wd)

    def corner(yy, xx, w):
        valid = ((xx >= 0) & (xx <= Wd - 1) & (yy >= 0) & (yy <= Hd - 1)).astype(img.dtype)
        xi = jnp.clip(xx, 0, Wd - 1).astype(jnp.int32)
        yi = jnp.clip(yy, 0, Hd - 1).astype(jnp.int32)
        return jnp.take_along_axis(flat, yi * Wd + xi, axis=1) * valid * w

    return (corner(y0, x0, (1 - fy) * (1 - fx)) + corner(y0, x0 + 1, (1 - fy) * fx)
            + corner(y0 + 1, x0, fy * (1 - fx)) + corner(y0 + 1, x0 + 1, fy * fx))


def deform_corner_index_weights(off_raw, att_raw, ref_pts_input, spatial_shapes,
                                level_start_index):
    """Corner indices + combined (bilinear * softmax attention) weights for the
    gather-based MSDeformAttn (grid_sample align_corners=False, zero padding)."""
    B, Nq, _ = off_raw.shape
    off = off_raw.reshape(B, Nq, N_HEADS, N_LEVELS, N_POINTS, 2)
    attw = jax.nn.softmax(att_raw.reshape(B, Nq, N_HEADS, N_LEVELS * N_POINTS), axis=-1)
    attw = attw.reshape(B, Nq, N_HEADS, N_LEVELS, N_POINTS)
    ss = jnp.asarray(spatial_shapes, jnp.float32)
    normalizer = jnp.stack([ss[:, 1], ss[:, 0]], axis=-1)                 # (Lv, 2) = (W, H)
    loc = (ref_pts_input[:, :, None, :, None, :]
           + off / normalizer[None, None, None, :, None, :])             # (B,Nq,H,Lv,P,2)
    idx_list, w_list = [], []
    for l, (H_, W_) in enumerate(spatial_shapes):
        px = loc[:, :, :, l, :, 0] * W_ - 0.5
        py = loc[:, :, :, l, :, 1] * H_ - 0.5
        x0 = jnp.floor(px); y0 = jnp.floor(py)
        fx = px - x0; fy = py - y0
        aw = attw[:, :, :, l]                                             # (B,Nq,H,P)
        for yy, xx, ww in ((y0, x0, (1 - fy) * (1 - fx)),
                           (y0, x0 + 1, (1 - fy) * fx),
                           (y0 + 1, x0, fy * (1 - fx)),
                           (y0 + 1, x0 + 1, fy * fx)):
            valid = ((xx >= 0) & (xx <= W_ - 1) & (yy >= 0) & (yy <= H_ - 1)).astype(jnp.float32)
            xi = jnp.clip(xx, 0, W_ - 1).astype(jnp.int32)
            yi = jnp.clip(yy, 0, H_ - 1).astype(jnp.int32)
            idx_list.append(level_start_index[l] + yi * W_ + xi)
            w_list.append(ww * valid * aw)
    K = len(idx_list) * N_POINTS
    idx = jnp.stack(idx_list, axis=-1).reshape(B, Nq, N_HEADS, K)
    w = jnp.stack(w_list, axis=-1).reshape(B, Nq, N_HEADS, K)
    return idx, w


def deform_gather(value, idx, w):
    """Gather + weighted sum: O(Nq * heads * K) instead of a dense (Nq, Len) matmul."""
    B, Len, C = value.shape
    _, Nq, H, K = idx.shape
    vh = value.reshape(B, Len, H, D_HEAD)
    idx_t = idx.transpose(0, 1, 3, 2).reshape(B, Nq * K, H)
    g = jnp.take_along_axis(vh, idx_t[..., None], axis=1)                 # (B, Nq*K, H, Dh)
    g = g.reshape(B, Nq, K, H, D_HEAD)
    w_t = w.transpose(0, 1, 3, 2)[..., None]                              # (B, Nq, K, H, 1)
    return jnp.sum(g * w_t, axis=2).reshape(B, Nq, C)


# ------------------------------ decoder forward --------------------------------
def depth_aware_decoder_forward(params, tgt, src, spatial_shapes, level_start_index,
                                valid_ratios, anchor_unit, src_padding_mask,
                                depth_pos_embed, mask_depth, weighted_depth):
    B, Nq, C = tgt.shape
    anchor = jnp.broadcast_to(jax.nn.sigmoid(anchor_unit)[None], (B,) + anchor_unit.shape)
    reference_points = anchor[..., :2]
    ref_pts_input = reference_points[:, :, None, :] * valid_ratios[:, None]

    sine = gen_sineembed_for_position(anchor)                             # (B, Nq, 384)
    refD = grid_sample_bilinear_align_corners(weighted_depth, anchor[..., :2])
    dscale = (refD / anchor[..., 2])[..., None]                           # (B, Nq, 1)
    query_pos, sine_d = qprep_pallas(sine, dscale, params["rp"])

    depth_mem = jnp.transpose(depth_pos_embed, (1, 0, 2))                 # (B, Dlen, C)
    depth_bias = (mask_depth.astype(jnp.float32) * -1e9)[:, None, :]      # (B, 1, Dlen)
    src_keep = (1.0 - src_padding_mask.astype(jnp.float32))[..., None]    # (B, Len, 1)

    output = tgt
    for lid, p in enumerate(params["layers"]):
        tgt_x, value, offatt = layerA_pallas(output, query_pos, sine_d, depth_mem,
                                             depth_bias, src, src_keep, params["qs"], p,
                                             use_scale=(lid > 0))
        idx, w = deform_corner_index_weights(offatt[..., :OFF_DIM], offatt[..., OFF_DIM:],
                                             ref_pts_input, spatial_shapes, level_start_index)
        sampled = deform_gather(value, idx, w)
        output = layerB_pallas(tgt_x, sampled, p)
    return output, reference_points


# --------------------------- pure-JAX reference --------------------------------
def _mlp2(x, w1, b1, w2, b2):
    return jax.nn.relu(x @ w1 + b1) @ w2 + b2


def _mha_ref(q, k, v, wo, bo, bias=None):
    B, Nq, C = q.shape
    Lk = k.shape[1]
    qh = q.reshape(B, Nq, N_HEADS, D_HEAD)
    kh = k.reshape(B, Lk, N_HEADS, D_HEAD)
    vh = v.reshape(B, Lk, N_HEADS, D_HEAD)
    logits = jnp.einsum("bqhd,bkhd->bhqk", qh, kh) / np.sqrt(D_HEAD)
    if bias is not None:
        logits = logits + bias[:, None, :, :]
    p = jax.nn.softmax(logits, axis=-1)
    o = jnp.einsum("bhqk,bkhd->bqhd", p, vh).reshape(B, Nq, C)
    return o @ wo + bo


def _msdeform_dense_ref(value, off_raw, att_raw, ref_pts_input, spatial_shapes):
    """Independent dense one-hot formulation (cross-check for the gather path)."""
    B, Nq, _ = off_raw.shape
    Len = value.shape[1]
    off = off_raw.reshape(B, Nq, N_HEADS, N_LEVELS, N_POINTS, 2)
    attw = jax.nn.softmax(att_raw.reshape(B, Nq, N_HEADS, N_LEVELS * N_POINTS), axis=-1)
    attw = attw.reshape(B, Nq, N_HEADS, N_LEVELS, N_POINTS)
    ss = jnp.asarray(spatial_shapes, jnp.float32)
    normalizer = jnp.stack([ss[:, 1], ss[:, 0]], axis=-1)
    loc = ref_pts_input[:, :, None, :, None, :] + off / normalizer[None, None, None, :, None, :]
    A_levels = []
    for l, (H_, W_) in enumerate(spatial_shapes):
        HW = H_ * W_
        px = loc[:, :, :, l, :, 0] * W_ - 0.5
        py = loc[:, :, :, l, :, 1] * H_ - 0.5
        x0 = jnp.floor(px); y0 = jnp.floor(py)
        fx = px - x0; fy = py - y0
        A_l = jnp.zeros(px.shape + (HW,), jnp.float32)
        for yy, xx, ww in ((y0, x0, (1 - fy) * (1 - fx)),
                           (y0, x0 + 1, (1 - fy) * fx),
                           (y0 + 1, x0, fy * (1 - fx)),
                           (y0 + 1, x0 + 1, fy * fx)):
            valid = ((xx >= 0) & (xx <= W_ - 1) & (yy >= 0) & (yy <= H_ - 1)).astype(jnp.float32)
            iidx = (jnp.clip(yy, 0, H_ - 1) * W_ + jnp.clip(xx, 0, W_ - 1)).astype(jnp.int32)
            A_l = A_l + jax.nn.one_hot(iidx, HW, dtype=jnp.float32) * (ww * valid)[..., None]
        A_levels.append(jnp.einsum("bqhp,bqhpl->bhql", attw[:, :, :, l], A_l))
    A = jnp.concatenate(A_levels, axis=-1)                                # (B,H,Nq,Len)
    vh = value.reshape(B, Len, N_HEADS, D_HEAD).transpose(0, 2, 1, 3)
    out = jnp.einsum("bhql,bhld->bhqd", A, vh)
    return out.transpose(0, 2, 1, 3).reshape(B, Nq, D_MODEL)


def _decoder_layer_ref(p, tgt, query_pos, qse_d, ref_pts_input, src, spatial_shapes,
                       src_keep, depth_mem, depth_bias):
    C = D_MODEL
    q = (tgt + qse_d) @ p["cad_wq"] + p["cad_bq"]
    kv = depth_mem @ p["cad_wkv"] + p["cad_bkv"]
    a = _mha_ref(q, kv[..., :C], kv[..., C:], p["cad_wo"], p["cad_bo"], depth_bias)
    x = _layernorm(tgt + a, p["cad_g"], p["cad_b"])

    qk = (x + query_pos) @ p["sa_wqk"] + p["sa_bqk"]
    v = x @ p["sa_wv"] + p["sa_bv"]
    a = _mha_ref(qk[..., :C], qk[..., C:], v, p["sa_wo"], p["sa_bo"], None)
    x = _layernorm(x + a, p["sa_g"], p["sa_b"])

    value = (src @ p["ms_wv"] + p["ms_bv"]) * src_keep
    oa = (x + query_pos) @ p["ms_woa"] + p["ms_boa"]
    samp = _msdeform_dense_ref(value, oa[..., :OFF_DIM], oa[..., OFF_DIM:],
                               ref_pts_input, spatial_shapes)
    x = _layernorm(x + (samp @ p["ms_wo"] + p["ms_bo"]), p["ms_g"], p["ms_b"])

    h = jax.nn.relu(x @ p["ffn_w1"] + p["ffn_b1"])
    return _layernorm(x + (h @ p["ffn_w2"] + p["ffn_b2"]), p["ffn_g"], p["ffn_b"])


def depth_aware_decoder_ref(params, tgt, src, spatial_shapes, level_start_index,
                            valid_ratios, anchor_unit, src_padding_mask,
                            depth_pos_embed, mask_depth, weighted_depth):
    B, Nq, C = tgt.shape
    anchor = jnp.broadcast_to(jax.nn.sigmoid(anchor_unit)[None], (B,) + anchor_unit.shape)
    reference_points = anchor[..., :2]
    ref_pts_input = reference_points[:, :, None, :] * valid_ratios[:, None]
    sine = gen_sineembed_for_position(anchor)
    query_pos = _mlp2(sine, params["rp"]["w1"], params["rp"]["b1"],
                      params["rp"]["w2"], params["rp"]["b2"])
    refD = grid_sample_bilinear_align_corners(weighted_depth, anchor[..., :2])
    dscale = (refD / anchor[..., 2])[..., None]
    depth_mem = jnp.transpose(depth_pos_embed, (1, 0, 2))
    depth_bias = (mask_depth.astype(jnp.float32) * -1e9)[:, None, :]
    src_keep = (1.0 - src_padding_mask.astype(jnp.float32))[..., None]

    output = tgt
    for lid, p in enumerate(params["layers"]):
        pt = 1.0 if lid == 0 else _mlp2(output, params["qs"]["w1"], params["qs"]["b1"],
                                        params["qs"]["w2"], params["qs"]["b2"])
        qse_d = sine[..., :C] * pt * dscale
        output = _decoder_layer_ref(p, output, query_pos, qse_d, ref_pts_input, src,
                                    spatial_shapes, src_keep, depth_mem, depth_bias)
    return output, reference_points


# --------------------------------- params --------------------------------------
def _lin(k, fi, fo, scale=1.0):
    return jax.random.normal(k, (fi, fo), jnp.float32) * (scale / np.sqrt(fi))


def _zeros(n):
    return jnp.zeros((1, n), jnp.float32)


def _ones(n):
    return jnp.ones((1, n), jnp.float32)


def init_layer_params(key):
    ks = jax.random.split(key, 12)
    C, F = D_MODEL, D_FFN
    boa = jnp.concatenate([jax.random.normal(ks[11], (1, OFF_DIM), jnp.float32) * 0.5,
                           jnp.zeros((1, ATT_DIM), jnp.float32)], axis=-1)
    return dict(
        cad_wq=_lin(ks[0], C, C), cad_bq=_zeros(C),
        cad_wkv=_lin(ks[1], C, 2 * C), cad_bkv=_zeros(2 * C),
        cad_wo=_lin(ks[2], C, C), cad_bo=_zeros(C),
        cad_g=_ones(C), cad_b=_zeros(C),
        sa_wqk=_lin(ks[3], C, 2 * C), sa_bqk=_zeros(2 * C),
        sa_wv=_lin(ks[4], C, C), sa_bv=_zeros(C),
        sa_wo=_lin(ks[5], C, C), sa_bo=_zeros(C),
        sa_g=_ones(C), sa_b=_zeros(C),
        ms_wv=_lin(ks[6], C, C), ms_bv=_zeros(C),
        ms_woa=_lin(ks[7], C, OFF_DIM + ATT_DIM, 0.5), ms_boa=boa,
        ms_wo=_lin(ks[8], C, C), ms_bo=_zeros(C),
        ms_g=_ones(C), ms_b=_zeros(C),
        ffn_w1=_lin(ks[9], C, F), ffn_b1=_zeros(F),
        ffn_w2=_lin(ks[10], F, C), ffn_b2=_zeros(C),
        ffn_g=_ones(C), ffn_b=_zeros(C),
    )


def init_params(key, num_layers):
    k_rp1, k_rp2, k_qs1, k_qs2, k_layers = jax.random.split(key, 5)
    C = D_MODEL
    rp = dict(w1=_lin(k_rp1, 3 * 128, C), b1=_zeros(C), w2=_lin(k_rp2, C, C), b2=_zeros(C))
    qs = dict(w1=_lin(k_qs1, C, C), b1=_zeros(C), w2=_lin(k_qs2, C, C), b2=_zeros(C))
    layers = [init_layer_params(k) for k in jax.random.split(k_layers, num_layers)]
    return dict(rp=rp, qs=qs, layers=layers)


# ---------------------------------- main ----------------------------------------
if __name__ == "__main__":
    key = jax.random.PRNGKey(0)
    ks = jax.random.split(key, 8)

    B, Nq = 2, 16
    spatial_shapes = [(8, 8), (4, 4)]
    level_start_index = [0]
    for (h_, w_) in spatial_shapes[:-1]:
        level_start_index.append(level_start_index[-1] + h_ * w_)
    LEN = sum(h_ * w_ for h_, w_ in spatial_shapes)                       # 80 src tokens
    Hd = Wd = 8
    DLEN = Hd * Wd                                                        # 64 depth tokens

    tgt = jax.random.normal(ks[0], (B, Nq, D_MODEL), jnp.float32)
    src = jax.random.normal(ks[1], (B, LEN, D_MODEL), jnp.float32)
    anchor_unit = jax.random.normal(ks[2], (Nq, 3), jnp.float32)          # learnable_anchor_box_3d_unit
    valid_ratios = jax.random.uniform(ks[3], (B, N_LEVELS, 2), jnp.float32, 0.85, 1.0)
    depth_pos_embed = jax.random.normal(ks[4], (DLEN, B, D_MODEL), jnp.float32)   # (seq, B, C)
    weighted_depth = jax.random.uniform(ks[5], (B, 16, 16), jnp.float32, 0.5, 1.5)
    src_padding_mask = jnp.zeros((B, LEN), dtype=bool).at[1, 72:].set(True)
    mask_depth = jnp.zeros((B, DLEN), dtype=bool).at[1, 48:].set(True)

    params = init_params(ks[6], NUM_LAYERS)

    out, ref_pts = depth_aware_decoder_forward(
        params, tgt, src, spatial_shapes, level_start_index, valid_ratios,
        anchor_unit, src_padding_mask, depth_pos_embed, mask_depth, weighted_depth)
    out = jax.block_until_ready(out)
    ref_pts = jax.block_until_ready(ref_pts)

    out_ref, ref_pts_ref = depth_aware_decoder_ref(
        params, tgt, src, spatial_shapes, level_start_index, valid_ratios,
        anchor_unit, src_padding_mask, depth_pos_embed, mask_depth, weighted_depth)
    out_ref = jax.block_until_ready(out_ref)

    assert out.shape == (B, Nq, D_MODEL)
    assert ref_pts.shape == (B, Nq, 2)
    assert bool(jnp.all(jnp.isfinite(out)))
    np.testing.assert_allclose(np.asarray(ref_pts), np.asarray(ref_pts_ref), rtol=1e-5, atol=1e-5)
    np.testing.assert_allclose(np.asarray(out), np.asarray(out_ref), rtol=1e-2, atol=1e-2)

    print("KERNEL_OK")
</pallas_src>

<mosaic_0001>
module attributes {stable_mosaic.version = 11 : i64} {
  func.func @_qprep_kernel(%arg0: i32, %arg1: memref<1x16x384xf32, #tpu.memory_space<vmem>>, %arg2: memref<1x16x1xf32, #tpu.memory_space<vmem>>, %arg3: memref<384x256xf32, #tpu.memory_space<vmem>>, %arg4: memref<1x256xf32, #tpu.memory_space<vmem>>, %arg5: memref<256x256xf32, #tpu.memory_space<vmem>>, %arg6: memref<1x256xf32, #tpu.memory_space<vmem>>, %arg7: memref<1x16x256xf32, #tpu.memory_space<vmem>>, %arg8: memref<1x16x256xf32, #tpu.memory_space<vmem>>) attributes {dimension_semantics = [#tpu.dimension_semantics<parallel>], iteration_bounds = array<i64: 2>, scalar_prefetch = 0 : i64, scratch_operands = 0 : i64, tpu.core_type = #tpu.core_type<tc>, window_params = [{transform_indices = @transform_0, window_bounds = array<i64: 1, 16, 384>}, {transform_indices = @transform_1, window_bounds = array<i64: 1, 16, 1>}, {pipeline_mode = #tpu.pipeline_mode<synchronous>, transform_indices = @transform_2, window_bounds = array<i64: 384, 256>}, {pipeline_mode = #tpu.pipeline_mode<synchronous>, transform_indices = @transform_3, window_bounds = array<i64: 1, 256>}, {pipeline_mode = #tpu.pipeline_mode<synchronous>, transform_indices = @transform_4, window_bounds = array<i64: 256, 256>}, {pipeline_mode = #tpu.pipeline_mode<synchronous>, transform_indices = @transform_5, window_bounds = array<i64: 1, 256>}, {transform_indices = @transform_6, window_bounds = array<i64: 1, 16, 256>}, {transform_indices = @transform_7, window_bounds = array<i64: 1, 16, 256>}]} {
    %c0 = arith.constant 0 : index
    %c0_0 = arith.constant 0 : index
    %c0_1 = arith.constant 0 : index
    %0 = vector.load %arg1[%c0, %c0_0, %c0_1] : memref<1x16x384xf32, #tpu.memory_space<vmem>>, vector<1x16x384xf32>
    %1 = vector.shape_cast %0 : vector<1x16x384xf32> to vector<16x384xf32>
    %c0_2 = arith.constant 0 : index
    %c0_3 = arith.constant 0 : index
    %2 = vector.load %arg3[%c0_2, %c0_3] : memref<384x256xf32, #tpu.memory_space<vmem>>, vector<384x256xf32>
    %cst = arith.constant dense<0.000000e+00> : vector<16x256xf32>
    %3 = tpu.matmul %1, %2, %cst {dimension_numbers = #tpu.dot_dimension_numbers<[1], [0], [0], [1], [0, 0, 1, 1], [], []>, precision = #tpu.contract_precision<fp32>} : vector<16x384xf32>, vector<384x256xf32>, vector<16x256xf32> -> vector<16x256xf32>
    %c0_4 = arith.constant 0 : index
    %c0_5 = arith.constant 0 : index
    %4 = vector.load %arg4[%c0_4, %c0_5] : memref<1x256xf32, #tpu.memory_space<vmem>>, vector<1x256xf32>
    %5 = vector.broadcast %4 : vector<1x256xf32> to vector<16x256xf32>
    %6 = arith.addf %3, %5 : vector<16x256xf32>
    %cst_6 = arith.constant 0.000000e+00 : f32
    %7 = vector.broadcast %cst_6 : f32 to vector<16x256xf32>
    %8 = arith.maximumf %6, %7 : vector<16x256xf32>
    %c0_7 = arith.constant 0 : index
    %c0_8 = arith.constant 0 : index
    %9 = vector.load %arg5[%c0_7, %c0_8] : memref<256x256xf32, #tpu.memory_space<vmem>>, vector<256x256xf32>
    %cst_9 = arith.constant dense<0.000000e+00> : vector<16x256xf32>
    %10 = tpu.matmul %8, %9, %cst_9 {dimension_numbers = #tpu.dot_dimension_numbers<[1], [0], [0], [1], [0, 0, 1, 1], [], []>, precision = #tpu.contract_precision<fp32>} : vector<16x256xf32>, vector<256x256xf32>, vector<16x256xf32> -> vector<16x256xf32>
    %c0_10 = arith.constant 0 : index
    %c0_11 = arith.constant 0 : index
    %11 = vector.load %arg6[%c0_10, %c0_11] : memref<1x256xf32, #tpu.memory_space<vmem>>, vector<1x256xf32>
    %12 = vector.broadcast %11 : vector<1x256xf32> to vector<16x256xf32>
    %13 = arith.addf %10, %12 : vector<16x256xf32>
    %c0_12 = arith.constant 0 : index
    %c0_13 = arith.constant 0 : index
    %c0_14 = arith.constant 0 : index
    %14 = vector.load %arg7[%c0_12, %c0_13, %c0_14] : memref<1x16x256xf32, #tpu.memory_space<vmem>>, vector<1x16x256xf32>
    %15 = vector.shape_cast %14 : vector<1x16x256xf32> to vector<16x256xf32>
    %16 = vector.shape_cast %13 : vector<16x256xf32> to vector<1x16x256xf32>
    tpu.vector_store %arg7[%c0_12, %c0_13, %c0_14], %16 {strides = array<i32>} : memref<1x16x256xf32, #tpu.memory_space<vmem>>, vector<1x16x256xf32>,
    %17 = vector.extract_strided_slice %1 {offsets = [0, 0], sizes = [16, 256], strides = [1, 1]} : vector<16x384xf32> to vector<16x256xf32>
    %c0_15 = arith.constant 0 : index
    %c0_16 = arith.constant 0 : index
    %c0_17 = arith.constant 0 : index
    %18 = vector.load %arg2[%c0_15, %c0_16, %c0_17] : memref<1x16x1xf32, #tpu.memory_space<vmem>>, vector<1x16x1xf32>
    %19 = vector.shape_cast %18 : vector<1x16x1xf32> to vector<16x1xf32>
    %20 = vector.broadcast %19 : vector<16x1xf32> to vector<16x256xf32>
    %21 = arith.mulf %17, %20 : vector<16x256xf32>
    %c0_18 = arith.constant 0 : index
    %c0_19 = arith.constant 0 : index
    %c0_20 = arith.constant 0 : index
    %22 = vector.load %arg8[%c0_18, %c0_19, %c0_20] : memref<1x16x256xf32, #tpu.memory_space<vmem>>, vector<1x16x256xf32>
    %23 = vector.shape_cast %22 : vector<1x16x256xf32> to vector<16x256xf32>
    %24 = vector.shape_cast %21 : vector<16x256xf32> to vector<1x16x256xf32>
    tpu.vector_store %arg8[%c0_18, %c0_19, %c0_20], %24 {strides = array<i32>} : memref<1x16x256xf32, #tpu.memory_space<vmem>>, vector<1x16x256xf32>,
    return
  }
  func.func @transform_0(%arg0: i32) -> (i32, i32, i32) {
    %c0_i32 = arith.constant 0 : i32
    %c0_i32_0 = arith.constant 0 : i32
    %c0_i32_1 = arith.constant 0 : i32
    return %arg0, %c0_i32, %c0_i32_0 : i32, i32, i32
  }
  func.func @transform_1(%arg0: i32) -> (i32, i32, i32) {
    %c0_i32 = arith.constant 0 : i32
    %c0_i32_0 = arith.constant 0 : i32
    %c0_i32_1 = arith.constant 0 : i32
    return %arg0, %c0_i32, %c0_i32_0 : i32, i32, i32
  }
  func.func @transform_2(%arg0: i32) -> (i32, i32) {
    %c0_i32 = arith.constant 0 : i32
    %c0_i32_0 = arith.constant 0 : i32
    %c0_i32_1 = arith.constant 0 : i32
    return %c0_i32, %c0_i32_0 : i32, i32
  }
  func.func @transform_3(%arg0: i32) -> (i32, i32) {
    %c0_i32 = arith.constant 0 : i32
    %c0_i32_0 = arith.constant 0 : i32
    %c0_i32_1 = arith.constant 0 : i32
    return %c0_i32, %c0_i32_0 : i32, i32
  }
  func.func @transform_4(%arg0: i32) -> (i32, i32) {
    %c0_i32 = arith.constant 0 : i32
    %c0_i32_0 = arith.constant 0 : i32
    %c0_i32_1 = arith.constant 0 : i32
    return %c0_i32, %c0_i32_0 : i32, i32
  }
  func.func @transform_5(%arg0: i32) -> (i32, i32) {
    %c0_i32 = arith.constant 0 : i32
    %c0_i32_0 = arith.constant 0 : i32
    %c0_i32_1 = arith.constant 0 : i32
    return %c0_i32, %c0_i32_0 : i32, i32
  }
  func.func @transform_6(%arg0: i32) -> (i32, i32, i32) {
    %c0_i32 = arith.constant 0 : i32
    %c0_i32_0 = arith.constant 0 : i32
    %c0_i32_1 = arith.constant 0 : i32
    return %arg0, %c0_i32, %c0_i32_0 : i32, i32, i32
  }
  func.func @transform_7(%arg0: i32) -> (i32, i32, i32) {
    %c0_i32 = arith.constant 0 : i32
    %c0_i32_0 = arith.constant 0 : i32
    %c0_i32_1 = arith.constant 0 : i32
    return %arg0, %c0_i32, %c0_i32_0 : i32, i32, i32
  }
}

</mosaic_0001>

<llo_original>
// kernel: tpu_custom_call.1
$region0: #{tpu_custom_call.1}
  #allocation0 [shape = 'u32[]', space=smem, size = 0x4, offset = 0x4, fixed_abs, tag = 'smem constant byte address 0x4 - core index']
  #allocation1 [shape = 'u32[144,128]{1,0:T(1,128)}', space=vmem, size = 0x12000, scoped, tag = 'internal scratch']
  %s0 = inlined_call_operand.hbm [shape: f32[2,16,384], index: 0, kind: input, shape index: {}]
  %s1 = inlined_call_operand.vmem [shape: f32[2,16,1], index: 1, kind: input, shape index: {}]
  %s2 = inlined_call_operand.hbm [shape: f32[384,256], index: 2, kind: input, shape index: {}]
  %s3 = inlined_call_operand.vmem [shape: f32[1,256], index: 3, kind: input, shape index: {}]
  %s4 = inlined_call_operand.hbm [shape: f32[256,256], index: 4, kind: input, shape index: {}]
  %s5 = inlined_call_operand.vmem [shape: f32[1,256], index: 5, kind: input, shape index: {}]
  %s6 = inlined_call_operand.hbm [shape: f32[2,16,256], index: 6, kind: output, shape index: {0}]
  %s7 = inlined_call_operand.hbm [shape: f32[2,16,256], index: 7, kind: output, shape index: {1}]
  %8 = xla_tuple %s6, %s7
  %s9 = sld [smem:[#allocation0]]
  $region77: #{tpu_custom_call.1} parent=0
    _
  %s11 = ssub.s32 1, %s9
  %s12 = scalar_select 0, %s11, %s9
  $region1: #{tpu_custom_call.1} parent=0
    #allocation2 [shape = 'u8[49152]{0}', space=vmem, size = 0xc000, scoped, tag = 'input window, operand 0']
    #allocation3 [shape = 's32[2]{0}', space=sflag, size = 0x8, scoped, tag = 'scoped memory for tpu_custom_call.1']
    #allocation4 [shape = 's32[2]{0}', space=sflag, size = 0x8, scoped, tag = 'scoped memory for tpu_custom_call.1']
    #allocation5 [shape = 'u8[393216]{0}', space=vmem, size = 0x60000, scoped, tag = 'input window, operand 2, single buffered']
    #allocation6 [shape = 's32[1]{0}', space=sflag, size = 0x4, scoped, tag = 'scoped memory for tpu_custom_call.1']
    #allocation7 [shape = 'u8[262144]{0}', space=vmem, size = 0x40000, scoped, tag = 'input window, operand 4, single buffered']
    #allocation8 [shape = 'u8[32768]{0}', space=vmem, size = 0x8000, scoped, tag = 'output window, operand 0']
    #allocation9 [shape = 'u8[32768]{0}', space=vmem, size = 0x8000, scoped, tag = 'output window, operand 1']
    #allocation10 [shape = 's32[2]{0}', space=sflag, size = 0x8, scoped, tag = 'scoped memory for tpu_custom_call.1']
    %13 = vsyncpa [#allocation3], 0
    %s14 = scalar_lea.sflag [#allocation3], 1
    %15 = vsyncpa %s14, 0
    %16 = vsyncpa [#allocation6], 0
    %17 = vsyncpa [#allocation4], 0
    %s18 = scalar_lea.sflag [#allocation4], 1
    %19 = vsyncpa %s18, 0
    %20 = vsyncpa [#allocation10], 0
    %s21 = scalar_lea.sflag [#allocation10], 1
    %22 = vsyncpa %s21, 0
    loop: start=0, step=1, limit=4
    $region2: #{tpu_custom_call.1} parent=1 // loop_pre_header
      _
    $region3: #{tpu_custom_call.1} parent=1 // loop_header
      %s24 = sphi 0, %s28
      %p25 = scmp.ge.s32.totalorder %s24, 4
      %s34 = sphi 0, %s36
      %s37 = sphi 0, %s34
      %s38 = sphi 0, %s37
      %s54 = sphi 0, %s38
      %s60 = sphi 0, %s62
      %s63 = sphi 0, %s60
      %s64 = sphi 0, %s63
      %s80 = sphi 0, %s64
      %s84 = sphi 0, %s84
      %s86 = sphi 0, %s84
      %s87 = sphi 0, %s86
      %s101 = sphi 0, %s87
      %s105 = sphi 0, %s105
      %s107 = sphi 0, %s105
      %s108 = sphi 0, %s107
      %s122 = sphi 0, %s108
      %s126 = sphi 0, %s126
      %s128 = sphi 0, %s126
      %s129 = sphi 0, %s128
      %s143 = sphi 0, %s129
      %s147 = sphi 0, %s147
      %s149 = sphi 0, %s147
      %s150 = sphi 0, %s149
      %s164 = sphi 0, %s150
      %s170 = sphi 0, %s172
      %s173 = sphi 0, %s170
      %s174 = sphi 0, %s173
      %s190 = sphi 0, %s174
      %s196 = sphi 0, %s198
      %s199 = sphi 0, %s196
      %s200 = sphi 0, %s199
      %s216 = sphi 0, %s200
    $region4: #{tpu_custom_call.1} parent=1 // loop_header_branch
      %27 = sbr.rel (%p25) target = $region8
    $region5: #{tpu_custom_call.1} parent=1 // loop_body
      %s29 = ssub.s32 %s24, 1
      %s30 = ssub.s32 %s24, 2
      %s31 = sadd.s32 %s24, 1
      %s32 = ssub.s32 %s24, %s31
      %p33 = scmp.eq.s32.totalorder %s32, 0
      %s35 = sadd.s32 %s34, 1
      %s36 = scalar_select %p33, %s34, %s35
      %p39 = pneg %p33
      %p40 = scmp.eq.s32.totalorder %s24, 1
      %p41 = por %p39, %p40
      %p42 = scmp.ne.s32.totalorder %s34, %s37
      %p43 = scmp.eq.s32.totalorder %s24, 0
      %p44 = por %p42, %p43
      %p45 = scmp.ne.s32.totalorder %s34, %s37
      %p46 = scmp.eq.s32.totalorder %s29, 1
      %p47 = por %p45, %p46
      %p48 = scmp.ne.s32.totalorder %s37, %s38
      %p49 = scmp.eq.s32.totalorder %s29, 0
      %p50 = por %p48, %p49
      %p51 = scmp.ne.s32.totalorder %s37, %s38
      %p52 = scmp.eq.s32.totalorder %s30, 1
      %p53 = por %p51, %p52
      %p55 = scmp.ne.s32.totalorder %s38, %s54
      %p56 = scmp.eq.s32.totalorder %s30, 0
      %p57 = por %p55, %p56
      %s58 = ssub.s32 %s24, %s31
      %p59 = scmp.eq.s32.totalorder %s58, 0
      %s61 = sadd.s32 %s60, 1
      %s62 = scalar_select %p59, %s60, %s61
      %p65 = pneg %p59
      %p66 = scmp.eq.s32.totalorder %s24, 1
      %p67 = por %p65, %p66
      %p68 = scmp.ne.s32.totalorder %s60, %s63
      %p69 = scmp.eq.s32.totalorder %s24, 0
      %p70 = por %p68, %p69
      %p71 = scmp.ne.s32.totalorder %s60, %s63
      %p72 = scmp.eq.s32.totalorder %s29, 1
      %p73 = por %p71, %p72
      %p74 = scmp.ne.s32.totalorder %s63, %s64
      %p75 = scmp.eq.s32.totalorder %s29, 0
      %p76 = por %p74, %p75
      %p77 = scmp.ne.s32.totalorder %s63, %s64
      %p78 = scmp.eq.s32.totalorder %s30, 1
      %p79 = por %p77, %p78
      %p81 = scmp.ne.s32.totalorder %s64, %s80
      %p82 = scmp.eq.s32.totalorder %s30, 0
      %p83 = por %p81, %p82
      %s85 = sadd.s32 %s84, 1
      %p88 = scmp.eq.s32.totalorder %s24, 1
      %p89 = scmp.ne.s32.totalorder %s84, %s86
      %p90 = scmp.eq.s32.totalorder %s24, 0
      %p91 = por %p89, %p90
      %p92 = scmp.ne.s32.totalorder %s84, %s86
      %p93 = scmp.eq.s32.totalorder %s29, 1
      %p94 = por %p92, %p93
      %p95 = scmp.ne.s32.totalorder %s86, %s87
      %p96 = scmp.eq.s32.totalorder %s29, 0
      %p97 = por %p95, %p96
      %p98 = scmp.ne.s32.totalorder %s86, %s87
      %p99 = scmp.eq.s32.totalorder %s30, 1
      %p100 = por %p98, %p99
      %p102 = scmp.ne.s32.totalorder %s87, %s101
      %p103 = scmp.eq.s32.totalorder %s30, 0
      %p104 = por %p102, %p103
      %s106 = sadd.s32 %s105, 1
      %p109 = scmp.eq.s32.totalorder %s24, 1
      %p110 = scmp.ne.s32.totalorder %s105, %s107
      %p111 = scmp.eq.s32.totalorder %s24, 0
      %p112 = por %p110, %p111
      %p113 = scmp.ne.s32.totalorder %s105, %s107
      %p114 = scmp.eq.s32.totalorder %s29, 1
      %p115 = por %p113, %p114
      %p116 = scmp.ne.s32.totalorder %s107, %s108
      %p117 = scmp.eq.s32.totalorder %s29, 0
      %p118 = por %p116, %p117
      %p119 = scmp.ne.s32.totalorder %s107, %s108
      %p120 = scmp.eq.s32.totalorder %s30, 1
      %p121 = por %p119, %p120
      %p123 = scmp.ne.s32.totalorder %s108, %s122
      %p124 = scmp.eq.s32.totalorder %s30, 0
      %p125 = por %p123, %p124
      %s127 = sadd.s32 %s126, 1
      %p130 = scmp.eq.s32.totalorder %s24, 1
      %p131 = scmp.ne.s32.totalorder %s126, %s128
      %p132 = scmp.eq.s32.totalorder %s24, 0
      %p133 = por %p131, %p132
      %p134 = scmp.ne.s32.totalorder %s126, %s128
      %p135 = scmp.eq.s32.totalorder %s29, 1
      %p136 = por %p134, %p135
      %p137 = scmp.ne.s32.totalorder %s128, %s129
      %p138 = scmp.eq.s32.totalorder %s29, 0
      %p139 = por %p137, %p138
      %p140 = scmp.ne.s32.totalorder %s128, %s129
      %p141 = scmp.eq.s32.totalorder %s30, 1
      %p142 = por %p140, %p141
      %p144 = scmp.ne.s32.totalorder %s129, %s143
      %p145 = scmp.eq.s32.totalorder %s30, 0
      %p146 = por %p144, %p145
      %s148 = sadd.s32 %s147, 1
      %p151 = scmp.eq.s32.totalorder %s24, 1
      %p152 = scmp.ne.s32.totalorder %s147, %s149
      %p153 = scmp.eq.s32.totalorder %s24, 0
      %p154 = por %p152, %p153
      %p155 = scmp.ne.s32.totalorder %s147, %s149
      %p156 = scmp.eq.s32.totalorder %s29, 1
      %p157 = por %p155, %p156
      %p158 = scmp.ne.s32.totalorder %s149, %s150
      %p159 = scmp.eq.s32.totalorder %s29, 0
      %p160 = por %p158, %p159
      %p161 = scmp.ne.s32.totalorder %s149, %s150
      %p162 = scmp.eq.s32.totalorder %s30, 1
      %p163 = por %p161, %p162
      %p165 = scmp.ne.s32.totalorder %s150, %s164
      %p166 = scmp.eq.s32.totalorder %s30, 0
      %p167 = por %p165, %p166
      %s168 = ssub.s32 %s24, %s31
      %p169 = scmp.eq.s32.totalorder %s168, 0
      %s171 = sadd.s32 %s170, 1
      %s172 = scalar_select %p169, %s170, %s171
      %p175 = pneg %p169
      %p176 = scmp.eq.s32.totalorder %s24, 1
      %p177 = por %p175, %p176
      %p178 = scmp.ne.s32.totalorder %s170, %s173
      %p179 = scmp.eq.s32.totalorder %s24, 0
      %p180 = por %p178, %p179
      %p181 = scmp.ne.s32.totalorder %s170, %s173
      %p182 = scmp.eq.s32.totalorder %s29, 1
      %p183 = por %p181, %p182
      %p184 = scmp.ne.s32.totalorder %s173, %s174
      %p185 = scmp.eq.s32.totalorder %s29, 0
      %p186 = por %p184, %p185
      %p187 = scmp.ne.s32.totalorder %s173, %s174
      %p188 = scmp.eq.s32.totalorder %s30, 1
      %p189 = por %p187, %p188
      %p191 = scmp.ne.s32.totalorder %s174, %s190
      %p192 = scmp.eq.s32.totalorder %s30, 0
      %p193 = por %p191, %p192
      %s194 = ssub.s32 %s24, %s31
      %p195 = scmp.eq.s32.totalorder %s194, 0
      %s197 = sadd.s32 %s196, 1
      %s198 = scalar_select %p195, %s196, %s197
      %p201 = pneg %p195
      %p202 = scmp.eq.s32.totalorder %s24, 1
      %p203 = por %p201, %p202
      %p204 = scmp.ne.s32.totalorder %s196, %s199
      %p205 = scmp.eq.s32.totalorder %s24, 0
      %p206 = por %p204, %p205
      %p207 = scmp.ne.s32.totalorder %s196, %s199
      %p208 = scmp.eq.s32.totalorder %s29, 1
      %p209 = por %p207, %p208
      %p210 = scmp.ne.s32.totalorder %s199, %s200
      %p211 = scmp.eq.s32.totalorder %s29, 0
      %p212 = por %p210, %p211
      %p213 = scmp.ne.s32.totalorder %s199, %s200
      %p214 = scmp.eq.s32.totalorder %s30, 1
      %p215 = por %p213, %p214
      %p217 = scmp.ne.s32.totalorder %s200, %s216
      %p218 = scmp.eq.s32.totalorder %s30, 0
      %p219 = por %p217, %p218
      %p220 = scmp.le.s32.totalorder 1, %s24
      %p221 = scmp.lt.s32.totalorder %s24, 3
      %p222 = pnand %p220, %p221
      %p223 = pneg %p222
      // Predicated region
      $region9: #{tpu_custom_call.1} parent=5 // pred_check
        _
      $region10: #{tpu_custom_call.1} parent=5 // pred_check_branch
        %225 = sbr.rel (%p222) target = $region12
      $region11: #{tpu_custom_call.1} parent=5 // pred_region
        %s226 = ssub.s32 %s24, 1
        // Predicated region
        $region13: #{tpu_custom_call.1} parent=11 // pred_check
          %p227 = pneg %p97
        $region14: #{tpu_custom_call.1} parent=11 // pred_check_branch
          %229 = sbr.rel (%p227) target = $region16
        $region15: #{tpu_custom_call.1} parent=11 // pred_region
          %s231 = ssub.s32 12288, 12288
          %232 = vsyncadd [#allocation6], %s231
          %s233 = sshll.u32 [#allocation5], 4
          %s234 = int_to_ptr.vmem [resolvable:$true] %s233
          %239 = dma.hbm_to_vmem [thread:$0]  %s2, 12288, %s234, [#allocation6], 256, 256, 16
        $region16: #{tpu_custom_call.1} parent=11 // pred_fallthru
          _
        // Predicated region
        $region17: #{tpu_custom_call.1} parent=11 // pred_check
          %p240 = pneg %p118
        $region18: #{tpu_custom_call.1} parent=11 // pred_check_branch
          %242 = sbr.rel (%p240) target = $region20
        $region19: #{tpu_custom_call.1} parent=11 // pred_region
          _
        $region20: #{tpu_custom_call.1} parent=11 // pred_fallthru
          _
        // Predicated region
        $region21: #{tpu_custom_call.1} parent=11 // pred_check
          %p243 = pneg %p139
        $region22: #{tpu_custom_call.1} parent=11 // pred_check_branch
          %245 = sbr.rel (%p243) target = $region24
        $region23: #{tpu_custom_call.1} parent=11 // pred_region
          %s247 = ssub.s32 8192, 8192
          %248 = vsyncadd [#allocation6], %s247
          %s249 = sshll.u32 [#allocation7], 4
          %s250 = int_to_ptr.vmem [resolvable:$true] %s249
          %255 = dma.hbm_to_vmem [thread:$0]  %s4, 8192, %s250, [#allocation6], 256, 256, 16
        $region24: #{tpu_custom_call.1} parent=11 // pred_fallthru
          _
        // Predicated region
        $region25: #{tpu_custom_call.1} parent=11 // pred_check
          %p256 = pneg %p160
        $region26: #{tpu_custom_call.1} parent=11 // pred_check_branch
          %258 = sbr.rel (%p256) target = $region28
        $region27: #{tpu_custom_call.1} parent=11 // pred_region
          _
        $region28: #{tpu_custom_call.1} parent=11 // pred_fallthru
          _
      $region12: #{tpu_custom_call.1} parent=5 // pred_fallthru
        _
      %p259 = scmp.lt.s32.totalorder %s24, 2
      // Predicated region
      $region29: #{tpu_custom_call.1} parent=5 // pred_check
        %p260 = pneg %p259
      $region30: #{tpu_custom_call.1} parent=5 // pred_check_branch
        %262 = sbr.rel (%p260) target = $region32
      $region31: #{tpu_custom_call.1} parent=5 // pred_region
        // Predicated region
        $region33: #{tpu_custom_call.1} parent=31 // pred_check
          %p263 = pneg %p44
        $region34: #{tpu_custom_call.1} parent=31 // pred_check_branch
          %265 = sbr.rel (%p263) target = $region36
        $region35: #{tpu_custom_call.1} parent=31 // pred_region
          %s266 = sand.u32 %s34, 1
          %s267 = scalar_lea.sflag [#allocation3], %s266
          %s268 = sand.u32 %s34, 1
          %s269 = smul.addr %s268, 48
          %s270 = scalar_lea.vmem [#allocation2], %s269
          %s272 = ssub.s32 768, 768
          %273 = vsyncadd %s267, %s272
          %s274 = smul.addr %s24, 6
          %s275 = smul.addr %s274, 128
          %s276 = scalar_lea.hbm %s0, %s275
          %s277 = sshll.u32 %s270, 4
          %s278 = int_to_ptr.vmem [resolvable:$true] %s277
          %283 = dma.hbm_to_vmem [thread:$0]  %s276, 768, %s278, %s267, 384, 384, 24
        $region36: #{tpu_custom_call.1} parent=31 // pred_fallthru
          _
        // Predicated region
        $region37: #{tpu_custom_call.1} parent=31 // pred_check
          %p284 = pneg %p70
        $region38: #{tpu_custom_call.1} parent=31 // pred_check_branch
          %286 = sbr.rel (%p284) target = $region40
        $region39: #{tpu_custom_call.1} parent=31 // pred_region
          %p287 = scmp.lt.s32.totalorder %s24, 1
          %s288 = scalar_select %p287, %s24, 1
          %s289 = smul.addr %s288, 2
          %s290 = smul.addr %s289, 8
          %s291 = scalar_lea.vmem %s1, %s290
        $region40: #{tpu_custom_call.1} parent=31 // pred_fallthru
          _
      $region32: #{tpu_custom_call.1} parent=5 // pred_fallthru
        _
      %p292 = scmp.le.s32.totalorder 1, %s24
      %p293 = scmp.lt.s32.totalorder %s24, 3
      %p294 = pnand %p292, %p293
      %p295 = pneg %p294
      // Predicated region
      $region41: #{tpu_custom_call.1} parent=5 // pred_check
        _
      $region42: #{tpu_custom_call.1} parent=5 // pred_check_branch
        %297 = sbr.rel (%p294) target = $region44
      $region43: #{tpu_custom_call.1} parent=5 // pred_region
        %s298 = ssub.s32 %s24, 1
        %s299 = sand.u32 %s37, 1
        %s300 = scalar_lea.sflag [#allocation3], %s299
        %s301 = sand.u32 %s37, 1
        %s302 = smul.addr %s301, 48
        %s303 = scalar_lea.vmem [#allocation2], %s302
        // Predicated region
        $region45: #{tpu_custom_call.1} parent=43 // pred_check
          %p304 = pneg %p50
        $region46: #{tpu_custom_call.1} parent=43 // pred_check_branch
          %306 = sbr.rel (%p304) target = $region48
        $region47: #{tpu_custom_call.1} parent=43 // pred_region
          %307 = dma.done %s300, 768
        $region48: #{tpu_custom_call.1} parent=43 // pred_fallthru
          _
        // Predicated region
        $region49: #{tpu_custom_call.1} parent=43 // pred_check
          %p308 = pneg %p97
        $region50: #{tpu_custom_call.1} parent=43 // pred_check_branch
          %310 = sbr.rel (%p308) target = $region52
        $region51: #{tpu_custom_call.1} parent=43 // pred_region
          %311 = dma.done [#allocation6], 12288
        $region52: #{tpu_custom_call.1} parent=43 // pred_fallthru
          _
        // Predicated region
        $region53: #{tpu_custom_call.1} parent=43 // pred_check
          %p312 = pneg %p139
        $region54: #{tpu_custom_call.1} parent=43 // pred_check_branch
          %314 = sbr.rel (%p312) target = $region56
        $region55: #{tpu_custom_call.1} parent=43 // pred_region
          %315 = dma.done [#allocation6], 8192
        $region56: #{tpu_custom_call.1} parent=43 // pred_fallthru
          _
        %s316 = sand.u32 %s37, 1
        %s317 = scalar_lea.sflag [#allocation3], %s316
        %s318 = sand.u32 %s37, 1
        %s319 = smul.addr %s318, 48
        %s320 = scalar_lea.vmem [#allocation2], %s319
        %p321 = pneg %p50
        %p322 = pneg %p47
        %p323 = scmp.lt.s32.totalorder %s29, 1
        %s324 = scalar_select %p323, %s29, 1
        %s325 = smul.addr %s324, 2
        %s326 = smul.addr %s325, 8
        %s327 = scalar_lea.vmem %s1, %s326
        %p328 = pneg %p76
        %p329 = pneg %p73
        %p330 = pneg %p97
        %p331 = pneg %p94
        %p332 = pneg %p118
        %p333 = pneg %p115
        %p334 = pneg %p139
        %p335 = pneg %p136
        %p336 = pneg %p160
        %p337 = pneg %p157
        %p338 = pneg %p186
        %p339 = pneg %p183
        %s340 = sand.u32 %s173, 1
        %s341 = scalar_lea.sflag [#allocation4], %s340
        %s342 = sand.u32 %s173, 1
        %s343 = smul.addr %s342, 32
        %s344 = scalar_lea.vmem [#allocation8], %s343
        %p345 = pneg %p212
        %p346 = pneg %p209
        %s347 = sand.u32 %s199, 1
        %s348 = scalar_lea.sflag [#allocation10], %s347
        %s349 = sand.u32 %s199, 1
        %s350 = smul.addr %s349, 32
        %s351 = scalar_lea.vmem [#allocation9], %s350
        %p352 = scmp.lt.s32.totalorder %s29, 1
        %s353 = scalar_select %p352, %s29, 1
        %s354 = smul.addr %s353, 2
        %s355 = smul.addr %s354, 8
        %s356 = scalar_lea.vmem %s1, %s355
        %v357 = vld [vmem:[%s303] sm:$0xff]
        %v358 = vld [vmem:[%s303 + $0x8] sm:$0xff]
        %v359 = vld [vmem:[%s303 + $0x10] sm:$0xff]
        %v360 = vld [vmem:[%s303 + $0x18] sm:$0xff]
        %v361 = vld [vmem:[%s303 + $0x20] sm:$0xff]
        %v362 = vld [vmem:[%s303 + $0x28] sm:$0xff]
        %v363 = vld [vmem:[#allocation5] sm:$0xff]
        %v364 = vld [vmem:[#allocation5 + $0x8] sm:$0xff]
        %v365 = vld [vmem:[#allocation5 + $0x10] sm:$0xff]
        %v366 = vld [vmem:[#allocation5 + $0x18] sm:$0xff]
        %v367 = vld [vmem:[#allocation5 + $0x20] sm:$0xff]
        %v368 = vld [vmem:[#allocation5 + $0x28] sm:$0xff]
        %v369 = vld [vmem:[#allocation5 + $0x30] sm:$0xff]
        %v370 = vld [vmem:[#allocation5 + $0x38] sm:$0xff]
        %v371 = vld [vmem:[#allocation5 + $0x40] sm:$0xff]
        %v372 = vld [vmem:[#allocation5 + $0x48] sm:$0xff]
        %v373 = vld [vmem:[#allocation5 + $0x50] sm:$0xff]
        %v374 = vld [vmem:[#allocation5 + $0x58] sm:$0xff]
        %v375 = vld [vmem:[#allocation5 + $0x60] sm:$0xff]
        %v376 = vld [vmem:[#allocation5 + $0x68] sm:$0xff]
        %v377 = vld [vmem:[#allocation5 + $0x70] sm:$0xff]
        %v378 = vld [vmem:[#allocation5 + $0x78] sm:$0xff]
        %v379 = vld [vmem:[#allocation5 + $0x80] sm:$0xff]
        %v380 = vld [vmem:[#allocation5 + $0x88] sm:$0xff]
        %v381 = vld [vmem:[#allocation5 + $0x90] sm:$0xff]
        %v382 = vld [vmem:[#allocation5 + $0x98] sm:$0xff]
        %v383 = vld [vmem:[#allocation5 + $0xa0] sm:$0xff]
        %v384 = vld [vmem:[#allocation5 + $0xa8] sm:$0xff]
        %v385 = vld [vmem:[#allocation5 + $0xb0] sm:$0xff]
        %v386 = vld [vmem:[#allocation5 + $0xb8] sm:$0xff]
        %v387 = vld [vmem:[#allocation5 + $0xc0] sm:$0xff]
        %v388 = vld [vmem:[#allocation5 + $0xc8] sm:$0xff]
        %v389 = vld [vmem:[#allocation5 + $0xd0] sm:$0xff]
        %v390 = vld [vmem:[#allocation5 + $0xd8] sm:$0xff]
        %v391 = vld [vmem:[#allocation5 + $0xe0] sm:$0xff]
        %v392 = vld [vmem:[#allocation5 + $0xe8] sm:$0xff]
        %v393 = vld [vmem:[#allocation5 + $0xf0] sm:$0xff]
        %v394 = vld [vmem:[#allocation5 + $0xf8] sm:$0xff]
        %v395 = vld [vmem:[#allocation5 + $0x100] sm:$0xff]
        %v396 = vld [vmem:[#allocation5 + $0x108] sm:$0xff]
        %v397 = vld [vmem:[#allocation5 + $0x110] sm:$0xff]
        %v398 = vld [vmem:[#allocation5 + $0x118] sm:$0xff]
        %v399 = vld [vmem:[#allocation5 + $0x120] sm:$0xff]
        %v400 = vld [vmem:[#allocation5 + $0x128] sm:$0xff]
        %v401 = vld [vmem:[#allocation5 + $0x130] sm:$0xff]
        %v402 = vld [vmem:[#allocation5 + $0x138] sm:$0xff]
        %v403 = vld [vmem:[#allocation5 + $0x140] sm:$0xff]
        %v404 = vld [vmem:[#allocation5 + $0x148] sm:$0xff]
        %v405 = vld [vmem:[#allocation5 + $0x150] sm:$0xff]
        %v406 = vld [vmem:[#allocation5 + $0x158] sm:$0xff]
        %v407 = vld [vmem:[#allocation5 + $0x160] sm:$0xff]
        %v408 = vld [vmem:[#allocation5 + $0x168] sm:$0xff]
        %v409 = vld [vmem:[#allocation5 + $0x170] sm:$0xff]
        %v410 = vld [vmem:[#allocation5 + $0x178] sm:$0xff]
        %v411 = vld [vmem:[#allocation5 + $0x180] sm:$0xff]
        %v412 = vld [vmem:[#allocation5 + $0x188] sm:$0xff]
        %v413 = vld [vmem:[#allocation5 + $0x190] sm:$0xff]
        %v414 = vld [vmem:[#allocation5 + $0x198] sm:$0xff]
        %v415 = vld [vmem:[#allocation5 + $0x1a0] sm:$0xff]
        %v416 = vld [vmem:[#allocation5 + $0x1a8] sm:$0xff]
        %v417 = vld [vmem:[#allocation5 + $0x1b0] sm:$0xff]
        %v418 = vld [vmem:[#allocation5 + $0x1b8] sm:$0xff]
        %v419 = vld [vmem:[#allocation5 + $0x1c0] sm:$0xff]
        %v420 = vld [vmem:[#allocation5 + $0x1c8] sm:$0xff]
        %v421 = vld [vmem:[#allocation5 + $0x1d0] sm:$0xff]
        %v422 = vld [vmem:[#allocation5 + $0x1d8] sm:$0xff]
        %v423 = vld [vmem:[#allocation5 + $0x1e0] sm:$0xff]
        %v424 = vld [vmem:[#allocation5 + $0x1e8] sm:$0xff]
        %v425 = vld [vmem:[#allocation5 + $0x1f0] sm:$0xff]
        %v426 = vld [vmem:[#allocation5 + $0x1f8] sm:$0xff]
        %v427 = vld [vmem:[#allocation5 + $0x200] sm:$0xff]
        %v428 = vld [vmem:[#allocation5 + $0x208] sm:$0xff]
        %v429 = vld [vmem:[#allocation5 + $0x210] sm:$0xff]
        %v430 = vld [vmem:[#allocation5 + $0x218] sm:$0xff]
        %v431 = vld [vmem:[#allocation5 + $0x220] sm:$0xff]
        %v432 = vld [vmem:[#allocation5 + $0x228] sm:$0xff]
        %v433 = vld [vmem:[#allocation5 + $0x230] sm:$0xff]
        %v434 = vld [vmem:[#allocation5 + $0x238] sm:$0xff]
        %v435 = vld [vmem:[#allocation5 + $0x240] sm:$0xff]
        %v436 = vld [vmem:[#allocation5 + $0x248] sm:$0xff]
        %v437 = vld [vmem:[#allocation5 + $0x250] sm:$0xff]
        %v438 = vld [vmem:[#allocation5 + $0x258] sm:$0xff]
        %v439 = vld [vmem:[#allocation5 + $0x260] sm:$0xff]
        %v440 = vld [vmem:[#allocation5 + $0x268] sm:$0xff]
        %v441 = vld [vmem:[#allocation5 + $0x270] sm:$0xff]
        %v442 = vld [vmem:[#allocation5 + $0x278] sm:$0xff]
        %v443 = vld [vmem:[#allocation5 + $0x280] sm:$0xff]
        %v444 = vld [vmem:[#allocation5 + $0x288] sm:$0xff]
        %v445 = vld [vmem:[#allocation5 + $0x290] sm:$0xff]
        %v446 = vld [vmem:[#allocation5 + $0x298] sm:$0xff]
        %v447 = vld [vmem:[#allocation5 + $0x2a0] sm:$0xff]
        %v448 = vld [vmem:[#allocation5 + $0x2a8] sm:$0xff]
        %v449 = vld [vmem:[#allocation5 + $0x2b0] sm:$0xff]
        %v450 = vld [vmem:[#allocation5 + $0x2b8] sm:$0xff]
        %v451 = vld [vmem:[#allocation5 + $0x2c0] sm:$0xff]
        %v452 = vld [vmem:[#allocation5 + $0x2c8] sm:$0xff]
        %v453 = vld [vmem:[#allocation5 + $0x2d0] sm:$0xff]
        %v454 = vld [vmem:[#allocation5 + $0x2d8] sm:$0xff]
        %v455 = vld [vmem:[#allocation5 + $0x2e0] sm:$0xff]
        %v456 = vld [vmem:[#allocation5 + $0x2e8] sm:$0xff]
        %v457 = vld [vmem:[#allocation5 + $0x2f0] sm:$0xff]
        %v458 = vld [vmem:[#allocation5 + $0x2f8] sm:$0xff]
        %v459 = vld [vmem:[%s3] sm:$0x3]
        %v461 = vlaneseq
        %v462 = vshrl.u32 %v461, 7
        %v463 = vsub.s32 0, %v462
        %v464 = vrot.slane %v459, %v463
        %v465 = vlaneseq
        %v466 = vshrl.u32 %v465, 7
        %v467 = vsub.s32 1, %v466
        %v468 = vrot.slane %v459, %v467
        %v471 = vand.u32 %v394, 4294901760
        %472 = vmatprep.subr.mxu0 %v471
        %v473 = vand.u32 %v393, 4294901760
        %474 = vmatpush1.msra.mxu0 %v473
        %v475 = vand.u32 %v392, 4294901760
        %476 = vmatprep.subr.mxu0 %v475
        %v477 = vand.u32 %v391, 4294901760
        %478 = vmatpush1.msra.mxu0 %v477
        %v479 = vand.u32 %v390, 4294901760
        %480 = vmatprep.subr.mxu0 %v479
        %v481 = vand.u32 %v389, 4294901760
        %482 = vmatpush1.msra.mxu0 %v481
        %v483 = vand.u32 %v388, 4294901760
        %484 = vmatprep.subr.mxu0 %v483
        %v485 = vand.u32 %v387, 4294901760
        %486 = vmatpush1.msra.mxu0 %v485
        %v487 = vand.u32 %v386, 4294901760
        %488 = vmatprep.subr.mxu0 %v487
        %v489 = vand.u32 %v385, 4294901760
        %490 = vmatpush1.msra.mxu0 %v489
        %v491 = vand.u32 %v384, 4294901760
        %492 = vmatprep.subr.mxu0 %v491
        %v493 = vand.u32 %v383, 4294901760
        %494 = vmatpush1.msra.mxu0 %v493
        %v495 = vand.u32 %v382, 4294901760
        %496 = vmatprep.subr.mxu0 %v495
        %v497 = vand.u32 %v381, 4294901760
        %498 = vmatpush1.msra.mxu0 %v497
        %v499 = vand.u32 %v380, 4294901760
        %500 = vmatprep.subr.mxu0 %v499
        %v501 = vand.u32 %v379, 4294901760
        %502 = vmatpush1.msra.mxu0 %v501
        %v503 = vand.u32 %v378, 4294901760
        %504 = vmatprep.subr.mxu0 %v503
        %v505 = vand.u32 %v377, 4294901760
        %506 = vmatpush1.msra.mxu0 %v505
        %v507 = vand.u32 %v376, 4294901760
        %508 = vmatprep.subr.mxu0 %v507
        %v509 = vand.u32 %v375, 4294901760
        %510 = vmatpush1.msra.mxu0 %v509
        %v511 = vand.u32 %v374, 4294901760
        %512 = vmatprep.subr.mxu0 %v511
        %v513 = vand.u32 %v373, 4294901760
        %514 = vmatpush1.msra.mxu0 %v513
        %v515 = vand.u32 %v372, 4294901760
        %516 = vmatprep.subr.mxu0 %v515
        %v517 = vand.u32 %v371, 4294901760
        %518 = vmatpush1.msra.mxu0 %v517
        %v519 = vand.u32 %v370, 4294901760
        %520 = vmatprep.subr.mxu0 %v519
        %v521 = vand.u32 %v369, 4294901760
        %522 = vmatpush1.msra.mxu0 %v521
        %v523 = vand.u32 %v368, 4294901760
        %524 = vmatprep.subr.mxu0 %v523
        %v525 = vand.u32 %v367, 4294901760
        %526 = vmatpush1.msra.mxu0 %v525
        %v527 = vand.u32 %v366, 4294901760
        %528 = vmatprep.subr.mxu0 %v527
        %v529 = vand.u32 %v365, 4294901760
        %530 = vmatpush1.msra.mxu0 %v529
        %v531 = vand.u32 %v364, 4294901760
        %532 = vmatprep.subr.mxu0 %v531
        %v533 = vand.u32 %v363, 4294901760
        %534 = vmatpush1.msra.mxu0 %v533
        %v535 = vand.u32 %v426, 4294901760
        %536 = vmatprep.subr.mxu0 %v535
        %v537 = vand.u32 %v425, 4294901760
        %538 = vmatpush2.msra.mxu0 %v537
        %v539 = vand.u32 %v424, 4294901760
        %540 = vmatprep.subr.mxu0 %v539
        %v541 = vand.u32 %v423, 4294901760
        %542 = vmatpush2.msra.mxu0 %v541
        %v543 = vand.u32 %v422, 4294901760
        %544 = vmatprep.subr.mxu0 %v543
        %v545 = vand.u32 %v421, 4294901760
        %546 = vmatpush2.msra.mxu0 %v545
        %v547 = vand.u32 %v420, 4294901760
        %548 = vmatprep.subr.mxu0 %v547
        %v549 = vand.u32 %v419, 4294901760
        %550 = vmatpush2.msra.mxu0 %v549
        %v551 = vand.u32 %v418, 4294901760
        %552 = vmatprep.subr.mxu0 %v551
        %v553 = vand.u32 %v417, 4294901760
        %554 = vmatpush2.msra.mxu0 %v553
        %v555 = vand.u32 %v416, 4294901760
        %556 = vmatprep.subr.mxu0 %v555
        %v557 = vand.u32 %v415, 4294901760
        %558 = vmatpush2.msra.mxu0 %v557
        %v559 = vand.u32 %v414, 4294901760
        %560 = vmatprep.subr.mxu0 %v559
        %v561 = vand.u32 %v413, 4294901760
        %562 = vmatpush2.msra.mxu0 %v561
        %v563 = vand.u32 %v412, 4294901760
        %564 = vmatprep.subr.mxu0 %v563
        %v565 = vand.u32 %v411, 4294901760
        %566 = vmatpush2.msra.mxu0 %v565
        %v567 = vand.u32 %v410, 4294901760
        %568 = vmatprep.subr.mxu0 %v567
        %v569 = vand.u32 %v409, 4294901760
        %570 = vmatpush2.msra.mxu0 %v569
        %v571 = vand.u32 %v408, 4294901760
        %572 = vmatprep.subr.mxu0 %v571
        %v573 = vand.u32 %v407, 4294901760
        %574 = vmatpush2.msra.mxu0 %v573
        %v575 = vand.u32 %v406, 4294901760
        %576 = vmatprep.subr.mxu0 %v575
        %v577 = vand.u32 %v405, 4294901760
        %578 = vmatpush2.msra.mxu0 %v577
        %v579 = vand.u32 %v404, 4294901760
        %580 = vmatprep.subr.mxu0 %v579
        %v581 = vand.u32 %v403, 4294901760
        %582 = vmatpush2.msra.mxu0 %v581
        %v583 = vand.u32 %v402, 4294901760
        %584 = vmatprep.subr.mxu0 %v583
        %v585 = vand.u32 %v401, 4294901760
        %586 = vmatpush2.msra.mxu0 %v585
        %v587 = vand.u32 %v400, 4294901760
        %588 = vmatprep.subr.mxu0 %v587
        %v589 = vand.u32 %v399, 4294901760
        %590 = vmatpush2.msra.mxu0 %v589
        %v591 = vand.u32 %v398, 4294901760
        %592 = vmatprep.subr.mxu0 %v591
        %v593 = vand.u32 %v397, 4294901760
        %594 = vmatpush2.msra.mxu0 %v593
        %v595 = vand.u32 %v396, 4294901760
        %596 = vmatprep.subr.mxu0 %v595
        %v597 = vand.u32 %v395, 4294901760
        %598 = vmatpush2.msra.mxu0 %v597
        %v599 = vand.u32 %v358, 4294901760
        %v600 = vsub.f32 %v358, %v599
        %v601 = vand.u32 %v600, 4294901760
        %v602 = vsub.f32 %v600, %v601
        %v603 = vand.u32 %v602, 4294901760
        %604 = vmatprep.mubr.f32.mxu0 %v603
        %v605 = vand.u32 %v357, 4294901760
        %v606 = vsub.f32 %v357, %v605
        %v607 = vand.u32 %v606, 4294901760
        %v608 = vsub.f32 %v606, %v607
        %v609 = vand.u32 %v608, 4294901760
        %610 = vmatmul.mubr.f32.gmra.mxu0 %v609
        %v611 = vpop.f32.mrf.mxu0
        %v612 = vadd.f32 %v464, %v611
        %v613 = vpop.f32.mrf.mxu0
        %v614 = vadd.f32 %v468, %v613
        %v615 = vand.u32 %v361, 4294901760
        %v616 = vsub.f32 %v361, %v615
        %v617 = vand.u32 %v616, 4294901760
        %v618 = vsub.f32 %v616, %v617
        %v619 = vand.u32 %v618, 4294901760
        %620 = vmatprep.mubr.f32.mxu0 %v619
        %v621 = vand.u32 %v360, 4294901760
        %v622 = vsub.f32 %v360, %v621
        %v623 = vand.u32 %v622, 4294901760
        %v624 = vsub.f32 %v622, %v623
        %v625 = vand.u32 %v624, 4294901760
        %626 = vmatmul.mubr.f32.gmra.mxu0 %v625
        %v627 = vpop.f32.mrf.mxu0
        %v628 = vadd.f32 %v464, %v627
        %v629 = vpop.f32.mrf.mxu0
        %v630 = vadd.f32 %v468, %v629
        %631 = vdwg.mxu0
        %v632 = vand.u32 %v394, 4294901760
        %v633 = vsub.f32 %v394, %v632
        %v634 = vand.u32 %v633, 4294901760
        %v635 = vsub.f32 %v633, %v634
        %v636 = vand.u32 %v635, 4294901760
        %637 = vmatprep.subr.mxu0 %v636
        %v638 = vand.u32 %v393, 4294901760
        %v639 = vsub.f32 %v393, %v638
        %v640 = vand.u32 %v639, 4294901760
        %v641 = vsub.f32 %v639, %v640
        %v642 = vand.u32 %v641, 4294901760
        %643 = vmatpush1.msra.mxu0 %v642
        %v644 = vand.u32 %v392, 4294901760
        %v645 = vsub.f32 %v392, %v644
        %v646 = vand.u32 %v645, 4294901760
        %v647 = vsub.f32 %v645, %v646
        %v648 = vand.u32 %v647, 4294901760
        %649 = vmatprep.subr.mxu0 %v648
        %v650 = vand.u32 %v391, 4294901760
        %v651 = vsub.f32 %v391, %v650
        %v652 = vand.u32 %v651, 4294901760
        %v653 = vsub.f32 %v651, %v652
        %v654 = vand.u32 %v653, 4294901760
        %655 = vmatpush1.msra.mxu0 %v654
        %v656 = vand.u32 %v390, 4294901760
        %v657 = vsub.f32 %v390, %v656
        %v658 = vand.u32 %v657, 4294901760
        %v659 = vsub.f32 %v657, %v658
        %v660 = vand.u32 %v659, 4294901760
        %661 = vmatprep.subr.mxu0 %v660
        %v662 = vand.u32 %v389, 4294901760
        %v663 = vsub.f32 %v389, %v662
        %v664 = vand.u32 %v663, 4294901760
        %v665 = vsub.f32 %v663, %v664
        %v666 = vand.u32 %v665, 4294901760
        %667 = vmatpush1.msra.mxu0 %v666
        %v668 = vand.u32 %v388, 4294901760
        %v669 = vsub.f32 %v388, %v668
        %v670 = vand.u32 %v669, 4294901760
        %v671 = vsub.f32 %v669, %v670
        %v672 = vand.u32 %v671, 4294901760
        %673 = vmatprep.subr.mxu0 %v672
        %v674 = vand.u32 %v387, 4294901760
        %v675 = vsub.f32 %v387, %v674
        %v676 = vand.u32 %v675, 4294901760
        %v677 = vsub.f32 %v675, %v676
        %v678 = vand.u32 %v677, 4294901760
        %679 = vmatpush1.msra.mxu0 %v678
        %v680 = vand.u32 %v386, 4294901760
        %v681 = vsub.f32 %v386, %v680
        %v682 = vand.u32 %v681, 4294901760
        %v683 = vsub.f32 %v681, %v682
        %v684 = vand.u32 %v683, 4294901760
        %685 = vmatprep.subr.mxu0 %v684
        %v686 = vand.u32 %v385, 4294901760
        %v687 = vsub.f32 %v385, %v686
        %v688 = vand.u32 %v687, 4294901760
        %v689 = vsub.f32 %v687, %v688
        %v690 = vand.u32 %v689, 4294901760
        %691 = vmatpush1.msra.mxu0 %v690
        %v692 = vand.u32 %v384, 4294901760
        %v693 = vsub.f32 %v384, %v692
        %v694 = vand.u32 %v693, 4294901760
        %v695 = vsub.f32 %v693, %v694
        %v696 = vand.u32 %v695, 4294901760
        %697 = vmatprep.subr.mxu0 %v696
        %v698 = vand.u32 %v383, 4294901760
        %v699 = vsub.f32 %v383, %v698
        %v700 = vand.u32 %v699, 4294901760
        %v701 = vsub.f32 %v699, %v700
        %v702 = vand.u32 %v701, 4294901760
        %703 = vmatpush1.msra.mxu0 %v702
        %v704 = vand.u32 %v382, 4294901760
        %v705 = vsub.f32 %v382, %v704
        %v706 = vand.u32 %v705, 4294901760
        %v707 = vsub.f32 %v705, %v706
        %v708 = vand.u32 %v707, 4294901760
        %709 = vmatprep.subr.mxu0 %v708
        %v710 = vand.u32 %v381, 4294901760
        %v711 = vsub.f32 %v381, %v710
        %v712 = vand.u32 %v711, 4294901760
        %v713 = vsub.f32 %v711, %v712
        %v714 = vand.u32 %v713, 4294901760
        %715 = vmatpush1.msra.mxu0 %v714
        %v716 = vand.u32 %v380, 4294901760
        %v717 = vsub.f32 %v380, %v716
        %v718 = vand.u32 %v717, 4294901760
        %v719 = vsub.f32 %v717, %v718
        %v720 = vand.u32 %v719, 4294901760
        %721 = vmatprep.subr.mxu0 %v720
        %v722 = vand.u32 %v379, 4294901760
        %v723 = vsub.f32 %v379, %v722
        %v724 = vand.u32 %v723, 4294901760
        %v725 = vsub.f32 %v723, %v724
        %v726 = vand.u32 %v725, 4294901760
        %727 = vmatpush1.msra.mxu0 %v726
        %v728 = vand.u32 %v378, 4294901760
        %v729 = vsub.f32 %v378, %v728
        %v730 = vand.u32 %v729, 4294901760
        %v731 = vsub.f32 %v729, %v730
        %v732 = vand.u32 %v731, 4294901760
        %733 = vmatprep.subr.mxu0 %v732
        %v734 = vand.u32 %v377, 4294901760
        %v735 = vsub.f32 %v377, %v734
        %v736 = vand.u32 %v735, 4294901760
        %v737 = vsub.f32 %v735, %v736
        %v738 = vand.u32 %v737, 4294901760
        %739 = vmatpush1.msra.mxu0 %v738
        %v740 = vand.u32 %v376, 4294901760
        %v741 = vsub.f32 %v376, %v740
        %v742 = vand.u32 %v741, 4294901760
        %v743 = vsub.f32 %v741, %v742
        %v744 = vand.u32 %v743, 4294901760
        %745 = vmatprep.subr.mxu0 %v744
        %v746 = vand.u32 %v375, 4294901760
        %v747 = vsub.f32 %v375, %v746
        %v748 = vand.u32 %v747, 4294901760
        %v749 = vsub.f32 %v747, %v748
        %v750 = vand.u32 %v749, 4294901760
        %751 = vmatpush1.msra.mxu0 %v750
        %v752 = vand.u32 %v374, 4294901760
        %v753 = vsub.f32 %v374, %v752
        %v754 = vand.u32 %v753, 4294901760
        %v755 = vsub.f32 %v753, %v754
        %v756 = vand.u32 %v755, 4294901760
        %757 = vmatprep.subr.mxu0 %v756
        %v758 = vand.u32 %v373, 4294901760
        %v759 = vsub.f32 %v373, %v758
        %v760 = vand.u32 %v759, 4294901760
        %v761 = vsub.f32 %v759, %v760
        %v762 = vand.u32 %v761, 4294901760
        %763 = vmatpush1.msra.mxu0 %v762
        %v764 = vand.u32 %v372, 4294901760
        %v765 = vsub.f32 %v372, %v764
        %v766 = vand.u32 %v765, 4294901760
        %v767 = vsub.f32 %v765, %v766
        %v768 = vand.u32 %v767, 4294901760
        %769 = vmatprep.subr.mxu0 %v768
        %v770 = vand.u32 %v371, 4294901760
        %v771 = vsub.f32 %v371, %v770
        %v772 = vand.u32 %v771, 4294901760
        %v773 = vsub.f32 %v771, %v772
        %v774 = vand.u32 %v773, 4294901760
        %775 = vmatpush1.msra.mxu0 %v774
        %v776 = vand.u32 %v370, 4294901760
        %v777 = vsub.f32 %v370, %v776
        %v778 = vand.u32 %v777, 4294901760
        %v779 = vsub.f32 %v777, %v778
        %v780 = vand.u32 %v779, 4294901760
        %781 = vmatprep.subr.mxu0 %v780
        %v782 = vand.u32 %v369, 4294901760
        %v783 = vsub.f32 %v369, %v782
        %v784 = vand.u32 %v783, 4294901760
        %v785 = vsub.f32 %v783, %v784
        %v786 = vand.u32 %v785, 4294901760
        %787 = vmatpush1.msra.mxu0 %v786
        %v788 = vand.u32 %v368, 4294901760
        %v789 = vsub.f32 %v368, %v788
        %v790 = vand.u32 %v789, 4294901760
        %v791 = vsub.f32 %v789, %v790
        %v792 = vand.u32 %v791, 4294901760
        %793 = vmatprep.subr.mxu0 %v792
        %v794 = vand.u32 %v367, 4294901760
        %v795 = vsub.f32 %v367, %v794
        %v796 = vand.u32 %v795, 4294901760
        %v797 = vsub.f32 %v795, %v796
        %v798 = vand.u32 %v797, 4294901760
        %799 = vmatpush1.msra.mxu0 %v798
        %v800 = vand.u32 %v366, 4294901760
        %v801 = vsub.f32 %v366, %v800
        %v802 = vand.u32 %v801, 4294901760
        %v803 = vsub.f32 %v801, %v802
        %v804 = vand.u32 %v803, 4294901760
        %805 = vmatprep.subr.mxu0 %v804
        %v806 = vand.u32 %v365, 4294901760
        %v807 = vsub.f32 %v365, %v806
        %v808 = vand.u32 %v807, 4294901760
        %v809 = vsub.f32 %v807, %v808
        %v810 = vand.u32 %v809, 4294901760
        %811 = vmatpush1.msra.mxu0 %v810
        %v812 = vand.u32 %v364, 4294901760
        %v813 = vsub.f32 %v364, %v812
        %v814 = vand.u32 %v813, 4294901760
        %v815 = vsub.f32 %v813, %v814
        %v816 = vand.u32 %v815, 4294901760
        %817 = vmatprep.subr.mxu0 %v816
        %v818 = vand.u32 %v363, 4294901760
        %v819 = vsub.f32 %v363, %v818
        %v820 = vand.u32 %v819, 4294901760
        %v821 = vsub.f32 %v819, %v820
        %v822 = vand.u32 %v821, 4294901760
        %823 = vmatpush1.msra.mxu0 %v822
        %v824 = vand.u32 %v426, 4294901760
        %v825 = vsub.f32 %v426, %v824
        %v826 = vand.u32 %v825, 4294901760
        %v827 = vsub.f32 %v825, %v826
        %v828 = vand.u32 %v827, 4294901760
        %829 = vmatprep.subr.mxu0 %v828
        %v830 = vand.u32 %v425, 4294901760
        %v831 = vsub.f32 %v425, %v830
        %v832 = vand.u32 %v831, 4294901760
        %v833 = vsub.f32 %v831, %v832
        %v834 = vand.u32 %v833, 4294901760
        %835 = vmatpush2.msra.mxu0 %v834
        %v836 = vand.u32 %v424, 4294901760
        %v837 = vsub.f32 %v424, %v836
        %v838 = vand.u32 %v837, 4294901760
        %v839 = vsub.f32 %v837, %v838
        %v840 = vand.u32 %v839, 4294901760
        %841 = vmatprep.subr.mxu0 %v840
        %v842 = vand.u32 %v423, 4294901760
        %v843 = vsub.f32 %v423, %v842
        %v844 = vand.u32 %v843, 4294901760
        %v845 = vsub.f32 %v843, %v844
        %v846 = vand.u32 %v845, 4294901760
        %847 = vmatpush2.msra.mxu0 %v846
        %v848 = vand.u32 %v422, 4294901760
        %v849 = vsub.f32 %v422, %v848
        %v850 = vand.u32 %v849, 4294901760
        %v851 = vsub.f32 %v849, %v850
        %v852 = vand.u32 %v851, 4294901760
        %853 = vmatprep.subr.mxu0 %v852
        %v854 = vand.u32 %v421, 4294901760
        %v855 = vsub.f32 %v421, %v854
        %v856 = vand.u32 %v855, 4294901760
        %v857 = vsub.f32 %v855, %v856
        %v858 = vand.u32 %v857, 4294901760
        %859 = vmatpush2.msra.mxu0 %v858
        %v860 = vand.u32 %v420, 4294901760
        %v861 = vsub.f32 %v420, %v860
        %v862 = vand.u32 %v861, 4294901760
        %v863 = vsub.f32 %v861, %v862
        %v864 = vand.u32 %v863, 4294901760
        %865 = vmatprep.subr.mxu0 %v864
        %v866 = vand.u32 %v419, 4294901760
        %v867 = vsub.f32 %v419, %v866
        %v868 = vand.u32 %v867, 4294901760
        %v869 = vsub.f32 %v867, %v868
        %v870 = vand.u32 %v869, 4294901760
        %871 = vmatpush2.msra.mxu0 %v870
        %v872 = vand.u32 %v418, 4294901760
        %v873 = vsub.f32 %v418, %v872
        %v874 = vand.u32 %v873, 4294901760
        %v875 = vsub.f32 %v873, %v874
        %v876 = vand.u32 %v875, 4294901760
        %877 = vmatprep.subr.mxu0 %v876
        %v878 = vand.u32 %v417, 4294901760
        %v879 = vsub.f32 %v417, %v878
        %v880 = vand.u32 %v879, 4294901760
        %v881 = vsub.f32 %v879, %v880
        %v882 = vand.u32 %v881, 4294901760
        %883 = vmatpush2.msra.mxu0 %v882
        %v884 = vand.u32 %v416, 4294901760
        %v885 = vsub.f32 %v416, %v884
        %v886 = vand.u32 %v885, 4294901760
        %v887 = vsub.f32 %v885, %v886
        %v888 = vand.u32 %v887, 4294901760
        %889 = vmatprep.subr.mxu0 %v888
        %v890 = vand.u32 %v415, 4294901760
        %v891 = vsub.f32 %v415, %v890
        %v892 = vand.u32 %v891, 4294901760
        %v893 = vsub.f32 %v891, %v892
        %v894 = vand.u32 %v893, 4294901760
        %895 = vmatpush2.msra.mxu0 %v894
        %v896 = vand.u32 %v414, 4294901760
        %v897 = vsub.f32 %v414, %v896
        %v898 = vand.u32 %v897, 4294901760
        %v899 = vsub.f32 %v897, %v898
        %v900 = vand.u32 %v899, 4294901760
        %901 = vmatprep.subr.mxu0 %v900
        %v902 = vand.u32 %v413, 4294901760
        %v903 = vsub.f32 %v413, %v902
        %v904 = vand.u32 %v903, 4294901760
        %v905 = vsub.f32 %v903, %v904
        %v906 = vand.u32 %v905, 4294901760
        %907 = vmatpush2.msra.mxu0 %v906
        %v908 = vand.u32 %v412, 4294901760
        %v909 = vsub.f32 %v412, %v908
        %v910 = vand.u32 %v909, 4294901760
        %v911 = vsub.f32 %v909, %v910
        %v912 = vand.u32 %v911, 4294901760
        %913 = vmatprep.subr.mxu0 %v912
        %v914 = vand.u32 %v411, 4294901760
        %v915 = vsub.f32 %v411, %v914
        %v916 = vand.u32 %v915, 4294901760
        %v917 = vsub.f32 %v915, %v916
        %v918 = vand.u32 %v917, 4294901760
        %919 = vmatpush2.msra.mxu0 %v918
        %v920 = vand.u32 %v410, 4294901760
        %v921 = vsub.f32 %v410, %v920
        %v922 = vand.u32 %v921, 4294901760
        %v923 = vsub.f32 %v921, %v922
        %v924 = vand.u32 %v923, 4294901760
        %925 = vmatprep.subr.mxu0 %v924
        %v926 = vand.u32 %v409, 4294901760
        %v927 = vsub.f32 %v409, %v926
        %v928 = vand.u32 %v927, 4294901760
        %v929 = vsub.f32 %v927, %v928
        %v930 = vand.u32 %v929, 4294901760
        %931 = vmatpush2.msra.mxu0 %v930
        %v932 = vand.u32 %v408, 4294901760
        %v933 = vsub.f32 %v408, %v932
        %v934 = vand.u32 %v933, 4294901760
        %v935 = vsub.f32 %v933, %v934
        %v936 = vand.u32 %v935, 4294901760
        %937 = vmatprep.subr.mxu0 %v936
        %v938 = vand.u32 %v407, 4294901760
        %v939 = vsub.f32 %v407, %v938
        %v940 = vand.u32 %v939, 4294901760
        %v941 = vsub.f32 %v939, %v940
        %v942 = vand.u32 %v941, 4294901760
        %943 = vmatpush2.msra.mxu0 %v942
        %v944 = vand.u32 %v406, 4294901760
        %v945 = vsub.f32 %v406, %v944
        %v946 = vand.u32 %v945, 4294901760
        %v947 = vsub.f32 %v945, %v946
        %v948 = vand.u32 %v947, 4294901760
        %949 = vmatprep.subr.mxu0 %v948
        %v950 = vand.u32 %v405, 4294901760
        %v951 = vsub.f32 %v405, %v950
        %v952 = vand.u32 %v951, 4294901760
        %v953 = vsub.f32 %v951, %v952
        %v954 = vand.u32 %v953, 4294901760
        %955 = vmatpush2.msra.mxu0 %v954
        %v956 = vand.u32 %v404, 4294901760
        %v957 = vsub.f32 %v404, %v956
        %v958 = vand.u32 %v957, 4294901760
        %v959 = vsub.f32 %v957, %v958
        %v960 = vand.u32 %v959, 4294901760
        %961 = vmatprep.subr.mxu0 %v960
        %v962 = vand.u32 %v403, 4294901760
        %v963 = vsub.f32 %v403, %v962
        %v964 = vand.u32 %v963, 4294901760
        %v965 = vsub.f32 %v963, %v964
        %v966 = vand.u32 %v965, 4294901760
        %967 = vmatpush2.msra.mxu0 %v966
        %v968 = vand.u32 %v402, 4294901760
        %v969 = vsub.f32 %v402, %v968
        %v970 = vand.u32 %v969, 4294901760
        %v971 = vsub.f32 %v969, %v970
        %v972 = vand.u32 %v971, 4294901760
        %973 = vmatprep.subr.mxu0 %v972
        %v974 = vand.u32 %v401, 4294901760
        %v975 = vsub.f32 %v401, %v974
        %v976 = vand.u32 %v975, 4294901760
        %v977 = vsub.f32 %v975, %v976
        %v978 = vand.u32 %v977, 4294901760
        %979 = vmatpush2.msra.mxu0 %v978
        %v980 = vand.u32 %v400, 4294901760
        %v981 = vsub.f32 %v400, %v980
        %v982 = vand.u32 %v981, 4294901760
        %v983 = vsub.f32 %v981, %v982
        %v984 = vand.u32 %v983, 4294901760
        %985 = vmatprep.subr.mxu0 %v984
        %v986 = vand.u32 %v399, 4294901760
        %v987 = vsub.f32 %v399, %v986
        %v988 = vand.u32 %v987, 4294901760
        %v989 = vsub.f32 %v987, %v988
        %v990 = vand.u32 %v989, 4294901760
        %991 = vmatpush2.msra.mxu0 %v990
        %v992 = vand.u32 %v398, 4294901760
        %v993 = vsub.f32 %v398, %v992
        %v994 = vand.u32 %v993, 4294901760
        %v995 = vsub.f32 %v993, %v994
        %v996 = vand.u32 %v995, 4294901760
        %997 = vmatprep.subr.mxu0 %v996
        %v998 = vand.u32 %v397, 4294901760
        %v999 = vsub.f32 %v397, %v998
        %v1000 = vand.u32 %v999, 4294901760
        %v1001 = vsub.f32 %v999, %v1000
        %v1002 = vand.u32 %v1001, 4294901760
        %1003 = vmatpush2.msra.mxu0 %v1002
        %v1004 = vand.u32 %v396, 4294901760
        %v1005 = vsub.f32 %v396, %v1004
        %v1006 = vand.u32 %v1005, 4294901760
        %v1007 = vsub.f32 %v1005, %v1006
        %v1008 = vand.u32 %v1007, 4294901760
        %1009 = vmatprep.subr.mxu0 %v1008
        %v1010 = vand.u32 %v395, 4294901760
        %v1011 = vsub.f32 %v395, %v1010
        %v1012 = vand.u32 %v1011, 4294901760
        %v1013 = vsub.f32 %v1011, %v1012
        %v1014 = vand.u32 %v1013, 4294901760
        %1015 = vmatpush2.msra.mxu0 %v1014
        %v1016 = vand.u32 %v358, 4294901760
        %1017 = vmatprep.mubr.f32.mxu0 %v1016
        %v1018 = vand.u32 %v357, 4294901760
        %1019 = vmatmul.mubr.f32.gmra.mxu0 %v1018
        %v1020 = vpop.f32.mrf.mxu0
        %v1021 = vadd.f32 %v612, %v1020
        %v1022 = vpop.f32.mrf.mxu0
        %v1023 = vadd.f32 %v614, %v1022
        %v1024 = vand.u32 %v361, 4294901760
        %1025 = vmatprep.mubr.f32.mxu0 %v1024
        %v1026 = vand.u32 %v360, 4294901760
        %1027 = vmatmul.mubr.f32.gmra.mxu0 %v1026
        %v1028 = vpop.f32.mrf.mxu0
        %v1029 = vadd.f32 %v628, %v1028
        %v1030 = vpop.f32.mrf.mxu0
        %v1031 = vadd.f32 %v630, %v1030
        %1032 = vdwg.mxu0
        %v1033 = vand.u32 %v394, 4294901760
        %v1034 = vsub.f32 %v394, %v1033
        %1035 = vmatprep.subr.mxu0 %v1034
        %v1036 = vand.u32 %v393, 4294901760
        %v1037 = vsub.f32 %v393, %v1036
        %1038 = vmatpush1.msra.mxu0 %v1037
        %v1039 = vand.u32 %v392, 4294901760
        %v1040 = vsub.f32 %v392, %v1039
        %1041 = vmatprep.subr.mxu0 %v1040
        %v1042 = vand.u32 %v391, 4294901760
        %v1043 = vsub.f32 %v391, %v1042
        %1044 = vmatpush1.msra.mxu0 %v1043
        %v1045 = vand.u32 %v390, 4294901760
        %v1046 = vsub.f32 %v390, %v1045
        %1047 = vmatprep.subr.mxu0 %v1046
        %v1048 = vand.u32 %v389, 4294901760
        %v1049 = vsub.f32 %v389, %v1048
        %1050 = vmatpush1.msra.mxu0 %v1049
        %v1051 = vand.u32 %v388, 4294901760
        %v1052 = vsub.f32 %v388, %v1051
        %1053 = vmatprep.subr.mxu0 %v1052
        %v1054 = vand.u32 %v387, 4294901760
        %v1055 = vsub.f32 %v387, %v1054
        %1056 = vmatpush1.msra.mxu0 %v1055
        %v1057 = vand.u32 %v386, 4294901760
        %v1058 = vsub.f32 %v386, %v1057
        %1059 = vmatprep.subr.mxu0 %v1058
        %v1060 = vand.u32 %v385, 4294901760
        %v1061 = vsub.f32 %v385, %v1060
        %1062 = vmatpush1.msra.mxu0 %v1061
        %v1063 = vand.u32 %v384, 4294901760
        %v1064 = vsub.f32 %v384, %v1063
        %1065 = vmatprep.subr.mxu0 %v1064
        %v1066 = vand.u32 %v383, 4294901760
        %v1067 = vsub.f32 %v383, %v1066
        %1068 = vmatpush1.msra.mxu0 %v1067
        %v1069 = vand.u32 %v382, 4294901760
        %v1070 = vsub.f32 %v382, %v1069
        %1071 = vmatprep.subr.mxu0 %v1070
        %v1072 = vand.u32 %v381, 4294901760
        %v1073 = vsub.f32 %v381, %v1072
        %1074 = vmatpush1.msra.mxu0 %v1073
        %v1075 = vand.u32 %v380, 4294901760
        %v1076 = vsub.f32 %v380, %v1075
        %1077 = vmatprep.subr.mxu0 %v1076
        %v1078 = vand.u32 %v379, 4294901760
        %v1079 = vsub.f32 %v379, %v1078
        %1080 = vmatpush1.msra.mxu0 %v1079
        %v1081 = vand.u32 %v378, 4294901760
        %v1082 = vsub.f32 %v378, %v1081
        %1083 = vmatprep.subr.mxu0 %v1082
        %v1084 = vand.u32 %v377, 4294901760
        %v1085 = vsub.f32 %v377, %v1084
        %1086 = vmatpush1.msra.mxu0 %v1085
        %v1087 = vand.u32 %v376, 4294901760
        %v1088 = vsub.f32 %v376, %v1087
        %1089 = vmatprep.subr.mxu0 %v1088
        %v1090 = vand.u32 %v375, 4294901760
        %v1091 = vsub.f32 %v375, %v1090
        %1092 = vmatpush1.msra.mxu0 %v1091
        %v1093 = vand.u32 %v374, 4294901760
        %v1094 = vsub.f32 %v374, %v1093
        %1095 = vmatprep.subr.mxu0 %v1094
        %v1096 = vand.u32 %v373, 4294901760
        %v1097 = vsub.f32 %v373, %v1096
        %1098 = vmatpush1.msra.mxu0 %v1097
        %v1099 = vand.u32 %v372, 4294901760
        %v1100 = vsub.f32 %v372, %v1099
        %1101 = vmatprep.subr.mxu0 %v1100
        %v1102 = vand.u32 %v371, 4294901760
        %v1103 = vsub.f32 %v371, %v1102
        %1104 = vmatpush1.msra.mxu0 %v1103
        %v1105 = vand.u32 %v370, 4294901760
        %v1106 = vsub.f32 %v370, %v1105
        %1107 = vmatprep.subr.mxu0 %v1106
        %v1108 = vand.u32 %v369, 4294901760
        %v1109 = vsub.f32 %v369, %v1108
        %1110 = vmatpush1.msra.mxu0 %v1109
        %v1111 = vand.u32 %v368, 4294901760
        %v1112 = vsub.f32 %v368, %v1111
        %1113 = vmatprep.subr.mxu0 %v1112
        %v1114 = vand.u32 %v367, 4294901760
        %v1115 = vsub.f32 %v367, %v1114
        %1116 = vmatpush1.msra.mxu0 %v1115
        %v1117 = vand.u32 %v366, 4294901760
        %v1118 = vsub.f32 %v366, %v1117
        %1119 = vmatprep.subr.mxu0 %v1118
        %v1120 = vand.u32 %v365, 4294901760
        %v1121 = vsub.f32 %v365, %v1120
        %1122 = vmatpush1.msra.mxu0 %v1121
        %v1123 = vand.u32 %v364, 4294901760
        %v1124 = vsub.f32 %v364, %v1123
        %1125 = vmatprep.subr.mxu0 %v1124
        %v1126 = vand.u32 %v363, 4294901760
        %v1127 = vsub.f32 %v363, %v1126
        %1128 = vmatpush1.msra.mxu0 %v1127
        %v1129 = vand.u32 %v426, 4294901760
        %v1130 = vsub.f32 %v426, %v1129
        %1131 = vmatprep.subr.mxu0 %v1130
        %v1132 = vand.u32 %v425, 4294901760
        %v1133 = vsub.f32 %v425, %v1132
        %1134 = vmatpush2.msra.mxu0 %v1133
        %v1135 = vand.u32 %v424, 4294901760
        %v1136 = vsub.f32 %v424, %v1135
        %1137 = vmatprep.subr.mxu0 %v1136
        %v1138 = vand.u32 %v423, 4294901760
        %v1139 = vsub.f32 %v423, %v1138
        %1140 = vmatpush2.msra.mxu0 %v1139
        %v1141 = vand.u32 %v422, 4294901760
        %v1142 = vsub.f32 %v422, %v1141
        %1143 = vmatprep.subr.mxu0 %v1142
        %v1144 = vand.u32 %v421, 4294901760
        %v1145 = vsub.f32 %v421, %v1144
        %1146 = vmatpush2.msra.mxu0 %v1145
        %v1147 = vand.u32 %v420, 4294901760
        %v1148 = vsub.f32 %v420, %v1147
        %1149 = vmatprep.subr.mxu0 %v1148
        %v1150 = vand.u32 %v419, 4294901760
        %v1151 = vsub.f32 %v419, %v1150
        %1152 = vmatpush2.msra.mxu0 %v1151
        %v1153 = vand.u32 %v418, 4294901760
        %v1154 = vsub.f32 %v418, %v1153
        %1155 = vmatprep.subr.mxu0 %v1154
        %v1156 = vand.u32 %v417, 4294901760
        %v1157 = vsub.f32 %v417, %v1156
        %1158 = vmatpush2.msra.mxu0 %v1157
        %v1159 = vand.u32 %v416, 4294901760
        %v1160 = vsub.f32 %v416, %v1159
        %1161 = vmatprep.subr.mxu0 %v1160
        %v1162 = vand.u32 %v415, 4294901760
        %v1163 = vsub.f32 %v415, %v1162
        %1164 = vmatpush2.msra.mxu0 %v1163
        %v1165 = vand.u32 %v414, 4294901760
        %v1166 = vsub.f32 %v414, %v1165
        %1167 = vmatprep.subr.mxu0 %v1166
        %v1168 = vand.u32 %v413, 4294901760
        %v1169 = vsub.f32 %v413, %v1168
        %1170 = vmatpush2.msra.mxu0 %v1169
        %v1171 = vand.u32 %v412, 4294901760
        %v1172 = vsub.f32 %v412, %v1171
        %1173 = vmatprep.subr.mxu0 %v1172
        %v1174 = vand.u32 %v411, 4294901760
        %v1175 = vsub.f32 %v411, %v1174
        %1176 = vmatpush2.msra.mxu0 %v1175
        %v1177 = vand.u32 %v410, 4294901760
        %v1178 = vsub.f32 %v410, %v1177
        %1179 = vmatprep.subr.mxu0 %v1178
        %v1180 = vand.u32 %v409, 4294901760
        %v1181 = vsub.f32 %v409, %v1180
        %1182 = vmatpush2.msra.mxu0 %v1181
        %v1183 = vand.u32 %v408, 4294901760
        %v1184 = vsub.f32 %v408, %v1183
        %1185 = vmatprep.subr.mxu0 %v1184
        %v1186 = vand.u32 %v407, 4294901760
        %v1187 = vsub.f32 %v407, %v1186
        %1188 = vmatpush2.msra.mxu0 %v1187
        %v1189 = vand.u32 %v406, 4294901760
        %v1190 = vsub.f32 %v406, %v1189
        %1191 = vmatprep.subr.mxu0 %v1190
        %v1192 = vand.u32 %v405, 4294901760
        %v1193 = vsub.f32 %v405, %v1192
        %1194 = vmatpush2.msra.mxu0 %v1193
        %v1195 = vand.u32 %v404, 4294901760
        %v1196 = vsub.f32 %v404, %v1195
        %1197 = vmatprep.subr.mxu0 %v1196
        %v1198 = vand.u32 %v403, 4294901760
        %v1199 = vsub.f32 %v403, %v1198
        %1200 = vmatpush2.msra.mxu0 %v1199
        %v1201 = vand.u32 %v402, 4294901760
        %v1202 = vsub.f32 %v402, %v1201
        %1203 = vmatprep.subr.mxu0 %v1202
        %v1204 = vand.u32 %v401, 4294901760
        %v1205 = vsub.f32 %v401, %v1204
        %1206 = vmatpush2.msra.mxu0 %v1205
        %v1207 = vand.u32 %v400, 4294901760
        %v1208 = vsub.f32 %v400, %v1207
        %1209 = vmatprep.subr.mxu0 %v1208
        %v1210 = vand.u32 %v399, 4294901760
        %v1211 = vsub.f32 %v399, %v1210
        %1212 = vmatpush2.msra.mxu0 %v1211
        %v1213 = vand.u32 %v398, 4294901760
        %v1214 = vsub.f32 %v398, %v1213
        %1215 = vmatprep.subr.mxu0 %v1214
        %v1216 = vand.u32 %v397, 4294901760
        %v1217 = vsub.f32 %v397, %v1216
        %1218 = vmatpush2.msra.mxu0 %v1217
        %v1219 = vand.u32 %v396, 4294901760
        %v1220 = vsub.f32 %v396, %v1219
        %1221 = vmatprep.subr.mxu0 %v1220
        %v1222 = vand.u32 %v395, 4294901760
        %v1223 = vsub.f32 %v395, %v1222
        %1224 = vmatpush2.msra.mxu0 %v1223
        %v1225 = vand.u32 %v358, 4294901760
        %v1226 = vsub.f32 %v358, %v1225
        %1227 = vmatprep.mubr.f32.mxu0 %v1226
        %v1228 = vand.u32 %v357, 4294901760
        %v1229 = vsub.f32 %v357, %v1228
        %1230 = vmatmul.mubr.f32.gmra.mxu0 %v1229
        %v1231 = vpop.f32.mrf.mxu0
        %v1232 = vadd.f32 %v1021, %v1231
        %v1233 = vpop.f32.mrf.mxu0
        %v1234 = vadd.f32 %v1023, %v1233
        %v1235 = vand.u32 %v361, 4294901760
        %v1236 = vsub.f32 %v361, %v1235
        %1237 = vmatprep.mubr.f32.mxu0 %v1236
        %v1238 = vand.u32 %v360, 4294901760
        %v1239 = vsub.f32 %v360, %v1238
        %1240 = vmatmul.mubr.f32.gmra.mxu0 %v1239
        %v1241 = vpop.f32.mrf.mxu0
        %v1242 = vadd.f32 %v1029, %v1241
        %v1243 = vpop.f32.mrf.mxu0
        %v1244 = vadd.f32 %v1031, %v1243
        %1245 = vdwg.mxu0
        %v1246 = vand.u32 %v394, 4294901760
        %1247 = vmatprep.subr.mxu0 %v1246
        %v1248 = vand.u32 %v393, 4294901760
        %1249 = vmatpush1.msra.mxu0 %v1248
        %v1250 = vand.u32 %v392, 4294901760
        %1251 = vmatprep.subr.mxu0 %v1250
        %v1252 = vand.u32 %v391, 4294901760
        %1253 = vmatpush1.msra.mxu0 %v1252
        %v1254 = vand.u32 %v390, 4294901760
        %1255 = vmatprep.subr.mxu0 %v1254
        %v1256 = vand.u32 %v389, 4294901760
        %1257 = vmatpush1.msra.mxu0 %v1256
        %v1258 = vand.u32 %v388, 4294901760
        %1259 = vmatprep.subr.mxu0 %v1258
        %v1260 = vand.u32 %v387, 4294901760
        %1261 = vmatpush1.msra.mxu0 %v1260
        %v1262 = vand.u32 %v386, 4294901760
        %1263 = vmatprep.subr.mxu0 %v1262
        %v1264 = vand.u32 %v385, 4294901760
        %1265 = vmatpush1.msra.mxu0 %v1264
        %v1266 = vand.u32 %v384, 4294901760
        %1267 = vmatprep.subr.mxu0 %v1266
        %v1268 = vand.u32 %v383, 4294901760
        %1269 = vmatpush1.msra.mxu0 %v1268
        %v1270 = vand.u32 %v382, 4294901760
        %1271 = vmatprep.subr.mxu0 %v1270
        %v1272 = vand.u32 %v381, 4294901760
        %1273 = vmatpush1.msra.mxu0 %v1272
        %v1274 = vand.u32 %v380, 4294901760
        %1275 = vmatprep.subr.mxu0 %v1274
        %v1276 = vand.u32 %v379, 4294901760
        %1277 = vmatpush1.msra.mxu0 %v1276
        %v1278 = vand.u32 %v378, 4294901760
        %1279 = vmatprep.subr.mxu0 %v1278
        %v1280 = vand.u32 %v377, 4294901760
        %1281 = vmatpush1.msra.mxu0 %v1280
        %v1282 = vand.u32 %v376, 4294901760
        %1283 = vmatprep.subr.mxu0 %v1282
        %v1284 = vand.u32 %v375, 4294901760
        %1285 = vmatpush1.msra.mxu0 %v1284
        %v1286 = vand.u32 %v374, 4294901760
        %1287 = vmatprep.subr.mxu0 %v1286
        %v1288 = vand.u32 %v373, 4294901760
        %1289 = vmatpush1.msra.mxu0 %v1288
        %v1290 = vand.u32 %v372, 4294901760
        %1291 = vmatprep.subr.mxu0 %v1290
        %v1292 = vand.u32 %v371, 4294901760
        %1293 = vmatpush1.msra.mxu0 %v1292
        %v1294 = vand.u32 %v370, 4294901760
        %1295 = vmatprep.subr.mxu0 %v1294
        %v1296 = vand.u32 %v369, 4294901760
        %1297 = vmatpush1.msra.mxu0 %v1296
        %v1298 = vand.u32 %v368, 4294901760
        %1299 = vmatprep.subr.mxu0 %v1298
        %v1300 = vand.u32 %v367, 4294901760
        %1301 = vmatpush1.msra.mxu0 %v1300
        %v1302 = vand.u32 %v366, 4294901760
        %1303 = vmatprep.subr.mxu0 %v1302
        %v1304 = vand.u32 %v365, 4294901760
        %1305 = vmatpush1.msra.mxu0 %v1304
        %v1306 = vand.u32 %v364, 4294901760
        %1307 = vmatprep.subr.mxu0 %v1306
        %v1308 = vand.u32 %v363, 4294901760
        %1309 = vmatpush1.msra.mxu0 %v1308
        %v1310 = vand.u32 %v426, 4294901760
        %1311 = vmatprep.subr.mxu0 %v1310
        %v1312 = vand.u32 %v425, 4294901760
        %1313 = vmatpush2.msra.mxu0 %v1312
        %v1314 = vand.u32 %v424, 4294901760
        %1315 = vmatprep.subr.mxu0 %v1314
        %v1316 = vand.u32 %v423, 4294901760
        %1317 = vmatpush2.msra.mxu0 %v1316
        %v1318 = vand.u32 %v422, 4294901760
        %1319 = vmatprep.subr.mxu0 %v1318
        %v1320 = vand.u32 %v421, 4294901760
        %1321 = vmatpush2.msra.mxu0 %v1320
        %v1322 = vand.u32 %v420, 4294901760
        %1323 = vmatprep.subr.mxu0 %v1322
        %v1324 = vand.u32 %v419, 4294901760
        %1325 = vmatpush2.msra.mxu0 %v1324
        %v1326 = vand.u32 %v418, 4294901760
        %1327 = vmatprep.subr.mxu0 %v1326
        %v1328 = vand.u32 %v417, 4294901760
        %1329 = vmatpush2.msra.mxu0 %v1328
        %v1330 = vand.u32 %v416, 4294901760
        %1331 = vmatprep.subr.mxu0 %v1330
        %v1332 = vand.u32 %v415, 4294901760
        %1333 = vmatpush2.msra.mxu0 %v1332
        %v1334 = vand.u32 %v414, 4294901760
        %1335 = vmatprep.subr.mxu0 %v1334
        %v1336 = vand.u32 %v413, 4294901760
        %1337 = vmatpush2.msra.mxu0 %v1336
        %v1338 = vand.u32 %v412, 4294901760
        %1339 = vmatprep.subr.mxu0 %v1338
        %v1340 = vand.u32 %v411, 4294901760
        %1341 = vmatpush2.msra.mxu0 %v1340
        %v1342 = vand.u32 %v410, 4294901760
        %1343 = vmatprep.subr.mxu0 %v1342
        %v1344 = vand.u32 %v409, 4294901760
        %1345 = vmatpush2.msra.mxu0 %v1344
        %v1346 = vand.u32 %v408, 4294901760
        %1347 = vmatprep.subr.mxu0 %v1346
        %v1348 = vand.u32 %v407, 4294901760
        %1349 = vmatpush2.msra.mxu0 %v1348
        %v1350 = vand.u32 %v406, 4294901760
        %1351 = vmatprep.subr.mxu0 %v1350
        %v1352 = vand.u32 %v405, 4294901760
        %1353 = vmatpush2.msra.mxu0 %v1352
        %v1354 = vand.u32 %v404, 4294901760
        %1355 = vmatprep.subr.mxu0 %v1354
        %v1356 = vand.u32 %v403, 4294901760
        %1357 = vmatpush2.msra.mxu0 %v1356
        %v1358 = vand.u32 %v402, 4294901760
        %1359 = vmatprep.subr.mxu0 %v1358
        %v1360 = vand.u32 %v401, 4294901760
        %1361 = vmatpush2.msra.mxu0 %v1360
        %v1362 = vand.u32 %v400, 4294901760
        %1363 = vmatprep.subr.mxu0 %v1362
        %v1364 = vand.u32 %v399, 4294901760
        %1365 = vmatpush2.msra.mxu0 %v1364
        %v1366 = vand.u32 %v398, 4294901760
        %1367 = vmatprep.subr.mxu0 %v1366
        %v1368 = vand.u32 %v397, 4294901760
        %1369 = vmatpush2.msra.mxu0 %v1368
        %v1370 = vand.u32 %v396, 4294901760
        %1371 = vmatprep.subr.mxu0 %v1370
        %v1372 = vand.u32 %v395, 4294901760
        %1373 = vmatpush2.msra.mxu0 %v1372
        %v1374 = vand.u32 %v358, 4294901760
        %v1375 = vsub.f32 %v358, %v1374
        %v1376 = vand.u32 %v1375, 4294901760
        %1377 = vmatprep.mubr.f32.mxu0 %v1376
        %v1378 = vand.u32 %v357, 4294901760
        %v1379 = vsub.f32 %v357, %v1378
        %v1380 = vand.u32 %v1379, 4294901760
        %1381 = vmatmul.mubr.f32.gmra.mxu0 %v1380
        %v1382 = vpop.f32.mrf.mxu0
        %v1383 = vadd.f32 %v1232, %v1382
        %v1384 = vpop.f32.mrf.mxu0
        %v1385 = vadd.f32 %v1234, %v1384
        %v1386 = vand.u32 %v361, 4294901760
        %v1387 = vsub.f32 %v361, %v1386
        %v1388 = vand.u32 %v1387, 4294901760
        %1389 = vmatprep.mubr.f32.mxu0 %v1388
        %v1390 = vand.u32 %v360, 4294901760
        %v1391 = vsub.f32 %v360, %v1390
        %v1392 = vand.u32 %v1391, 4294901760
        %1393 = vmatmul.mubr.f32.gmra.mxu0 %v1392
        %v1394 = vpop.f32.mrf.mxu0
        %v1395 = vadd.f32 %v1242, %v1394
        %v1396 = vpop.f32.mrf.mxu0
        %v1397 = vadd.f32 %v1244, %v1396
        %1398 = vdwg.mxu0
        %v1399 = vand.u32 %v394, 4294901760
        %v1400 = vsub.f32 %v394, %v1399
        %v1401 = vand.u32 %v1400, 4294901760
        %1402 = vmatprep.subr.mxu0 %v1401
        %v1403 = vand.u32 %v393, 4294901760
        %v1404 = vsub.f32 %v393, %v1403
        %v1405 = vand.u32 %v1404, 4294901760
        %1406 = vmatpush1.msra.mxu0 %v1405
        %v1407 = vand.u32 %v392, 4294901760
        %v1408 = vsub.f32 %v392, %v1407
        %v1409 = vand.u32 %v1408, 4294901760
        %1410 = vmatprep.subr.mxu0 %v1409
        %v1411 = vand.u32 %v391, 4294901760
        %v1412 = vsub.f32 %v391, %v1411
        %v1413 = vand.u32 %v1412, 4294901760
        %1414 = vmatpush1.msra.mxu0 %v1413
        %v1415 = vand.u32 %v390, 4294901760
        %v1416 = vsub.f32 %v390, %v1415
        %v1417 = vand.u32 %v1416, 4294901760
        %1418 = vmatprep.subr.mxu0 %v1417
        %v1419 = vand.u32 %v389, 4294901760
        %v1420 = vsub.f32 %v389, %v1419
        %v1421 = vand.u32 %v1420, 4294901760
        %1422 = vmatpush1.msra.mxu0 %v1421
        %v1423 = vand.u32 %v388, 4294901760
        %v1424 = vsub.f32 %v388, %v1423
        %v1425 = vand.u32 %v1424, 4294901760
        %1426 = vmatprep.subr.mxu0 %v1425
        %v1427 = vand.u32 %v387, 4294901760
        %v1428 = vsub.f32 %v387, %v1427
        %v1429 = vand.u32 %v1428, 4294901760
        %1430 = vmatpush1.msra.mxu0 %v1429
        %v1431 = vand.u32 %v386, 4294901760
        %v1432 = vsub.f32 %v386, %v1431
        %v1433 = vand.u32 %v1432, 4294901760
        %1434 = vmatprep.subr.mxu0 %v1433
        %v1435 = vand.u32 %v385, 4294901760
        %v1436 = vsub.f32 %v385, %v1435
        %v1437 = vand.u32 %v1436, 4294901760
        %1438 = vmatpush1.msra.mxu0 %v1437
        %v1439 = vand.u32 %v384, 4294901760
        %v1440 = vsub.f32 %v384, %v1439
        %v1441 = vand.u32 %v1440, 4294901760
        %1442 = vmatprep.subr.mxu0 %v1441
        %v1443 = vand.u32 %v383, 4294901760
        %v1444 = vsub.f32 %v383, %v1443
        %v1445 = vand.u32 %v1444, 4294901760
        %1446 = vmatpush1.msra.mxu0 %v1445
        %v1447 = vand.u32 %v382, 4294901760
        %v1448 = vsub.f32 %v382, %v1447
        %v1449 = vand.u32 %v1448, 4294901760
        %1450 = vmatprep.subr.mxu0 %v1449
        %v1451 = vand.u32 %v381, 4294901760
        %v1452 = vsub.f32 %v381, %v1451
        %v1453 = vand.u32 %v1452, 4294901760
        %1454 = vmatpush1.msra.mxu0 %v1453
        %v1455 = vand.u32 %v380, 4294901760
        %v1456 = vsub.f32 %v380, %v1455
        %v1457 = vand.u32 %v1456, 4294901760
        %1458 = vmatprep.subr.mxu0 %v1457
        %v1459 = vand.u32 %v379, 4294901760
        %v1460 = vsub.f32 %v379, %v1459
        %v1461 = vand.u32 %v1460, 4294901760
        %1462 = vmatpush1.msra.mxu0 %v1461
        %v1463 = vand.u32 %v378, 4294901760
        %v1464 = vsub.f32 %v378, %v1463
        %v1465 = vand.u32 %v1464, 4294901760
        %1466 = vmatprep.subr.mxu0 %v1465
        %v1467 = vand.u32 %v377, 4294901760
        %v1468 = vsub.f32 %v377, %v1467
        %v1469 = vand.u32 %v1468, 4294901760
        %1470 = vmatpush1.msra.mxu0 %v1469
        %v1471 = vand.u32 %v376, 4294901760
        %v1472 = vsub.f32 %v376, %v1471
        %v1473 = vand.u32 %v1472, 4294901760
        %1474 = vmatprep.subr.mxu0 %v1473
        %v1475 = vand.u32 %v375, 4294901760
        %v1476 = vsub.f32 %v375, %v1475
        %v1477 = vand.u32 %v1476, 4294901760
        %1478 = vmatpush1.msra.mxu0 %v1477
        %v1479 = vand.u32 %v374, 4294901760
        %v1480 = vsub.f32 %v374, %v1479
        %v1481 = vand.u32 %v1480, 4294901760
        %1482 = vmatprep.subr.mxu0 %v1481
        %v1483 = vand.u32 %v373, 4294901760
        %v1484 = vsub.f32 %v373, %v1483
        %v1485 = vand.u32 %v1484, 4294901760
        %1486 = vmatpush1.msra.mxu0 %v1485
        %v1487 = vand.u32 %v372, 4294901760
        %v1488 = vsub.f32 %v372, %v1487
        %v1489 = vand.u32 %v1488, 4294901760
        %1490 = vmatprep.subr.mxu0 %v1489
        %v1491 = vand.u32 %v371, 4294901760
        %v1492 = vsub.f32 %v371, %v1491
        %v1493 = vand.u32 %v1492, 4294901760
        %1494 = vmatpush1.msra.mxu0 %v1493
        %v1495 = vand.u32 %v370, 4294901760
        %v1496 = vsub.f32 %v370, %v1495
        %v1497 = vand.u32 %v1496, 4294901760
        %1498 = vmatprep.subr.mxu0 %v1497
        %v1499 = vand.u32 %v369, 4294901760
        %v1500 = vsub.f32 %v369, %v1499
        %v1501 = vand.u32 %v1500, 4294901760
        %1502 = vmatpush1.msra.mxu0 %v1501
        %v1503 = vand.u32 %v368, 4294901760
        %v1504 = vsub.f32 %v368, %v1503
        %v1505 = vand.u32 %v1504, 4294901760
        %1506 = vmatprep.subr.mxu0 %v1505
        %v1507 = vand.u32 %v367, 4294901760
        %v1508 = vsub.f32 %v367, %v1507
        %v1509 = vand.u32 %v1508, 4294901760
        %1510 = vmatpush1.msra.mxu0 %v1509
        %v1511 = vand.u32 %v366, 4294901760
        %v1512 = vsub.f32 %v366, %v1511
        %v1513 = vand.u32 %v1512, 4294901760
        %1514 = vmatprep.subr.mxu0 %v1513
        %v1515 = vand.u32 %v365, 4294901760
        %v1516 = vsub.f32 %v365, %v1515
        %v1517 = vand.u32 %v1516, 4294901760
        %1518 = vmatpush1.msra.mxu0 %v1517
        %v1519 = vand.u32 %v364, 4294901760
        %v1520 = vsub.f32 %v364, %v1519
        %v1521 = vand.u32 %v1520, 4294901760
        %1522 = vmatprep.subr.mxu0 %v1521
        %v1523 = vand.u32 %v363, 4294901760
        %v1524 = vsub.f32 %v363, %v1523
        %v1525 = vand.u32 %v1524, 4294901760
        %1526 = vmatpush1.msra.mxu0 %v1525
        %v1527 = vand.u32 %v426, 4294901760
        %v1528 = vsub.f32 %v426, %v1527
        %v1529 = vand.u32 %v1528, 4294901760
        %1530 = vmatprep.subr.mxu0 %v1529
        %v1531 = vand.u32 %v425, 4294901760
        %v1532 = vsub.f32 %v425, %v1531
        %v1533 = vand.u32 %v1532, 4294901760
        %1534 = vmatpush2.msra.mxu0 %v1533
        %v1535 = vand.u32 %v424, 4294901760
        %v1536 = vsub.f32 %v424, %v1535
        %v1537 = vand.u32 %v1536, 4294901760
        %1538 = vmatprep.subr.mxu0 %v1537
        %v1539 = vand.u32 %v423, 4294901760
        %v1540 = vsub.f32 %v423, %v1539
        %v1541 = vand.u32 %v1540, 4294901760
        %1542 = vmatpush2.msra.mxu0 %v1541
        %v1543 = vand.u32 %v422, 4294901760
        %v1544 = vsub.f32 %v422, %v1543
        %v1545 = vand.u32 %v1544, 4294901760
        %1546 = vmatprep.subr.mxu0 %v1545
        %v1547 = vand.u32 %v421, 4294901760
        %v1548 = vsub.f32 %v421, %v1547
        %v1549 = vand.u32 %v1548, 4294901760
        %1550 = vmatpush2.msra.mxu0 %v1549
        %v1551 = vand.u32 %v420, 4294901760
        %v1552 = vsub.f32 %v420, %v1551
        %v1553 = vand.u32 %v1552, 4294901760
        %1554 = vmatprep.subr.mxu0 %v1553
        %v1555 = vand.u32 %v419, 4294901760
        %v1556 = vsub.f32 %v419, %v1555
        %v1557 = vand.u32 %v1556, 4294901760
        %1558 = vmatpush2.msra.mxu0 %v1557
        %v1559 = vand.u32 %v418, 4294901760
        %v1560 = vsub.f32 %v418, %v1559
        %v1561 = vand.u32 %v1560, 4294901760
        %1562 = vmatprep.subr.mxu0 %v1561
        %v1563 = vand.u32 %v417, 4294901760
        %v1564 = vsub.f32 %v417, %v1563
        %v1565 = vand.u32 %v1564, 4294901760
        %1566 = vmatpush2.msra.mxu0 %v1565
        %v1567 = vand.u32 %v416, 4294901760
        %v1568 = vsub.f32 %v416, %v1567
        %v1569 = vand.u32 %v1568, 4294901760
        %1570 = vmatprep.subr.mxu0 %v1569
        %v1571 = vand.u32 %v415, 4294901760
        %v1572 = vsub.f32 %v415, %v1571
        %v1573 = vand.u32 %v1572, 4294901760
        %1574 = vmatpush2.msra.mxu0 %v1573
        %v1575 = vand.u32 %v414, 4294901760
        %v1576 = vsub.f32 %v414, %v1575
        %v1577 = vand.u32 %v1576, 4294901760
        %1578 = vmatprep.subr.mxu0 %v1577
        %v1579 = vand.u32 %v413, 4294901760
        %v1580 = vsub.f32 %v413, %v1579
        %v1581 = vand.u32 %v1580, 4294901760
        %1582 = vmatpush2.msra.mxu0 %v1581
        %v1583 = vand.u32 %v412, 4294901760
        %v1584 = vsub.f32 %v412, %v1583
        %v1585 = vand.u32 %v1584, 4294901760
        %1586 = vmatprep.subr.mxu0 %v1585
        %v1587 = vand.u32 %v411, 4294901760
        %v1588 = vsub.f32 %v411, %v1587
        %v1589 = vand.u32 %v1588, 4294901760
        %1590 = vmatpush2.msra.mxu0 %v1589
        %v1591 = vand.u32 %v410, 4294901760
        %v1592 = vsub.f32 %v410, %v1591
        %v1593 = vand.u32 %v1592, 4294901760
        %1594 = vmatprep.subr.mxu0 %v1593
        %v1595 = vand.u32 %v409, 4294901760
        %v1596 = vsub.f32 %v409, %v1595
        %v1597 = vand.u32 %v1596, 4294901760
        %1598 = vmatpush2.msra.mxu0 %v1597
        %v1599 = vand.u32 %v408, 4294901760
        %v1600 = vsub.f32 %v408, %v1599
        %v1601 = vand.u32 %v1600, 4294901760
        %1602 = vmatprep.subr.mxu0 %v1601
        %v1603 = vand.u32 %v407, 4294901760
        %v1604 = vsub.f32 %v407, %v1603
        %v1605 = vand.u32 %v1604, 4294901760
        %1606 = vmatpush2.msra.mxu0 %v1605
        %v1607 = vand.u32 %v406, 4294901760
        %v1608 = vsub.f32 %v406, %v1607
        %v1609 = vand.u32 %v1608, 4294901760
        %1610 = vmatprep.subr.mxu0 %v1609
        %v1611 = vand.u32 %v405, 4294901760
        %v1612 = vsub.f32 %v405, %v1611
        %v1613 = vand.u32 %v1612, 4294901760
        %1614 = vmatpush2.msra.mxu0 %v1613
        %v1615 = vand.u32 %v404, 4294901760
        %v1616 = vsub.f32 %v404, %v1615
        %v1617 = vand.u32 %v1616, 4294901760
        %1618 = vmatprep.subr.mxu0 %v1617
        %v1619 = vand.u32 %v403, 4294901760
        %v1620 = vsub.f32 %v403, %v1619
        %v1621 = vand.u32 %v1620, 4294901760
        %1622 = vmatpush2.msra.mxu0 %v1621
        %v1623 = vand.u32 %v402, 4294901760
        %v1624 = vsub.f32 %v402, %v1623
        %v1625 = vand.u32 %v1624, 4294901760
        %1626 = vmatprep.subr.mxu0 %v1625
        %v1627 = vand.u32 %v401, 4294901760
        %v1628 = vsub.f32 %v401, %v1627
        %v1629 = vand.u32 %v1628, 4294901760
        %1630 = vmatpush2.msra.mxu0 %v1629
        %v1631 = vand.u32 %v400, 4294901760
        %v1632 = vsub.f32 %v400, %v1631
        %v1633 = vand.u32 %v1632, 4294901760
        %1634 = vmatprep.subr.mxu0 %v1633
        %v1635 = vand.u32 %v399, 4294901760
        %v1636 = vsub.f32 %v399, %v1635
        %v1637 = vand.u32 %v1636, 4294901760
        %1638 = vmatpush2.msra.mxu0 %v1637
        %v1639 = vand.u32 %v398, 4294901760
        %v1640 = vsub.f32 %v398, %v1639
        %v1641 = vand.u32 %v1640, 4294901760
        %1642 = vmatprep.subr.mxu0 %v1641
        %v1643 = vand.u32 %v397, 4294901760
        %v1644 = vsub.f32 %v397, %v1643
        %v1645 = vand.u32 %v1644, 4294901760
        %1646 = vmatpush2.msra.mxu0 %v1645
        %v1647 = vand.u32 %v396, 4294901760
        %v1648 = vsub.f32 %v396, %v1647
        %v1649 = vand.u32 %v1648, 4294901760
        %1650 = vmatprep.subr.mxu0 %v1649
        %v1651 = vand.u32 %v395, 4294901760
        %v1652 = vsub.f32 %v395, %v1651
        %v1653 = vand.u32 %v1652, 4294901760
        %1654 = vmatpush2.msra.mxu0 %v1653
        %v1655 = vand.u32 %v358, 4294901760
        %1656 = vmatprep.mubr.f32.mxu0 %v1655
        %v1657 = vand.u32 %v357, 4294901760
        %1658 = vmatmul.mubr.f32.gmra.mxu0 %v1657
        %v1659 = vpop.f32.mrf.mxu0
        %v1660 = vadd.f32 %v1383, %v1659
        %v1661 = vpop.f32.mrf.mxu0
        %v1662 = vadd.f32 %v1385, %v1661
        %v1663 = vand.u32 %v361, 4294901760
        %1664 = vmatprep.mubr.f32.mxu0 %v1663
        %v1665 = vand.u32 %v360, 4294901760
        %1666 = vmatmul.mubr.f32.gmra.mxu0 %v1665
        %v1667 = vpop.f32.mrf.mxu0
        %v1668 = vadd.f32 %v1395, %v1667
        %v1669 = vpop.f32.mrf.mxu0
        %v1670 = vadd.f32 %v1397, %v1669
        %1671 = vdwg.mxu0
        %v1672 = vand.u32 %v394, 4294901760
        %1673 = vmatprep.subr.mxu0 %v1672
        %v1674 = vand.u32 %v393, 4294901760
        %1675 = vmatpush1.msra.mxu0 %v1674
        %v1676 = vand.u32 %v392, 4294901760
        %1677 = vmatprep.subr.mxu0 %v1676
        %v1678 = vand.u32 %v391, 4294901760
        %1679 = vmatpush1.msra.mxu0 %v1678
        %v1680 = vand.u32 %v390, 4294901760
        %1681 = vmatprep.subr.mxu0 %v1680
        %v1682 = vand.u32 %v389, 4294901760
        %1683 = vmatpush1.msra.mxu0 %v1682
        %v1684 = vand.u32 %v388, 4294901760
        %1685 = vmatprep.subr.mxu0 %v1684
        %v1686 = vand.u32 %v387, 4294901760
        %1687 = vmatpush1.msra.mxu0 %v1686
        %v1688 = vand.u32 %v386, 4294901760
        %1689 = vmatprep.subr.mxu0 %v1688
        %v1690 = vand.u32 %v385, 4294901760
        %1691 = vmatpush1.msra.mxu0 %v1690
        %v1692 = vand.u32 %v384, 4294901760
        %1693 = vmatprep.subr.mxu0 %v1692
        %v1694 = vand.u32 %v383, 4294901760
        %1695 = vmatpush1.msra.mxu0 %v1694
        %v1696 = vand.u32 %v382, 4294901760
        %1697 = vmatprep.subr.mxu0 %v1696
        %v1698 = vand.u32 %v381, 4294901760
        %1699 = vmatpush1.msra.mxu0 %v1698
        %v1700 = vand.u32 %v380, 4294901760
        %1701 = vmatprep.subr.mxu0 %v1700
        %v1702 = vand.u32 %v379, 4294901760
        %1703 = vmatpush1.msra.mxu0 %v1702
        %v1704 = vand.u32 %v378, 4294901760
        %1705 = vmatprep.subr.mxu0 %v1704
        %v1706 = vand.u32 %v377, 4294901760
        %1707 = vmatpush1.msra.mxu0 %v1706
        %v1708 = vand.u32 %v376, 4294901760
        %1709 = vmatprep.subr.mxu0 %v1708
        %v1710 = vand.u32 %v375, 4294901760
        %1711 = vmatpush1.msra.mxu0 %v1710
        %v1712 = vand.u32 %v374, 4294901760
        %1713 = vmatprep.subr.mxu0 %v1712
        %v1714 = vand.u32 %v373, 4294901760
        %1715 = vmatpush1.msra.mxu0 %v1714
        %v1716 = vand.u32 %v372, 4294901760
        %1717 = vmatprep.subr.mxu0 %v1716
        %v1718 = vand.u32 %v371, 4294901760
        %1719 = vmatpush1.msra.mxu0 %v1718
        %v1720 = vand.u32 %v370, 4294901760
        %1721 = vmatprep.subr.mxu0 %v1720
        %v1722 = vand.u32 %v369, 4294901760
        %1723 = vmatpush1.msra.mxu0 %v1722
        %v1724 = vand.u32 %v368, 4294901760
        %1725 = vmatprep.subr.mxu0 %v1724
        %v1726 = vand.u32 %v367, 4294901760
        %1727 = vmatpush1.msra.mxu0 %v1726
        %v1728 = vand.u32 %v366, 4294901760
        %1729 = vmatprep.subr.mxu0 %v1728
        %v1730 = vand.u32 %v365, 4294901760
        %1731 = vmatpush1.msra.mxu0 %v1730
        %v1732 = vand.u32 %v364, 4294901760
        %1733 = vmatprep.subr.mxu0 %v1732
        %v1734 = vand.u32 %v363, 4294901760
        %1735 = vmatpush1.msra.mxu0 %v1734
        %v1736 = vand.u32 %v426, 4294901760
        %1737 = vmatprep.subr.mxu0 %v1736
        %v1738 = vand.u32 %v425, 4294901760
        %1739 = vmatpush2.msra.mxu0 %v1738
        %v1740 = vand.u32 %v424, 4294901760
        %1741 = vmatprep.subr.mxu0 %v1740
        %v1742 = vand.u32 %v423, 4294901760
        %1743 = vmatpush2.msra.mxu0 %v1742
        %v1744 = vand.u32 %v422, 4294901760
        %1745 = vmatprep.subr.mxu0 %v1744
        %v1746 = vand.u32 %v421, 4294901760
        %1747 = vmatpush2.msra.mxu0 %v1746
        %v1748 = vand.u32 %v420, 4294901760
        %1749 = vmatprep.subr.mxu0 %v1748
        %v1750 = vand.u32 %v419, 4294901760
        %1751 = vmatpush2.msra.mxu0 %v1750
        %v1752 = vand.u32 %v418, 4294901760
        %1753 = vmatprep.subr.mxu0 %v1752
        %v1754 = vand.u32 %v417, 4294901760
        %1755 = vmatpush2.msra.mxu0 %v1754
        %v1756 = vand.u32 %v416, 4294901760
        %1757 = vmatprep.subr.mxu0 %v1756
        %v1758 = vand.u32 %v415, 4294901760
        %1759 = vmatpush2.msra.mxu0 %v1758
        %v1760 = vand.u32 %v414, 4294901760
        %1761 = vmatprep.subr.mxu0 %v1760
        %v1762 = vand.u32 %v413, 4294901760
        %1763 = vmatpush2.msra.mxu0 %v1762
        %v1764 = vand.u32 %v412, 4294901760
        %1765 = vmatprep.subr.mxu0 %v1764
        %v1766 = vand.u32 %v411, 4294901760
        %1767 = vmatpush2.msra.mxu0 %v1766
        %v1768 = vand.u32 %v410, 4294901760
        %1769 = vmatprep.subr.mxu0 %v1768
        %v1770 = vand.u32 %v409, 4294901760
        %1771 = vmatpush2.msra.mxu0 %v1770
        %v1772 = vand.u32 %v408, 4294901760
        %1773 = vmatprep.subr.mxu0 %v1772
        %v1774 = vand.u32 %v407, 4294901760
        %1775 = vmatpush2.msra.mxu0 %v1774
        %v1776 = vand.u32 %v406, 4294901760
        %1777 = vmatprep.subr.mxu0 %v1776
        %v1778 = vand.u32 %v405, 4294901760
        %1779 = vmatpush2.msra.mxu0 %v1778
        %v1780 = vand.u32 %v404, 4294901760
        %1781 = vmatprep.subr.mxu0 %v1780
        %v1782 = vand.u32 %v403, 4294901760
        %1783 = vmatpush2.msra.mxu0 %v1782
        %v1784 = vand.u32 %v402, 4294901760
        %1785 = vmatprep.subr.mxu0 %v1784
        %v1786 = vand.u32 %v401, 4294901760
        %1787 = vmatpush2.msra.mxu0 %v1786
        %v1788 = vand.u32 %v400, 4294901760
        %1789 = vmatprep.subr.mxu0 %v1788
        %v1790 = vand.u32 %v399, 4294901760
        %1791 = vmatpush2.msra.mxu0 %v1790
        %v1792 = vand.u32 %v398, 4294901760
        %1793 = vmatprep.subr.mxu0 %v1792
        %v1794 = vand.u32 %v397, 4294901760
        %1795 = vmatpush2.msra.mxu0 %v1794
        %v1796 = vand.u32 %v396, 4294901760
        %1797 = vmatprep.subr.mxu0 %v1796
        %v1798 = vand.u32 %v395, 4294901760
        %1799 = vmatpush2.msra.mxu0 %v1798
        %v1800 = vand.u32 %v358, 4294901760
        %1801 = vmatprep.mubr.f32.mxu0 %v1800
        %v1802 = vand.u32 %v357, 4294901760
        %1803 = vmatmul.mubr.f32.gmra.mxu0 %v1802
        %v1804 = vpop.f32.mrf.mxu0
        %v1805 = vadd.f32 %v1660, %v1804
        %v1806 = vpop.f32.mrf.mxu0
        %v1807 = vadd.f32 %v1662, %v1806
        %v1808 = vand.u32 %v361, 4294901760
        %1809 = vmatprep.mubr.f32.mxu0 %v1808
        %v1810 = vand.u32 %v360, 4294901760
        %1811 = vmatmul.mubr.f32.gmra.mxu0 %v1810
        %v1812 = vpop.f32.mrf.mxu0
        %v1813 = vadd.f32 %v1668, %v1812
        %v1814 = vpop.f32.mrf.mxu0
        %v1815 = vadd.f32 %v1670, %v1814
        %1816 = vdwg.mxu0
        %v1817 = vand.u32 %v458, 4294901760
        %1818 = vmatprep.subr.mxu0 %v1817
        %v1819 = vand.u32 %v457, 4294901760
        %1820 = vmatpush1.msra.mxu0 %v1819
        %v1821 = vand.u32 %v456, 4294901760
        %1822 = vmatprep.subr.mxu0 %v1821
        %v1823 = vand.u32 %v455, 4294901760
        %1824 = vmatpush1.msra.mxu0 %v1823
        %v1825 = vand.u32 %v454, 4294901760
        %1826 = vmatprep.subr.mxu0 %v1825
        %v1827 = vand.u32 %v453, 4294901760
        %1828 = vmatpush1.msra.mxu0 %v1827
        %v1829 = vand.u32 %v452, 4294901760
        %1830 = vmatprep.subr.mxu0 %v1829
        %v1831 = vand.u32 %v451, 4294901760
        %1832 = vmatpush1.msra.mxu0 %v1831
        %v1833 = vand.u32 %v450, 4294901760
        %1834 = vmatprep.subr.mxu0 %v1833
        %v1835 = vand.u32 %v449, 4294901760
        %1836 = vmatpush1.msra.mxu0 %v1835
        %v1837 = vand.u32 %v448, 4294901760
        %1838 = vmatprep.subr.mxu0 %v1837
        %v1839 = vand.u32 %v447, 4294901760
        %1840 = vmatpush1.msra.mxu0 %v1839
        %v1841 = vand.u32 %v446, 4294901760
        %1842 = vmatprep.subr.mxu0 %v1841
        %v1843 = vand.u32 %v445, 4294901760
        %1844 = vmatpush1.msra.mxu0 %v1843
        %v1845 = vand.u32 %v444, 4294901760
        %1846 = vmatprep.subr.mxu0 %v1845
        %v1847 = vand.u32 %v443, 4294901760
        %1848 = vmatpush1.msra.mxu0 %v1847
        %v1849 = vand.u32 %v442, 4294901760
        %1850 = vmatprep.subr.mxu0 %v1849
        %v1851 = vand.u32 %v441, 4294901760
        %1852 = vmatpush1.msra.mxu0 %v1851
        %v1853 = vand.u32 %v440, 4294901760
        %1854 = vmatprep.subr.mxu0 %v1853
        %v1855 = vand.u32 %v439, 4294901760
        %1856 = vmatpush1.msra.mxu0 %v1855
        %v1857 = vand.u32 %v438, 4294901760
        %1858 = vmatprep.subr.mxu0 %v1857
        %v1859 = vand.u32 %v437, 4294901760
        %1860 = vmatpush1.msra.mxu0 %v1859
        %v1861 = vand.u32 %v436, 4294901760
        %1862 = vmatprep.subr.mxu0 %v1861
        %v1863 = vand.u32 %v435, 4294901760
        %1864 = vmatpush1.msra.mxu0 %v1863
        %v1865 = vand.u32 %v434, 4294901760
        %1866 = vmatprep.subr.mxu0 %v1865
        %v1867 = vand.u32 %v433, 4294901760
        %1868 = vmatpush1.msra.mxu0 %v1867
        %v1869 = vand.u32 %v432, 4294901760
        %1870 = vmatprep.subr.mxu0 %v1869
        %v1871 = vand.u32 %v431, 4294901760
        %1872 = vmatpush1.msra.mxu0 %v1871
        %v1873 = vand.u32 %v430, 4294901760
        %1874 = vmatprep.subr.mxu0 %v1873
        %v1875 = vand.u32 %v429, 4294901760
        %1876 = vmatpush1.msra.mxu0 %v1875
        %v1877 = vand.u32 %v428, 4294901760
        %1878 = vmatprep.subr.mxu0 %v1877
        %v1879 = vand.u32 %v427, 4294901760
        %1880 = vmatpush1.msra.mxu0 %v1879
        %1881 = vmatprep.subr.mxu0 0.0
        %1882 = vmatpush2.msra.mxu0 0.0
        %1883 = vmatprep.subr.mxu0 0.0
        %1884 = vmatpush2.msra.mxu0 0.0
        %1885 = vmatprep.subr.mxu0 0.0
        %1886 = vmatpush2.msra.mxu0 0.0
        %1887 = vmatprep.subr.mxu0 0.0
        %1888 = vmatpush2.msra.mxu0 0.0
        %1889 = vmatprep.subr.mxu0 0.0
        %1890 = vmatpush2.msra.mxu0 0.0
        %1891 = vmatprep.subr.mxu0 0.0
        %1892 = vmatpush2.msra.mxu0 0.0
        %1893 = vmatprep.subr.mxu0 0.0
        %1894 = vmatpush2.msra.mxu0 0.0
        %1895 = vmatprep.subr.mxu0 0.0
        %1896 = vmatpush2.msra.mxu0 0.0
        %1897 = vmatprep.subr.mxu0 0.0
        %1898 = vmatpush2.msra.mxu0 0.0
        %1899 = vmatprep.subr.mxu0 0.0
        %1900 = vmatpush2.msra.mxu0 0.0
        %1901 = vmatprep.subr.mxu0 0.0
        %1902 = vmatpush2.msra.mxu0 0.0
        %1903 = vmatprep.subr.mxu0 0.0
        %1904 = vmatpush2.msra.mxu0 0.0
        %1905 = vmatprep.subr.mxu0 0.0
        %1906 = vmatpush2.msra.mxu0 0.0
        %1907 = vmatprep.subr.mxu0 0.0
        %1908 = vmatpush2.msra.mxu0 0.0
        %1909 = vmatprep.subr.mxu0 0.0
        %1910 = vmatpush2.msra.mxu0 0.0
        %1911 = vmatprep.subr.mxu0 0.0
        %1912 = vmatpush2.msra.mxu0 0.0
        %1913 = vmatprep.mubr.f32.mxu0 0.0
        %v1914 = vand.u32 %v359, 4294901760
        %v1915 = vsub.f32 %v359, %v1914
        %v1916 = vand.u32 %v1915, 4294901760
        %v1917 = vsub.f32 %v1915, %v1916
        %v1918 = vand.u32 %v1917, 4294901760
        %1919 = vmatmul.mubr.f32.gmra.mxu0 %v1918
        %v1920 = vpop.f32.mrf.mxu0
        %v1921 = vadd.f32 %v1805, %v1920
        %v1922 = vpop.f32.mrf.mxu0
        %v1923 = vadd.f32 %v1807, %v1922
        %1924 = vmatprep.mubr.f32.mxu0 0.0
        %v1925 = vand.u32 %v362, 4294901760
        %v1926 = vsub.f32 %v362, %v1925
        %v1927 = vand.u32 %v1926, 4294901760
        %v1928 = vsub.f32 %v1926, %v1927
        %v1929 = vand.u32 %v1928, 4294901760
        %1930 = vmatmul.mubr.f32.gmra.mxu0 %v1929
        %v1931 = vpop.f32.mrf.mxu0
        %v1932 = vadd.f32 %v1813, %v1931
        %v1933 = vpop.f32.mrf.mxu0
        %v1934 = vadd.f32 %v1815, %v1933
        %1935 = vdwg.mxu0
        %v1936 = vand.u32 %v458, 4294901760
        %v1937 = vsub.f32 %v458, %v1936
        %v1938 = vand.u32 %v1937, 4294901760
        %v1939 = vsub.f32 %v1937, %v1938
        %v1940 = vand.u32 %v1939, 4294901760
        %1941 = vmatprep.subr.mxu0 %v1940
        %v1942 = vand.u32 %v457, 4294901760
        %v1943 = vsub.f32 %v457, %v1942
        %v1944 = vand.u32 %v1943, 4294901760
        %v1945 = vsub.f32 %v1943, %v1944
        %v1946 = vand.u32 %v1945, 4294901760
        %1947 = vmatpush1.msra.mxu0 %v1946
        %v1948 = vand.u32 %v456, 4294901760
        %v1949 = vsub.f32 %v456, %v1948
        %v1950 = vand.u32 %v1949, 4294901760
        %v1951 = vsub.f32 %v1949, %v1950
        %v1952 = vand.u32 %v1951, 4294901760
        %1953 = vmatprep.subr.mxu0 %v1952
        %v1954 = vand.u32 %v455, 4294901760
        %v1955 = vsub.f32 %v455, %v1954
        %v1956 = vand.u32 %v1955, 4294901760
        %v1957 = vsub.f32 %v1955, %v1956
        %v1958 = vand.u32 %v1957, 4294901760
        %1959 = vmatpush1.msra.mxu0 %v1958
        %v1960 = vand.u32 %v454, 4294901760
        %v1961 = vsub.f32 %v454, %v1960
        %v1962 = vand.u32 %v1961, 4294901760
        %v1963 = vsub.f32 %v1961, %v1962
        %v1964 = vand.u32 %v1963, 4294901760
        %1965 = vmatprep.subr.mxu0 %v1964
        %v1966 = vand.u32 %v453, 4294901760
        %v1967 = vsub.f32 %v453, %v1966
        %v1968 = vand.u32 %v1967, 4294901760
        %v1969 = vsub.f32 %v1967, %v1968
        %v1970 = vand.u32 %v1969, 4294901760
        %1971 = vmatpush1.msra.mxu0 %v1970
        %v1972 = vand.u32 %v452, 4294901760
        %v1973 = vsub.f32 %v452, %v1972
        %v1974 = vand.u32 %v1973, 4294901760
        %v1975 = vsub.f32 %v1973, %v1974
        %v1976 = vand.u32 %v1975, 4294901760
        %1977 = vmatprep.subr.mxu0 %v1976
        %v1978 = vand.u32 %v451, 4294901760
        %v1979 = vsub.f32 %v451, %v1978
        %v1980 = vand.u32 %v1979, 4294901760
        %v1981 = vsub.f32 %v1979, %v1980
        %v1982 = vand.u32 %v1981, 4294901760
        %1983 = vmatpush1.msra.mxu0 %v1982
        %v1984 = vand.u32 %v450, 4294901760
        %v1985 = vsub.f32 %v450, %v1984
        %v1986 = vand.u32 %v1985, 4294901760
        %v1987 = vsub.f32 %v1985, %v1986
        %v1988 = vand.u32 %v1987, 4294901760
        %1989 = vmatprep.subr.mxu0 %v1988
        %v1990 = vand.u32 %v449, 4294901760
        %v1991 = vsub.f32 %v449, %v1990
        %v1992 = vand.u32 %v1991, 4294901760
        %v1993 = vsub.f32 %v1991, %v1992
        %v1994 = vand.u32 %v1993, 4294901760
        %1995 = vmatpush1.msra.mxu0 %v1994
        %v1996 = vand.u32 %v448, 4294901760
        %v1997 = vsub.f32 %v448, %v1996
        %v1998 = vand.u32 %v1997, 4294901760
        %v1999 = vsub.f32 %v1997, %v1998
        %v2000 = vand.u32 %v1999, 4294901760
        %2001 = vmatprep.subr.mxu0 %v2000
        %v2002 = vand.u32 %v447, 4294901760
        %v2003 = vsub.f32 %v447, %v2002
        %v2004 = vand.u32 %v2003, 4294901760
        %v2005 = vsub.f32 %v2003, %v2004
        %v2006 = vand.u32 %v2005, 4294901760
        %2007 = vmatpush1.msra.mxu0 %v2006
        %v2008 = vand.u32 %v446, 4294901760
        %v2009 = vsub.f32 %v446, %v2008
        %v2010 = vand.u32 %v2009, 4294901760
        %v2011 = vsub.f32 %v2009, %v2010
        %v2012 = vand.u32 %v2011, 4294901760
        %2013 = vmatprep.subr.mxu0 %v2012
        %v2014 = vand.u32 %v445, 4294901760
        %v2015 = vsub.f32 %v445, %v2014
        %v2016 = vand.u32 %v2015, 4294901760
        %v2017 = vsub.f32 %v2015, %v2016
        %v2018 = vand.u32 %v2017, 4294901760
        %2019 = vmatpush1.msra.mxu0 %v2018
        %v2020 = vand.u32 %v444, 4294901760
        %v2021 = vsub.f32 %v444, %v2020
        %v2022 = vand.u32 %v2021, 4294901760
        %v2023 = vsub.f32 %v2021, %v2022
        %v2024 = vand.u32 %v2023, 4294901760
        %2025 = vmatprep.subr.mxu0 %v2024
        %v2026 = vand.u32 %v443, 4294901760
        %v2027 = vsub.f32 %v443, %v2026
        %v2028 = vand.u32 %v2027, 4294901760
        %v2029 = vsub.f32 %v2027, %v2028
        %v2030 = vand.u32 %v2029, 4294901760
        %2031 = vmatpush1.msra.mxu0 %v2030
        %v2032 = vand.u32 %v442, 4294901760
        %v2033 = vsub.f32 %v442, %v2032
        %v2034 = vand.u32 %v2033, 4294901760
        %v2035 = vsub.f32 %v2033, %v2034
        %v2036 = vand.u32 %v2035, 4294901760
        %2037 = vmatprep.subr.mxu0 %v2036
        %v2038 = vand.u32 %v441, 4294901760
        %v2039 = vsub.f32 %v441, %v2038
        %v2040 = vand.u32 %v2039, 4294901760
        %v2041 = vsub.f32 %v2039, %v2040
        %v2042 = vand.u32 %v2041, 4294901760
        %2043 = vmatpush1.msra.mxu0 %v2042
        %v2044 = vand.u32 %v440, 4294901760
        %v2045 = vsub.f32 %v440, %v2044
        %v2046 = vand.u32 %v2045, 4294901760
        %v2047 = vsub.f32 %v2045, %v2046
        %v2048 = vand.u32 %v2047, 4294901760
        %2049 = vmatprep.subr.mxu0 %v2048
        %v2050 = vand.u32 %v439, 4294901760
        %v2051 = vsub.f32 %v439, %v2050
        %v2052 = vand.u32 %v2051, 4294901760
        %v2053 = vsub.f32 %v2051, %v2052
        %v2054 = vand.u32 %v2053, 4294901760
        %2055 = vmatpush1.msra.mxu0 %v2054
        %v2056 = vand.u32 %v438, 4294901760
        %v2057 = vsub.f32 %v438, %v2056
        %v2058 = vand.u32 %v2057, 4294901760
        %v2059 = vsub.f32 %v2057, %v2058
        %v2060 = vand.u32 %v2059, 4294901760
        %2061 = vmatprep.subr.mxu0 %v2060
        %v2062 = vand.u32 %v437, 4294901760
        %v2063 = vsub.f32 %v437, %v2062
        %v2064 = vand.u32 %v2063, 4294901760
        %v2065 = vsub.f32 %v2063, %v2064
        %v2066 = vand.u32 %v2065, 4294901760
        %2067 = vmatpush1.msra.mxu0 %v2066
        %v2068 = vand.u32 %v436, 4294901760
        %v2069 = vsub.f32 %v436, %v2068
        %v2070 = vand.u32 %v2069, 4294901760
        %v2071 = vsub.f32 %v2069, %v2070
        %v2072 = vand.u32 %v2071, 4294901760
        %2073 = vmatprep.subr.mxu0 %v2072
        %v2074 = vand.u32 %v435, 4294901760
        %v2075 = vsub.f32 %v435, %v2074
        %v2076 = vand.u32 %v2075, 4294901760
        %v2077 = vsub.f32 %v2075, %v2076
        %v2078 = vand.u32 %v2077, 4294901760
        %2079 = vmatpush1.msra.mxu0 %v2078
        %v2080 = vand.u32 %v434, 4294901760
        %v2081 = vsub.f32 %v434, %v2080
        %v2082 = vand.u32 %v2081, 4294901760
        %v2083 = vsub.f32 %v2081, %v2082
        %v2084 = vand.u32 %v2083, 4294901760
        %2085 = vmatprep.subr.mxu0 %v2084
        %v2086 = vand.u32 %v433, 4294901760
        %v2087 = vsub.f32 %v433, %v2086
        %v2088 = vand.u32 %v2087, 4294901760
        %v2089 = vsub.f32 %v2087, %v2088
        %v2090 = vand.u32 %v2089, 4294901760
        %2091 = vmatpush1.msra.mxu0 %v2090
        %v2092 = vand.u32 %v432, 4294901760
        %v2093 = vsub.f32 %v432, %v2092
        %v2094 = vand.u32 %v2093, 4294901760
        %v2095 = vsub.f32 %v2093, %v2094
        %v2096 = vand.u32 %v2095, 4294901760
        %2097 = vmatprep.subr.mxu0 %v2096
        %v2098 = vand.u32 %v431, 4294901760
        %v2099 = vsub.f32 %v431, %v2098
        %v2100 = vand.u32 %v2099, 4294901760
        %v2101 = vsub.f32 %v2099, %v2100
        %v2102 = vand.u32 %v2101, 4294901760
        %2103 = vmatpush1.msra.mxu0 %v2102
        %v2104 = vand.u32 %v430, 4294901760
        %v2105 = vsub.f32 %v430, %v2104
        %v2106 = vand.u32 %v2105, 4294901760
        %v2107 = vsub.f32 %v2105, %v2106
        %v2108 = vand.u32 %v2107, 4294901760
        %2109 = vmatprep.subr.mxu0 %v2108
        %v2110 = vand.u32 %v429, 4294901760
        %v2111 = vsub.f32 %v429, %v2110
        %v2112 = vand.u32 %v2111, 4294901760
        %v2113 = vsub.f32 %v2111, %v2112
        %v2114 = vand.u32 %v2113, 4294901760
        %2115 = vmatpush1.msra.mxu0 %v2114
        %v2116 = vand.u32 %v428, 4294901760
        %v2117 = vsub.f32 %v428, %v2116
        %v2118 = vand.u32 %v2117, 4294901760
        %v2119 = vsub.f32 %v2117, %v2118
        %v2120 = vand.u32 %v2119, 4294901760
        %2121 = vmatprep.subr.mxu0 %v2120
        %v2122 = vand.u32 %v427, 4294901760
        %v2123 = vsub.f32 %v427, %v2122
        %v2124 = vand.u32 %v2123, 4294901760
        %v2125 = vsub.f32 %v2123, %v2124
        %v2126 = vand.u32 %v2125, 4294901760
        %2127 = vmatpush1.msra.mxu0 %v2126
        %2128 = vmatprep.subr.mxu0 0.0
        %2129 = vmatpush2.msra.mxu0 0.0
        %2130 = vmatprep.subr.mxu0 0.0
        %2131 = vmatpush2.msra.mxu0 0.0
        %2132 = vmatprep.subr.mxu0 0.0
        %2133 = vmatpush2.msra.mxu0 0.0
        %2134 = vmatprep.subr.mxu0 0.0
        %2135 = vmatpush2.msra.mxu0 0.0
        %2136 = vmatprep.subr.mxu0 0.0
        %2137 = vmatpush2.msra.mxu0 0.0
        %2138 = vmatprep.subr.mxu0 0.0
        %2139 = vmatpush2.msra.mxu0 0.0
        %2140 = vmatprep.subr.mxu0 0.0
        %2141 = vmatpush2.msra.mxu0 0.0
        %2142 = vmatprep.subr.mxu0 0.0
        %2143 = vmatpush2.msra.mxu0 0.0
        %2144 = vmatprep.subr.mxu0 0.0
        %2145 = vmatpush2.msra.mxu0 0.0
        %2146 = vmatprep.subr.mxu0 0.0
        %2147 = vmatpush2.msra.mxu0 0.0
        %2148 = vmatprep.subr.mxu0 0.0
        %2149 = vmatpush2.msra.mxu0 0.0
        %2150 = vmatprep.subr.mxu0 0.0
        %2151 = vmatpush2.msra.mxu0 0.0
        %2152 = vmatprep.subr.mxu0 0.0
        %2153 = vmatpush2.msra.mxu0 0.0
        %2154 = vmatprep.subr.mxu0 0.0
        %2155 = vmatpush2.msra.mxu0 0.0
        %2156 = vmatprep.subr.mxu0 0.0
        %2157 = vmatpush2.msra.mxu0 0.0
        %2158 = vmatprep.subr.mxu0 0.0
        %2159 = vmatpush2.msra.mxu0 0.0
        %2160 = vmatprep.mubr.f32.mxu0 0.0
        %v2161 = vand.u32 %v359, 4294901760
        %2162 = vmatmul.mubr.f32.gmra.mxu0 %v2161
        %v2163 = vpop.f32.mrf.mxu0
        %v2164 = vadd.f32 %v1921, %v2163
        %v2165 = vpop.f32.mrf.mxu0
        %v2166 = vadd.f32 %v1923, %v2165
        %2167 = vmatprep.mubr.f32.mxu0 0.0
        %v2168 = vand.u32 %v362, 4294901760
        %2169 = vmatmul.mubr.f32.gmra.mxu0 %v2168
        %v2170 = vpop.f32.mrf.mxu0
        %v2171 = vadd.f32 %v1932, %v2170
        %v2172 = vpop.f32.mrf.mxu0
        %v2173 = vadd.f32 %v1934, %v2172
        %2174 = vdwg.mxu0
        %v2175 = vand.u32 %v458, 4294901760
        %v2176 = vsub.f32 %v458, %v2175
        %2177 = vmatprep.subr.mxu0 %v2176
        %v2178 = vand.u32 %v457, 4294901760
        %v2179 = vsub.f32 %v457, %v2178
        %2180 = vmatpush1.msra.mxu0 %v2179
        %v2181 = vand.u32 %v456, 4294901760
        %v2182 = vsub.f32 %v456, %v2181
        %2183 = vmatprep.subr.mxu0 %v2182
        %v2184 = vand.u32 %v455, 4294901760
        %v2185 = vsub.f32 %v455, %v2184
        %2186 = vmatpush1.msra.mxu0 %v2185
        %v2187 = vand.u32 %v454, 4294901760
        %v2188 = vsub.f32 %v454, %v2187
        %2189 = vmatprep.subr.mxu0 %v2188
        %v2190 = vand.u32 %v453, 4294901760
        %v2191 = vsub.f32 %v453, %v2190
        %2192 = vmatpush1.msra.mxu0 %v2191
        %v2193 = vand.u32 %v452, 4294901760
        %v2194 = vsub.f32 %v452, %v2193
        %2195 = vmatprep.subr.mxu0 %v2194
        %v2196 = vand.u32 %v451, 4294901760
        %v2197 = vsub.f32 %v451, %v2196
        %2198 = vmatpush1.msra.mxu0 %v2197
        %v2199 = vand.u32 %v450, 4294901760
        %v2200 = vsub.f32 %v450, %v2199
        %2201 = vmatprep.subr.mxu0 %v2200
        %v2202 = vand.u32 %v449, 4294901760
        %v2203 = vsub.f32 %v449, %v2202
        %2204 = vmatpush1.msra.mxu0 %v2203
        %v2205 = vand.u32 %v448, 4294901760
        %v2206 = vsub.f32 %v448, %v2205
        %2207 = vmatprep.subr.mxu0 %v2206
        %v2208 = vand.u32 %v447, 4294901760
        %v2209 = vsub.f32 %v447, %v2208
        %2210 = vmatpush1.msra.mxu0 %v2209
        %v2211 = vand.u32 %v446, 4294901760
        %v2212 = vsub.f32 %v446, %v2211
        %2213 = vmatprep.subr.mxu0 %v2212
        %v2214 = vand.u32 %v445, 4294901760
        %v2215 = vsub.f32 %v445, %v2214
        %2216 = vmatpush1.msra.mxu0 %v2215
        %v2217 = vand.u32 %v444, 4294901760
        %v2218 = vsub.f32 %v444, %v2217
        %2219 = vmatprep.subr.mxu0 %v2218
        %v2220 = vand.u32 %v443, 4294901760
        %v2221 = vsub.f32 %v443, %v2220
        %2222 = vmatpush1.msra.mxu0 %v2221
        %v2223 = vand.u32 %v442, 4294901760
        %v2224 = vsub.f32 %v442, %v2223
        %2225 = vmatprep.subr.mxu0 %v2224
        %v2226 = vand.u32 %v441, 4294901760
        %v2227 = vsub.f32 %v441, %v2226
        %2228 = vmatpush1.msra.mxu0 %v2227
        %v2229 = vand.u32 %v440, 4294901760
        %v2230 = vsub.f32 %v440, %v2229
        %2231 = vmatprep.subr.mxu0 %v2230
        %v2232 = vand.u32 %v439, 4294901760
        %v2233 = vsub.f32 %v439, %v2232
        %2234 = vmatpush1.msra.mxu0 %v2233
        %v2235 = vand.u32 %v438, 4294901760
        %v2236 = vsub.f32 %v438, %v2235
        %2237 = vmatprep.subr.mxu0 %v2236
        %v2238 = vand.u32 %v437, 4294901760
        %v2239 = vsub.f32 %v437, %v2238
        %2240 = vmatpush1.msra.mxu0 %v2239
        %v2241 = vand.u32 %v436, 4294901760
        %v2242 = vsub.f32 %v436, %v2241
        %2243 = vmatprep.subr.mxu0 %v2242
        %v2244 = vand.u32 %v435, 4294901760
        %v2245 = vsub.f32 %v435, %v2244
        %2246 = vmatpush1.msra.mxu0 %v2245
        %v2247 = vand.u32 %v434, 4294901760
        %v2248 = vsub.f32 %v434, %v2247
        %2249 = vmatprep.subr.mxu0 %v2248
        %v2250 = vand.u32 %v433, 4294901760
        %v2251 = vsub.f32 %v433, %v2250
        %2252 = vmatpush1.msra.mxu0 %v2251
        %v2253 = vand.u32 %v432, 4294901760
        %v2254 = vsub.f32 %v432, %v2253
        %2255 = vmatprep.subr.mxu0 %v2254
        %v2256 = vand.u32 %v431, 4294901760
        %v2257 = vsub.f32 %v431, %v2256
        %2258 = vmatpush1.msra.mxu0 %v2257
        %v2259 = vand.u32 %v430, 4294901760
        %v2260 = vsub.f32 %v430, %v2259
        %2261 = vmatprep.subr.mxu0 %v2260
        %v2262 = vand.u32 %v429, 4294901760
        %v2263 = vsub.f32 %v429, %v2262
        %2264 = vmatpush1.msra.mxu0 %v2263
        %v2265 = vand.u32 %v428, 4294901760
        %v2266 = vsub.f32 %v428, %v2265
        %2267 = vmatprep.subr.mxu0 %v2266
        %v2268 = vand.u32 %v427, 4294901760
        %v2269 = vsub.f32 %v427, %v2268
        %2270 = vmatpush1.msra.mxu0 %v2269
        %2271 = vmatprep.subr.mxu0 0.0
        %2272 = vmatpush2.msra.mxu0 0.0
        %2273 = vmatprep.subr.mxu0 0.0
        %2274 = vmatpush2.msra.mxu0 0.0
        %2275 = vmatprep.subr.mxu0 0.0
        %2276 = vmatpush2.msra.mxu0 0.0
        %2277 = vmatprep.subr.mxu0 0.0
        %2278 = vmatpush2.msra.mxu0 0.0
        %2279 = vmatprep.subr.mxu0 0.0
        %2280 = vmatpush2.msra.mxu0 0.0
        %2281 = vmatprep.subr.mxu0 0.0
        %2282 = vmatpush2.msra.mxu0 0.0
        %2283 = vmatprep.subr.mxu0 0.0
        %2284 = vmatpush2.msra.mxu0 0.0
        %2285 = vmatprep.subr.mxu0 0.0
        %2286 = vmatpush2.msra.mxu0 0.0
        %2287 = vmatprep.subr.mxu0 0.0
        %2288 = vmatpush2.msra.mxu0 0.0
        %2289 = vmatprep.subr.mxu0 0.0
        %2290 = vmatpush2.msra.mxu0 0.0
        %2291 = vmatprep.subr.mxu0 0.0
        %2292 = vmatpush2.msra.mxu0 0.0
        %2293 = vmatprep.subr.mxu0 0.0
        %2294 = vmatpush2.msra.mxu0 0.0
        %2295 = vmatprep.subr.mxu0 0.0
        %2296 = vmatpush2.msra.mxu0 0.0
        %2297 = vmatprep.subr.mxu0 0.0
        %2298 = vmatpush2.msra.mxu0 0.0
        %2299 = vmatprep.subr.mxu0 0.0
        %2300 = vmatpush2.msra.mxu0 0.0
        %2301 = vmatprep.subr.mxu0 0.0
        %2302 = vmatpush2.msra.mxu0 0.0
        %2303 = vmatprep.mubr.f32.mxu0 0.0
        %v2304 = vand.u32 %v359, 4294901760
        %v2305 = vsub.f32 %v359, %v2304
        %2306 = vmatmul.mubr.f32.gmra.mxu0 %v2305
        %v2307 = vpop.f32.mrf.mxu0
        %v2308 = vadd.f32 %v2164, %v2307
        %v2309 = vpop.f32.mrf.mxu0
        %v2310 = vadd.f32 %v2166, %v2309
        %2311 = vmatprep.mubr.f32.mxu0 0.0
        %v2312 = vand.u32 %v362, 4294901760
        %v2313 = vsub.f32 %v362, %v2312
        %2314 = vmatmul.mubr.f32.gmra.mxu0 %v2313
        %v2315 = vpop.f32.mrf.mxu0
        %v2316 = vadd.f32 %v2171, %v2315
        %v2317 = vpop.f32.mrf.mxu0
        %v2318 = vadd.f32 %v2173, %v2317
        %2319 = vdwg.mxu0
        %v2320 = vand.u32 %v458, 4294901760
        %2321 = vmatprep.subr.mxu0 %v2320
        %v2322 = vand.u32 %v457, 4294901760
        %2323 = vmatpush1.msra.mxu0 %v2322
        %v2324 = vand.u32 %v456, 4294901760
        %2325 = vmatprep.subr.mxu0 %v2324
        %v2326 = vand.u32 %v455, 4294901760
        %2327 = vmatpush1.msra.mxu0 %v2326
        %v2328 = vand.u32 %v454, 4294901760
        %2329 = vmatprep.subr.mxu0 %v2328
        %v2330 = vand.u32 %v453, 4294901760
        %2331 = vmatpush1.msra.mxu0 %v2330
        %v2332 = vand.u32 %v452, 4294901760
        %2333 = vmatprep.subr.mxu0 %v2332
        %v2334 = vand.u32 %v451, 4294901760
        %2335 = vmatpush1.msra.mxu0 %v2334
        %v2336 = vand.u32 %v450, 4294901760
        %2337 = vmatprep.subr.mxu0 %v2336
        %v2338 = vand.u32 %v449, 4294901760
        %2339 = vmatpush1.msra.mxu0 %v2338
        %v2340 = vand.u32 %v448, 4294901760
        %2341 = vmatprep.subr.mxu0 %v2340
        %v2342 = vand.u32 %v447, 4294901760
        %2343 = vmatpush1.msra.mxu0 %v2342
        %v2344 = vand.u32 %v446, 4294901760
        %2345 = vmatprep.subr.mxu0 %v2344
        %v2346 = vand.u32 %v445, 4294901760
        %2347 = vmatpush1.msra.mxu0 %v2346
        %v2348 = vand.u32 %v444, 4294901760
        %2349 = vmatprep.subr.mxu0 %v2348
        %v2350 = vand.u32 %v443, 4294901760
        %2351 = vmatpush1.msra.mxu0 %v2350
        %v2352 = vand.u32 %v442, 4294901760
        %2353 = vmatprep.subr.mxu0 %v2352
        %v2354 = vand.u32 %v441, 4294901760
        %2355 = vmatpush1.msra.mxu0 %v2354
        %v2356 = vand.u32 %v440, 4294901760
        %2357 = vmatprep.subr.mxu0 %v2356
        %v2358 = vand.u32 %v439, 4294901760
        %2359 = vmatpush1.msra.mxu0 %v2358
        %v2360 = vand.u32 %v438, 4294901760
        %2361 = vmatprep.subr.mxu0 %v2360
        %v2362 = vand.u32 %v437, 4294901760
        %2363 = vmatpush1.msra.mxu0 %v2362
        %v2364 = vand.u32 %v436, 4294901760
        %2365 = vmatprep.subr.mxu0 %v2364
        %v2366 = vand.u32 %v435, 4294901760
        %2367 = vmatpush1.msra.mxu0 %v2366
        %v2368 = vand.u32 %v434, 4294901760
        %2369 = vmatprep.subr.mxu0 %v2368
        %v2370 = vand.u32 %v433, 4294901760
        %2371 = vmatpush1.msra.mxu0 %v2370
        %v2372 = vand.u32 %v432, 4294901760
        %2373 = vmatprep.subr.mxu0 %v2372
        %v2374 = vand.u32 %v431, 4294901760
        %2375 = vmatpush1.msra.mxu0 %v2374
        %v2376 = vand.u32 %v430, 4294901760
        %2377 = vmatprep.subr.mxu0 %v2376
        %v2378 = vand.u32 %v429, 4294901760
        %2379 = vmatpush1.msra.mxu0 %v2378
        %v2380 = vand.u32 %v428, 4294901760
        %2381 = vmatprep.subr.mxu0 %v2380
        %v2382 = vand.u32 %v427, 4294901760
        %2383 = vmatpush1.msra.mxu0 %v2382
        %2384 = vmatprep.subr.mxu0 0.0
        %2385 = vmatpush2.msra.mxu0 0.0
        %2386 = vmatprep.subr.mxu0 0.0
        %2387 = vmatpush2.msra.mxu0 0.0
        %2388 = vmatprep.subr.mxu0 0.0
        %2389 = vmatpush2.msra.mxu0 0.0
        %2390 = vmatprep.subr.mxu0 0.0
        %2391 = vmatpush2.msra.mxu0 0.0
        %2392 = vmatprep.subr.mxu0 0.0
        %2393 = vmatpush2.msra.mxu0 0.0
        %2394 = vmatprep.subr.mxu0 0.0
        %2395 = vmatpush2.msra.mxu0 0.0
        %2396 = vmatprep.subr.mxu0 0.0
        %2397 = vmatpush2.msra.mxu0 0.0
        %2398 = vmatprep.subr.mxu0 0.0
        %2399 = vmatpush2.msra.mxu0 0.0
        %2400 = vmatprep.subr.mxu0 0.0
        %2401 = vmatpush2.msra.mxu0 0.0
        %2402 = vmatprep.subr.mxu0 0.0
        %2403 = vmatpush2.msra.mxu0 0.0
        %2404 = vmatprep.subr.mxu0 0.0
        %2405 = vmatpush2.msra.mxu0 0.0
        %2406 = vmatprep.subr.mxu0 0.0
        %2407 = vmatpush2.msra.mxu0 0.0
        %2408 = vmatprep.subr.mxu0 0.0
        %2409 = vmatpush2.msra.mxu0 0.0
        %2410 = vmatprep.subr.mxu0 0.0
        %2411 = vmatpush2.msra.mxu0 0.0
        %2412 = vmatprep.subr.mxu0 0.0
        %2413 = vmatpush2.msra.mxu0 0.0
        %2414 = vmatprep.subr.mxu0 0.0
        %2415 = vmatpush2.msra.mxu0 0.0
        %2416 = vmatprep.mubr.f32.mxu0 0.0
        %v2417 = vand.u32 %v359, 4294901760
        %v2418 = vsub.f32 %v359, %v2417
        %v2419 = vand.u32 %v2418, 4294901760
        %2420 = vmatmul.mubr.f32.gmra.mxu0 %v2419
        %v2421 = vpop.f32.mrf.mxu0
        %v2422 = vadd.f32 %v2308, %v2421
        %v2423 = vpop.f32.mrf.mxu0
        %v2424 = vadd.f32 %v2310, %v2423
        %2425 = vmatprep.mubr.f32.mxu0 0.0
        %v2426 = vand.u32 %v362, 4294901760
        %v2427 = vsub.f32 %v362, %v2426
        %v2428 = vand.u32 %v2427, 4294901760
        %2429 = vmatmul.mubr.f32.gmra.mxu0 %v2428
        %v2430 = vpop.f32.mrf.mxu0
        %v2431 = vadd.f32 %v2316, %v2430
        %v2432 = vpop.f32.mrf.mxu0
        %v2433 = vadd.f32 %v2318, %v2432
        %2434 = vdwg.mxu0
        %v2435 = vand.u32 %v458, 4294901760
        %v2436 = vsub.f32 %v458, %v2435
        %v2437 = vand.u32 %v2436, 4294901760
        %2438 = vmatprep.subr.mxu0 %v2437
        %v2439 = vand.u32 %v457, 4294901760
        %v2440 = vsub.f32 %v457, %v2439
        %v2441 = vand.u32 %v2440, 4294901760
        %2442 = vmatpush1.msra.mxu0 %v2441
        %v2443 = vand.u32 %v456, 4294901760
        %v2444 = vsub.f32 %v456, %v2443
        %v2445 = vand.u32 %v2444, 4294901760
        %2446 = vmatprep.subr.mxu0 %v2445
        %v2447 = vand.u32 %v455, 4294901760
        %v2448 = vsub.f32 %v455, %v2447
        %v2449 = vand.u32 %v2448, 4294901760
        %2450 = vmatpush1.msra.mxu0 %v2449
        %v2451 = vand.u32 %v454, 4294901760
        %v2452 = vsub.f32 %v454, %v2451
        %v2453 = vand.u32 %v2452, 4294901760
        %2454 = vmatprep.subr.mxu0 %v2453
        %v2455 = vand.u32 %v453, 4294901760
        %v2456 = vsub.f32 %v453, %v2455
        %v2457 = vand.u32 %v2456, 4294901760
        %2458 = vmatpush1.msra.mxu0 %v2457
        %v2459 = vand.u32 %v452, 4294901760
        %v2460 = vsub.f32 %v452, %v2459
        %v2461 = vand.u32 %v2460, 4294901760
        %2462 = vmatprep.subr.mxu0 %v2461
        %v2463 = vand.u32 %v451, 4294901760
        %v2464 = vsub.f32 %v451, %v2463
        %v2465 = vand.u32 %v2464, 4294901760
        %2466 = vmatpush1.msra.mxu0 %v2465
        %v2467 = vand.u32 %v450, 4294901760
        %v2468 = vsub.f32 %v450, %v2467
        %v2469 = vand.u32 %v2468, 4294901760
        %2470 = vmatprep.subr.mxu0 %v2469
        %v2471 = vand.u32 %v449, 4294901760
        %v2472 = vsub.f32 %v449, %v2471
        %v2473 = vand.u32 %v2472, 4294901760
        %2474 = vmatpush1.msra.mxu0 %v2473
        %v2475 = vand.u32 %v448, 4294901760
        %v2476 = vsub.f32 %v448, %v2475
        %v2477 = vand.u32 %v2476, 4294901760
        %2478 = vmatprep.subr.mxu0 %v2477
        %v2479 = vand.u32 %v447, 4294901760
        %v2480 = vsub.f32 %v447, %v2479
        %v2481 = vand.u32 %v2480, 4294901760
        %2482 = vmatpush1.msra.mxu0 %v2481
        %v2483 = vand.u32 %v446, 4294901760
        %v2484 = vsub.f32 %v446, %v2483
        %v2485 = vand.u32 %v2484, 4294901760
        %2486 = vmatprep.subr.mxu0 %v2485
        %v2487 = vand.u32 %v445, 4294901760
        %v2488 = vsub.f32 %v445, %v2487
        %v2489 = vand.u32 %v2488, 4294901760
        %2490 = vmatpush1.msra.mxu0 %v2489
        %v2491 = vand.u32 %v444, 4294901760
        %v2492 = vsub.f32 %v444, %v2491
        %v2493 = vand.u32 %v2492, 4294901760
        %2494 = vmatprep.subr.mxu0 %v2493
        %v2495 = vand.u32 %v443, 4294901760
        %v2496 = vsub.f32 %v443, %v2495
        %v2497 = vand.u32 %v2496, 4294901760
        %2498 = vmatpush1.msra.mxu0 %v2497
        %v2499 = vand.u32 %v442, 4294901760
        %v2500 = vsub.f32 %v442, %v2499
        %v2501 = vand.u32 %v2500, 4294901760
        %2502 = vmatprep.subr.mxu0 %v2501
        %v2503 = vand.u32 %v441, 4294901760
        %v2504 = vsub.f32 %v441, %v2503
        %v2505 = vand.u32 %v2504, 4294901760
        %2506 = vmatpush1.msra.mxu0 %v2505
        %v2507 = vand.u32 %v440, 4294901760
        %v2508 = vsub.f32 %v440, %v2507
        %v2509 = vand.u32 %v2508, 4294901760
        %2510 = vmatprep.subr.mxu0 %v2509
        %v2511 = vand.u32 %v439, 4294901760
        %v2512 = vsub.f32 %v439, %v2511
        %v2513 = vand.u32 %v2512, 4294901760
        %2514 = vmatpush1.msra.mxu0 %v2513
        %v2515 = vand.u32 %v438, 4294901760
        %v2516 = vsub.f32 %v438, %v2515
        %v2517 = vand.u32 %v2516, 4294901760
        %2518 = vmatprep.subr.mxu0 %v2517
        %v2519 = vand.u32 %v437, 4294901760
        %v2520 = vsub.f32 %v437, %v2519
        %v2521 = vand.u32 %v2520, 4294901760
        %2522 = vmatpush1.msra.mxu0 %v2521
        %v2523 = vand.u32 %v436, 4294901760
        %v2524 = vsub.f32 %v436, %v2523
        %v2525 = vand.u32 %v2524, 4294901760
        %2526 = vmatprep.subr.mxu0 %v2525
        %v2527 = vand.u32 %v435, 4294901760
        %v2528 = vsub.f32 %v435, %v2527
        %v2529 = vand.u32 %v2528, 4294901760
        %2530 = vmatpush1.msra.mxu0 %v2529
        %v2531 = vand.u32 %v434, 4294901760
        %v2532 = vsub.f32 %v434, %v2531
        %v2533 = vand.u32 %v2532, 4294901760
        %2534 = vmatprep.subr.mxu0 %v2533
        %v2535 = vand.u32 %v433, 4294901760
        %v2536 = vsub.f32 %v433, %v2535
        %v2537 = vand.u32 %v2536, 4294901760
        %2538 = vmatpush1.msra.mxu0 %v2537
        %v2539 = vand.u32 %v432, 4294901760
        %v2540 = vsub.f32 %v432, %v2539
        %v2541 = vand.u32 %v2540, 4294901760
        %2542 = vmatprep.subr.mxu0 %v2541
        %v2543 = vand.u32 %v431, 4294901760
        %v2544 = vsub.f32 %v431, %v2543
        %v2545 = vand.u32 %v2544, 4294901760
        %2546 = vmatpush1.msra.mxu0 %v2545
        %v2547 = vand.u32 %v430, 4294901760
        %v2548 = vsub.f32 %v430, %v2547
        %v2549 = vand.u32 %v2548, 4294901760
        %2550 = vmatprep.subr.mxu0 %v2549
        %v2551 = vand.u32 %v429, 4294901760
        %v2552 = vsub.f32 %v429, %v2551
        %v2553 = vand.u32 %v2552, 4294901760
        %2554 = vmatpush1.msra.mxu0 %v2553
        %v2555 = vand.u32 %v428, 4294901760
        %v2556 = vsub.f32 %v428, %v2555
        %v2557 = vand.u32 %v2556, 4294901760
        %2558 = vmatprep.subr.mxu0 %v2557
        %v2559 = vand.u32 %v427, 4294901760
        %v2560 = vsub.f32 %v427, %v2559
        %v2561 = vand.u32 %v2560, 4294901760
        %2562 = vmatpush1.msra.mxu0 %v2561
        %2563 = vmatprep.subr.mxu0 0.0
        %2564 = vmatpush2.msra.mxu0 0.0
        %2565 = vmatprep.subr.mxu0 0.0
        %2566 = vmatpush2.msra.mxu0 0.0
        %2567 = vmatprep.subr.mxu0 0.0
        %2568 = vmatpush2.msra.mxu0 0.0
        %2569 = vmatprep.subr.mxu0 0.0
        %2570 = vmatpush2.msra.mxu0 0.0
        %2571 = vmatprep.subr.mxu0 0.0
        %2572 = vmatpush2.msra.mxu0 0.0
        %2573 = vmatprep.subr.mxu0 0.0
        %2574 = vmatpush2.msra.mxu0 0.0
        %2575 = vmatprep.subr.mxu0 0.0
        %2576 = vmatpush2.msra.mxu0 0.0
        %2577 = vmatprep.subr.mxu0 0.0
        %2578 = vmatpush2.msra.mxu0 0.0
        %2579 = vmatprep.subr.mxu0 0.0
        %2580 = vmatpush2.msra.mxu0 0.0
        %2581 = vmatprep.subr.mxu0 0.0
        %2582 = vmatpush2.msra.mxu0 0.0
        %2583 = vmatprep.subr.mxu0 0.0
        %2584 = vmatpush2.msra.mxu0 0.0
        %2585 = vmatprep.subr.mxu0 0.0
        %2586 = vmatpush2.msra.mxu0 0.0
        %2587 = vmatprep.subr.mxu0 0.0
        %2588 = vmatpush2.msra.mxu0 0.0
        %2589 = vmatprep.subr.mxu0 0.0
        %2590 = vmatpush2.msra.mxu0 0.0
        %2591 = vmatprep.subr.mxu0 0.0
        %2592 = vmatpush2.msra.mxu0 0.0
        %2593 = vmatprep.subr.mxu0 0.0
        %2594 = vmatpush2.msra.mxu0 0.0
        %2595 = vmatprep.mubr.f32.mxu0 0.0
        %v2596 = vand.u32 %v359, 4294901760
        %2597 = vmatmul.mubr.f32.gmra.mxu0 %v2596
        %v2598 = vpop.f32.mrf.mxu0
        %v2599 = vadd.f32 %v2422, %v2598
        %v2600 = vpop.f32.mrf.mxu0
        %v2601 = vadd.f32 %v2424, %v2600
        %2602 = vmatprep.mubr.f32.mxu0 0.0
        %v2603 = vand.u32 %v362, 4294901760
        %2604 = vmatmul.mubr.f32.gmra.mxu0 %v2603
        %v2605 = vpop.f32.mrf.mxu0
        %v2606 = vadd.f32 %v2431, %v2605
        %v2607 = vpop.f32.mrf.mxu0
        %v2608 = vadd.f32 %v2433, %v2607
        %2609 = vdwg.mxu0
        %v2610 = vand.u32 %v458, 4294901760
        %2611 = vmatprep.subr.mxu0 %v2610
        %v2612 = vand.u32 %v457, 4294901760
        %2613 = vmatpush1.msra.mxu0 %v2612
        %v2614 = vand.u32 %v456, 4294901760
        %2615 = vmatprep.subr.mxu0 %v2614
        %v2616 = vand.u32 %v455, 4294901760
        %2617 = vmatpush1.msra.mxu0 %v2616
        %v2618 = vand.u32 %v454, 4294901760
        %2619 = vmatprep.subr.mxu0 %v2618
        %v2620 = vand.u32 %v453, 4294901760
        %2621 = vmatpush1.msra.mxu0 %v2620
        %v2622 = vand.u32 %v452, 4294901760
        %2623 = vmatprep.subr.mxu0 %v2622
        %v2624 = vand.u32 %v451, 4294901760
        %2625 = vmatpush1.msra.mxu0 %v2624
        %v2626 = vand.u32 %v450, 4294901760
        %2627 = vmatprep.subr.mxu0 %v2626
        %v2628 = vand.u32 %v449, 4294901760
        %2629 = vmatpush1.msra.mxu0 %v2628
        %v2630 = vand.u32 %v448, 4294901760
        %2631 = vmatprep.subr.mxu0 %v2630
        %v2632 = vand.u32 %v447, 4294901760
        %2633 = vmatpush1.msra.mxu0 %v2632
        %v2634 = vand.u32 %v446, 4294901760
        %2635 = vmatprep.subr.mxu0 %v2634
        %v2636 = vand.u32 %v445, 4294901760
        %2637 = vmatpush1.msra.mxu0 %v2636
        %v2638 = vand.u32 %v444, 4294901760
        %2639 = vmatprep.subr.mxu0 %v2638
        %v2640 = vand.u32 %v443, 4294901760
        %2641 = vmatpush1.msra.mxu0 %v2640
        %v2642 = vand.u32 %v442, 4294901760
        %2643 = vmatprep.subr.mxu0 %v2642
        %v2644 = vand.u32 %v441, 4294901760
        %2645 = vmatpush1.msra.mxu0 %v2644
        %v2646 = vand.u32 %v440, 4294901760
        %2647 = vmatprep.subr.mxu0 %v2646
        %v2648 = vand.u32 %v439, 4294901760
        %2649 = vmatpush1.msra.mxu0 %v2648
        %v2650 = vand.u32 %v438, 4294901760
        %2651 = vmatprep.subr.mxu0 %v2650
        %v2652 = vand.u32 %v437, 4294901760
        %2653 = vmatpush1.msra.mxu0 %v2652
        %v2654 = vand.u32 %v436, 4294901760
        %2655 = vmatprep.subr.mxu0 %v2654
        %v2656 = vand.u32 %v435, 4294901760
        %2657 = vmatpush1.msra.mxu0 %v2656
        %v2658 = vand.u32 %v434, 4294901760
        %2659 = vmatprep.subr.mxu0 %v2658
        %v2660 = vand.u32 %v433, 4294901760
        %2661 = vmatpush1.msra.mxu0 %v2660
        %v2662 = vand.u32 %v432, 4294901760
        %2663 = vmatprep.subr.mxu0 %v2662
        %v2664 = vand.u32 %v431, 4294901760
        %2665 = vmatpush1.msra.mxu0 %v2664
        %v2666 = vand.u32 %v430, 4294901760
        %2667 = vmatprep.subr.mxu0 %v2666
        %v2668 = vand.u32 %v429, 4294901760
        %2669 = vmatpush1.msra.mxu0 %v2668
        %v2670 = vand.u32 %v428, 4294901760
        %2671 = vmatprep.subr.mxu0 %v2670
        %v2672 = vand.u32 %v427, 4294901760
        %2673 = vmatpush1.msra.mxu0 %v2672
        %2674 = vmatprep.subr.mxu0 0.0
        %2675 = vmatpush2.msra.mxu0 0.0
        %2676 = vmatprep.subr.mxu0 0.0
        %2677 = vmatpush2.msra.mxu0 0.0
        %2678 = vmatprep.subr.mxu0 0.0
        %2679 = vmatpush2.msra.mxu0 0.0
        %2680 = vmatprep.subr.mxu0 0.0
        %2681 = vmatpush2.msra.mxu0 0.0
        %2682 = vmatprep.subr.mxu0 0.0
        %2683 = vmatpush2.msra.mxu0 0.0
        %2684 = vmatprep.subr.mxu0 0.0
        %2685 = vmatpush2.msra.mxu0 0.0
        %2686 = vmatprep.subr.mxu0 0.0
        %2687 = vmatpush2.msra.mxu0 0.0
        %2688 = vmatprep.subr.mxu0 0.0
        %2689 = vmatpush2.msra.mxu0 0.0
        %2690 = vmatprep.subr.mxu0 0.0
        %2691 = vmatpush2.msra.mxu0 0.0
        %2692 = vmatprep.subr.mxu0 0.0
        %2693 = vmatpush2.msra.mxu0 0.0
        %2694 = vmatprep.subr.mxu0 0.0
        %2695 = vmatpush2.msra.mxu0 0.0
        %2696 = vmatprep.subr.mxu0 0.0
        %2697 = vmatpush2.msra.mxu0 0.0
        %2698 = vmatprep.subr.mxu0 0.0
        %2699 = vmatpush2.msra.mxu0 0.0
        %2700 = vmatprep.subr.mxu0 0.0
        %2701 = vmatpush2.msra.mxu0 0.0
        %2702 = vmatprep.subr.mxu0 0.0
        %2703 = vmatpush2.msra.mxu0 0.0
        %2704 = vmatprep.subr.mxu0 0.0
        %2705 = vmatpush2.msra.mxu0 0.0
        %2706 = vmatprep.mubr.f32.mxu0 0.0
        %v2707 = vand.u32 %v359, 4294901760
        %2708 = vmatmul.mubr.f32.gmra.mxu0 %v2707
        %v2709 = vpop.f32.mrf.mxu0
        %v2710 = vadd.f32 %v2599, %v2709
        %v2711 = vpop.f32.mrf.mxu0
        %v2712 = vadd.f32 %v2601, %v2711
        %2713 = vmatprep.mubr.f32.mxu0 0.0
        %v2714 = vand.u32 %v362, 4294901760
        %2715 = vmatmul.mubr.f32.gmra.mxu0 %v2714
        %v2716 = vpop.f32.mrf.mxu0
        %v2717 = vadd.f32 %v2606, %v2716
        %v2718 = vpop.f32.mrf.mxu0
        %v2719 = vadd.f32 %v2608, %v2718
        %2720 = vdwg.mxu0
        %v2721 = vmax.f32 %v2710, 0.0
        %v2722 = vmax.f32 %v2712, 0.0
        %v2723 = vmax.f32 %v2717, 0.0
        %v2724 = vmax.f32 %v2719, 0.0
        %v2725 = vld [vmem:[#allocation7] sm:$0xff]
        %v2726 = vld [vmem:[#allocation7 + $0x8] sm:$0xff]
        %v2727 = vld [vmem:[#allocation7 + $0x10] sm:$0xff]
        %v2728 = vld [vmem:[#allocation7 + $0x18] sm:$0xff]
        %v2729 = vld [vmem:[#allocation7 + $0x20] sm:$0xff]
        %v2730 = vld [vmem:[#allocation7 + $0x28] sm:$0xff]
        %v2731 = vld [vmem:[#allocation7 + $0x30] sm:$0xff]
        %v2732 = vld [vmem:[#allocation7 + $0x38] sm:$0xff]
        %v2733 = vld [vmem:[#allocation7 + $0x40] sm:$0xff]
        %v2734 = vld [vmem:[#allocation7 + $0x48] sm:$0xff]
        %v2735 = vld [vmem:[#allocation7 + $0x50] sm:$0xff]
        %v2736 = vld [vmem:[#allocation7 + $0x58] sm:$0xff]
        %v2737 = vld [vmem:[#allocation7 + $0x60] sm:$0xff]
        %v2738 = vld [vmem:[#allocation7 + $0x68] sm:$0xff]
        %v2739 = vld [vmem:[#allocation7 + $0x70] sm:$0xff]
        %v2740 = vld [vmem:[#allocation7 + $0x78] sm:$0xff]
        %v2741 = vld [vmem:[#allocation7 + $0x80] sm:$0xff]
        %v2742 = vld [vmem:[#allocation7 + $0x88] sm:$0xff]
        %v2743 = vld [vmem:[#allocation7 + $0x90] sm:$0xff]
        %v2744 = vld [vmem:[#allocation7 + $0x98] sm:$0xff]
        %v2745 = vld [vmem:[#allocation7 + $0xa0] sm:$0xff]
        %v2746 = vld [vmem:[#allocation7 + $0xa8] sm:$0xff]
        %v2747 = vld [vmem:[#allocation7 + $0xb0] sm:$0xff]
        %v2748 = vld [vmem:[#allocation7 + $0xb8] sm:$0xff]
        %v2749 = vld [vmem:[#allocation7 + $0xc0] sm:$0xff]
        %v2750 = vld [vmem:[#allocation7 + $0xc8] sm:$0xff]
        %v2751 = vld [vmem:[#allocation7 + $0xd0] sm:$0xff]
        %v2752 = vld [vmem:[#allocation7 + $0xd8] sm:$0xff]
        %v2753 = vld [vmem:[#allocation7 + $0xe0] sm:$0xff]
        %v2754 = vld [vmem:[#allocation7 + $0xe8] sm:$0xff]
        %v2755 = vld [vmem:[#allocation7 + $0xf0] sm:$0xff]
        %v2756 = vld [vmem:[#allocation7 + $0xf8] sm:$0xff]
        %v2757 = vld [vmem:[#allocation7 + $0x100] sm:$0xff]
        %v2758 = vld [vmem:[#allocation7 + $0x108] sm:$0xff]
        %v2759 = vld [vmem:[#allocation7 + $0x110] sm:$0xff]
        %v2760 = vld [vmem:[#allocation7 + $0x118] sm:$0xff]
        %v2761 = vld [vmem:[#allocation7 + $0x120] sm:$0xff]
        %v2762 = vld [vmem:[#allocation7 + $0x128] sm:$0xff]
        %v2763 = vld [vmem:[#allocation7 + $0x130] sm:$0xff]
        %v2764 = vld [vmem:[#allocation7 + $0x138] sm:$0xff]
        %v2765 = vld [vmem:[#allocation7 + $0x140] sm:$0xff]
        %v2766 = vld [vmem:[#allocation7 + $0x148] sm:$0xff]
        %v2767 = vld [vmem:[#allocation7 + $0x150] sm:$0xff]
        %v2768 = vld [vmem:[#allocation7 + $0x158] sm:$0xff]
        %v2769 = vld [vmem:[#allocation7 + $0x160] sm:$0xff]
        %v2770 = vld [vmem:[#allocation7 + $0x168] sm:$0xff]
        %v2771 = vld [vmem:[#allocation7 + $0x170] sm:$0xff]
        %v2772 = vld [vmem:[#allocation7 + $0x178] sm:$0xff]
        %v2773 = vld [vmem:[#allocation7 + $0x180] sm:$0xff]
        %v2774 = vld [vmem:[#allocation7 + $0x188] sm:$0xff]
        %v2775 = vld [vmem:[#allocation7 + $0x190] sm:$0xff]
        %v2776 = vld [vmem:[#allocation7 + $0x198] sm:$0xff]
        %v2777 = vld [vmem:[#allocation7 + $0x1a0] sm:$0xff]
        %v2778 = vld [vmem:[#allocation7 + $0x1a8] sm:$0xff]
        %v2779 = vld [vmem:[#allocation7 + $0x1b0] sm:$0xff]
        %v2780 = vld [vmem:[#allocation7 + $0x1b8] sm:$0xff]
        %v2781 = vld [vmem:[#allocation7 + $0x1c0] sm:$0xff]
        %v2782 = vld [vmem:[#allocation7 + $0x1c8] sm:$0xff]
        %v2783 = vld [vmem:[#allocation7 + $0x1d0] sm:$0xff]
        %v2784 = vld [vmem:[#allocation7 + $0x1d8] sm:$0xff]
        %v2785 = vld [vmem:[#allocation7 + $0x1e0] sm:$0xff]
        %v2786 = vld [vmem:[#allocation7 + $0x1e8] sm:$0xff]
        %v2787 = vld [vmem:[#allocation7 + $0x1f0] sm:$0xff]
        %v2788 = vld [vmem:[#allocation7 + $0x1f8] sm:$0xff]
        %v2789 = vld [vmem:[%s5] sm:$0x3]
        %v2791 = vlaneseq
        %v2792 = vshrl.u32 %v2791, 7
        %v2793 = vsub.s32 0, %v2792
        %v2794 = vrot.slane %v2789, %v2793
        %v2795 = vlaneseq
        %v2796 = vshrl.u32 %v2795, 7
        %v2797 = vsub.s32 1, %v2796
        %v2798 = vrot.slane %v2789, %v2797
        %v2801 = vand.u32 %v2756, 4294901760
        %2802 = vmatprep.subr.mxu0 %v2801
        %v2803 = vand.u32 %v2755, 4294901760
        %2804 = vmatpush1.msra.mxu0 %v2803
        %v2805 = vand.u32 %v2754, 4294901760
        %2806 = vmatprep.subr.mxu0 %v2805
        %v2807 = vand.u32 %v2753, 4294901760
        %2808 = vmatpush1.msra.mxu0 %v2807
        %v2809 = vand.u32 %v2752, 4294901760
        %2810 = vmatprep.subr.mxu0 %v2809
        %v2811 = vand.u32 %v2751, 4294901760
        %2812 = vmatpush1.msra.mxu0 %v2811
        %v2813 = vand.u32 %v2750, 4294901760
        %2814 = vmatprep.subr.mxu0 %v2813
        %v2815 = vand.u32 %v2749, 4294901760
        %2816 = vmatpush1.msra.mxu0 %v2815
        %v2817 = vand.u32 %v2748, 4294901760
        %2818 = vmatprep.subr.mxu0 %v2817
        %v2819 = vand.u32 %v2747, 4294901760
        %2820 = vmatpush1.msra.mxu0 %v2819
        %v2821 = vand.u32 %v2746, 4294901760
        %2822 = vmatprep.subr.mxu0 %v2821
        %v2823 = vand.u32 %v2745, 4294901760
        %2824 = vmatpush1.msra.mxu0 %v2823
        %v2825 = vand.u32 %v2744, 4294901760
        %2826 = vmatprep.subr.mxu0 %v2825
        %v2827 = vand.u32 %v2743, 4294901760
        %2828 = vmatpush1.msra.mxu0 %v2827
        %v2829 = vand.u32 %v2742, 4294901760
        %2830 = vmatprep.subr.mxu0 %v2829
        %v2831 = vand.u32 %v2741, 4294901760
        %2832 = vmatpush1.msra.mxu0 %v2831
        %v2833 = vand.u32 %v2740, 4294901760
        %2834 = vmatprep.subr.mxu0 %v2833
        %v2835 = vand.u32 %v2739, 4294901760
        %2836 = vmatpush1.msra.mxu0 %v2835
        %v2837 = vand.u32 %v2738, 4294901760
        %2838 = vmatprep.subr.mxu0 %v2837
        %v2839 = vand.u32 %v2737, 4294901760
        %2840 = vmatpush1.msra.mxu0 %v2839
        %v2841 = vand.u32 %v2736, 4294901760
        %2842 = vmatprep.subr.mxu0 %v2841
        %v2843 = vand.u32 %v2735, 4294901760
        %2844 = vmatpush1.msra.mxu0 %v2843
        %v2845 = vand.u32 %v2734, 4294901760
        %2846 = vmatprep.subr.mxu0 %v2845
        %v2847 = vand.u32 %v2733, 4294901760
        %2848 = vmatpush1.msra.mxu0 %v2847
        %v2849 = vand.u32 %v2732, 4294901760
        %2850 = vmatprep.subr.mxu0 %v2849
        %v2851 = vand.u32 %v2731, 4294901760
        %2852 = vmatpush1.msra.mxu0 %v2851
        %v2853 = vand.u32 %v2730, 4294901760
        %2854 = vmatprep.subr.mxu0 %v2853
        %v2855 = vand.u32 %v2729, 4294901760
        %2856 = vmatpush1.msra.mxu0 %v2855
        %v2857 = vand.u32 %v2728, 4294901760
        %2858 = vmatprep.subr.mxu0 %v2857
        %v2859 = vand.u32 %v2727, 4294901760
        %2860 = vmatpush1.msra.mxu0 %v2859
        %v2861 = vand.u32 %v2726, 4294901760
        %2862 = vmatprep.subr.mxu0 %v2861
        %v2863 = vand.u32 %v2725, 4294901760
        %2864 = vmatpush1.msra.mxu0 %v2863
        %v2865 = vand.u32 %v2788, 4294901760
        %2866 = vmatprep.subr.mxu0 %v2865
        %v2867 = vand.u32 %v2787, 4294901760
        %2868 = vmatpush2.msra.mxu0 %v2867
        %v2869 = vand.u32 %v2786, 4294901760
        %2870 = vmatprep.subr.mxu0 %v2869
        %v2871 = vand.u32 %v2785, 4294901760
        %2872 = vmatpush2.msra.mxu0 %v2871
        %v2873 = vand.u32 %v2784, 4294901760
        %2874 = vmatprep.subr.mxu0 %v2873
        %v2875 = vand.u32 %v2783, 4294901760
        %2876 = vmatpush2.msra.mxu0 %v2875
        %v2877 = vand.u32 %v2782, 4294901760
        %2878 = vmatprep.subr.mxu0 %v2877
        %v2879 = vand.u32 %v2781, 4294901760
        %2880 = vmatpush2.msra.mxu0 %v2879
        %v2881 = vand.u32 %v2780, 4294901760
        %2882 = vmatprep.subr.mxu0 %v2881
        %v2883 = vand.u32 %v2779, 4294901760
        %2884 = vmatpush2.msra.mxu0 %v2883
        %v2885 = vand.u32 %v2778, 4294901760
        %2886 = vmatprep.subr.mxu0 %v2885
        %v2887 = vand.u32 %v2777, 4294901760
        %2888 = vmatpush2.msra.mxu0 %v2887
        %v2889 = vand.u32 %v2776, 4294901760
        %2890 = vmatprep.subr.mxu0 %v2889
        %v2891 = vand.u32 %v2775, 4294901760
        %2892 = vmatpush2.msra.mxu0 %v2891
        %v2893 = vand.u32 %v2774, 4294901760
        %2894 = vmatprep.subr.mxu0 %v2893
        %v2895 = vand.u32 %v2773, 4294901760
        %2896 = vmatpush2.msra.mxu0 %v2895
        %v2897 = vand.u32 %v2772, 4294901760
        %2898 = vmatprep.subr.mxu0 %v2897
        %v2899 = vand.u32 %v2771, 4294901760
        %2900 = vmatpush2.msra.mxu0 %v2899
        %v2901 = vand.u32 %v2770, 4294901760
        %2902 = vmatprep.subr.mxu0 %v2901
        %v2903 = vand.u32 %v2769, 4294901760
        %2904 = vmatpush2.msra.mxu0 %v2903
        %v2905 = vand.u32 %v2768, 4294901760
        %2906 = vmatprep.subr.mxu0 %v2905
        %v2907 = vand.u32 %v2767, 4294901760
        %2908 = vmatpush2.msra.mxu0 %v2907
        %v2909 = vand.u32 %v2766, 4294901760
        %2910 = vmatprep.subr.mxu0 %v2909
        %v2911 = vand.u32 %v2765, 4294901760
        %2912 = vmatpush2.msra.mxu0 %v2911
        %v2913 = vand.u32 %v2764, 4294901760
        %2914 = vmatprep.subr.mxu0 %v2913
        %v2915 = vand.u32 %v2763, 4294901760
        %2916 = vmatpush2.msra.mxu0 %v2915
        %v2917 = vand.u32 %v2762, 4294901760
        %2918 = vmatprep.subr.mxu0 %v2917
        %v2919 = vand.u32 %v2761, 4294901760
        %2920 = vmatpush2.msra.mxu0 %v2919
        %v2921 = vand.u32 %v2760, 4294901760
        %2922 = vmatprep.subr.mxu0 %v2921
        %v2923 = vand.u32 %v2759, 4294901760
        %2924 = vmatpush2.msra.mxu0 %v2923
        %v2925 = vand.u32 %v2758, 4294901760
        %2926 = vmatprep.subr.mxu0 %v2925
        %v2927 = vand.u32 %v2757, 4294901760
        %2928 = vmatpush2.msra.mxu0 %v2927
        %v2929 = vand.u32 %v2722, 4294901760
        %v2930 = vsub.f32 %v2722, %v2929
        %v2931 = vand.u32 %v2930, 4294901760
        %v2932 = vsub.f32 %v2930, %v2931
        %v2933 = vand.u32 %v2932, 4294901760
        %2934 = vmatprep.mubr.f32.mxu0 %v2933
        %v2935 = vand.u32 %v2721, 4294901760
        %v2936 = vsub.f32 %v2721, %v2935
        %v2937 = vand.u32 %v2936, 4294901760
        %v2938 = vsub.f32 %v2936, %v2937
        %v2939 = vand.u32 %v2938, 4294901760
        %2940 = vmatmul.mubr.f32.gmra.mxu0 %v2939
        %v2941 = vpop.f32.mrf.mxu0
        %v2942 = vadd.f32 %v2794, %v2941
        %v2943 = vpop.f32.mrf.mxu0
        %v2944 = vadd.f32 %v2798, %v2943
        %v2945 = vand.u32 %v2724, 4294901760
        %v2946 = vsub.f32 %v2724, %v2945
        %v2947 = vand.u32 %v2946, 4294901760
        %v2948 = vsub.f32 %v2946, %v2947
        %v2949 = vand.u32 %v2948, 4294901760
        %2950 = vmatprep.mubr.f32.mxu0 %v2949
        %v2951 = vand.u32 %v2723, 4294901760
        %v2952 = vsub.f32 %v2723, %v2951
        %v2953 = vand.u32 %v2952, 4294901760
        %v2954 = vsub.f32 %v2952, %v2953
        %v2955 = vand.u32 %v2954, 4294901760
        %2956 = vmatmul.mubr.f32.gmra.mxu0 %v2955
        %v2957 = vpop.f32.mrf.mxu0
        %v2958 = vadd.f32 %v2794, %v2957
        %v2959 = vpop.f32.mrf.mxu0
        %v2960 = vadd.f32 %v2798, %v2959
        %2961 = vdwg.mxu0
        %v2962 = vand.u32 %v2756, 4294901760
        %v2963 = vsub.f32 %v2756, %v2962
        %v2964 = vand.u32 %v2963, 4294901760
        %v2965 = vsub.f32 %v2963, %v2964
        %v2966 = vand.u32 %v2965, 4294901760
        %2967 = vmatprep.subr.mxu0 %v2966
        %v2968 = vand.u32 %v2755, 4294901760
        %v2969 = vsub.f32 %v2755, %v2968
        %v2970 = vand.u32 %v2969, 4294901760
        %v2971 = vsub.f32 %v2969, %v2970
        %v2972 = vand.u32 %v2971, 4294901760
        %2973 = vmatpush1.msra.mxu0 %v2972
        %v2974 = vand.u32 %v2754, 4294901760
        %v2975 = vsub.f32 %v2754, %v2974
        %v2976 = vand.u32 %v2975, 4294901760
        %v2977 = vsub.f32 %v2975, %v2976
        %v2978 = vand.u32 %v2977, 4294901760
        %2979 = vmatprep.subr.mxu0 %v2978
        %v2980 = vand.u32 %v2753, 4294901760
        %v2981 = vsub.f32 %v2753, %v2980
        %v2982 = vand.u32 %v2981, 4294901760
        %v2983 = vsub.f32 %v2981, %v2982
        %v2984 = vand.u32 %v2983, 4294901760
        %2985 = vmatpush1.msra.mxu0 %v2984
        %v2986 = vand.u32 %v2752, 4294901760
        %v2987 = vsub.f32 %v2752, %v2986
        %v2988 = vand.u32 %v2987, 4294901760
        %v2989 = vsub.f32 %v2987, %v2988
        %v2990 = vand.u32 %v2989, 4294901760
        %2991 = vmatprep.subr.mxu0 %v2990
        %v2992 = vand.u32 %v2751, 4294901760
        %v2993 = vsub.f32 %v2751, %v2992
        %v2994 = vand.u32 %v2993, 4294901760
        %v2995 = vsub.f32 %v2993, %v2994
        %v2996 = vand.u32 %v2995, 4294901760
        %2997 = vmatpush1.msra.mxu0 %v2996
        %v2998 = vand.u32 %v2750, 4294901760
        %v2999 = vsub.f32 %v2750, %v2998
        %v3000 = vand.u32 %v2999, 4294901760
        %v3001 = vsub.f32 %v2999, %v3000
        %v3002 = vand.u32 %v3001, 4294901760
        %3003 = vmatprep.subr.mxu0 %v3002
        %v3004 = vand.u32 %v2749, 4294901760
        %v3005 = vsub.f32 %v2749, %v3004
        %v3006 = vand.u32 %v3005, 4294901760
        %v3007 = vsub.f32 %v3005, %v3006
        %v3008 = vand.u32 %v3007, 4294901760
        %3009 = vmatpush1.msra.mxu0 %v3008
        %v3010 = vand.u32 %v2748, 4294901760
        %v3011 = vsub.f32 %v2748, %v3010
        %v3012 = vand.u32 %v3011, 4294901760
        %v3013 = vsub.f32 %v3011, %v3012
        %v3014 = vand.u32 %v3013, 4294901760
        %3015 = vmatprep.subr.mxu0 %v3014
        %v3016 = vand.u32 %v2747, 4294901760
        %v3017 = vsub.f32 %v2747, %v3016
        %v3018 = vand.u32 %v3017, 4294901760
        %v3019 = vsub.f32 %v3017, %v3018
        %v3020 = vand.u32 %v3019, 4294901760
        %3021 = vmatpush1.msra.mxu0 %v3020
        %v3022 = vand.u32 %v2746, 4294901760
        %v3023 = vsub.f32 %v2746, %v3022
        %v3024 = vand.u32 %v3023, 4294901760
        %v3025 = vsub.f32 %v3023, %v3024
        %v3026 = vand.u32 %v3025, 4294901760
        %3027 = vmatprep.subr.mxu0 %v3026
        %v3028 = vand.u32 %v2745, 4294901760
        %v3029 = vsub.f32 %v2745, %v3028
        %v3030 = vand.u32 %v3029, 4294901760
        %v3031 = vsub.f32 %v3029, %v3030
        %v3032 = vand.u32 %v3031, 4294901760
        %3033 = vmatpush1.msra.mxu0 %v3032
        %v3034 = vand.u32 %v2744, 4294901760
        %v3035 = vsub.f32 %v2744, %v3034
        %v3036 = vand.u32 %v3035, 4294901760
        %v3037 = vsub.f32 %v3035, %v3036
        %v3038 = vand.u32 %v3037, 4294901760
        %3039 = vmatprep.subr.mxu0 %v3038
        %v3040 = vand.u32 %v2743, 4294901760
        %v3041 = vsub.f32 %v2743, %v3040
        %v3042 = vand.u32 %v3041, 4294901760
        %v3043 = vsub.f32 %v3041, %v3042
        %v3044 = vand.u32 %v3043, 4294901760
        %3045 = vmatpush1.msra.mxu0 %v3044
        %v3046 = vand.u32 %v2742, 4294901760
        %v3047 = vsub.f32 %v2742, %v3046
        %v3048 = vand.u32 %v3047, 4294901760
        %v3049 = vsub.f32 %v3047, %v3048
        %v3050 = vand.u32 %v3049, 4294901760
        %3051 = vmatprep.subr.mxu0 %v3050
        %v3052 = vand.u32 %v2741, 4294901760
        %v3053 = vsub.f32 %v2741, %v3052
        %v3054 = vand.u32 %v3053, 4294901760
        %v3055 = vsub.f32 %v3053, %v3054
        %v3056 = vand.u32 %v3055, 4294901760
        %3057 = vmatpush1.msra.mxu0 %v3056
        %v3058 = vand.u32 %v2740, 4294901760
        %v3059 = vsub.f32 %v2740, %v3058
        %v3060 = vand.u32 %v3059, 4294901760
        %v3061 = vsub.f32 %v3059, %v3060
        %v3062 = vand.u32 %v3061, 4294901760
        %3063 = vmatprep.subr.mxu0 %v3062
        %v3064 = vand.u32 %v2739, 4294901760
        %v3065 = vsub.f32 %v2739, %v3064
        %v3066 = vand.u32 %v3065, 4294901760
        %v3067 = vsub.f32 %v3065, %v3066
        %v3068 = vand.u32 %v3067, 4294901760
        %3069 = vmatpush1.msra.mxu0 %v3068
        %v3070 = vand.u32 %v2738, 4294901760
        %v3071 = vsub.f32 %v2738, %v3070
        %v3072 = vand.u32 %v3071, 4294901760
        %v3073 = vsub.f32 %v3071, %v3072
        %v3074 = vand.u32 %v3073, 4294901760
        %3075 = vmatprep.subr.mxu0 %v3074
        %v3076 = vand.u32 %v2737, 4294901760
        %v3077 = vsub.f32 %v2737, %v3076
        %v3078 = vand.u32 %v3077, 4294901760
        %v3079 = vsub.f32 %v3077, %v3078
        %v3080 = vand.u32 %v3079, 4294901760
        %3081 = vmatpush1.msra.mxu0 %v3080
        %v3082 = vand.u32 %v2736, 4294901760
        %v3083 = vsub.f32 %v2736, %v3082
        %v3084 = vand.u32 %v3083, 4294901760
        %v3085 = vsub.f32 %v3083, %v3084
        %v3086 = vand.u32 %v3085, 4294901760
        %3087 = vmatprep.subr.mxu0 %v3086
        %v3088 = vand.u32 %v2735, 4294901760
        %v3089 = vsub.f32 %v2735, %v3088
        %v3090 = vand.u32 %v3089, 4294901760
        %v3091 = vsub.f32 %v3089, %v3090
        %v3092 = vand.u32 %v3091, 4294901760
        %3093 = vmatpush1.msra.mxu0 %v3092
        %v3094 = vand.u32 %v2734, 4294901760
        %v3095 = vsub.f32 %v2734, %v3094
        %v3096 = vand.u32 %v3095, 4294901760
        %v3097 = vsub.f32 %v3095, %v3096
        %v3098 = vand.u32 %v3097, 4294901760
        %3099 = vmatprep.subr.mxu0 %v3098
        %v3100 = vand.u32 %v2733, 4294901760
        %v3101 = vsub.f32 %v2733, %v3100
        %v3102 = vand.u32 %v3101, 4294901760
        %v3103 = vsub.f32 %v3101, %v3102
        %v3104 = vand.u32 %v3103, 4294901760
        %3105 = vmatpush1.msra.mxu0 %v3104
        %v3106 = vand.u32 %v2732, 4294901760
        %v3107 = vsub.f32 %v2732, %v3106
        %v3108 = vand.u32 %v3107, 4294901760
        %v3109 = vsub.f32 %v3107, %v3108
        %v3110 = vand.u32 %v3109, 4294901760
        %3111 = vmatprep.subr.mxu0 %v3110
        %v3112 = vand.u32 %v2731, 4294901760
        %v3113 = vsub.f32 %v2731, %v3112
        %v3114 = vand.u32 %v3113, 4294901760
        %v3115 = vsub.f32 %v3113, %v3114
        %v3116 = vand.u32 %v3115, 4294901760
        %3117 = vmatpush1.msra.mxu0 %v3116
        %v3118 = vand.u32 %v2730, 4294901760
        %v3119 = vsub.f32 %v2730, %v3118
        %v3120 = vand.u32 %v3119, 4294901760
        %v3121 = vsub.f32 %v3119, %v3120
        %v3122 = vand.u32 %v3121, 4294901760
        %3123 = vmatprep.subr.mxu0 %v3122
        %v3124 = vand.u32 %v2729, 4294901760
        %v3125 = vsub.f32 %v2729, %v3124
        %v3126 = vand.u32 %v3125, 4294901760
        %v3127 = vsub.f32 %v3125, %v3126
        %v3128 = vand.u32 %v3127, 4294901760
        %3129 = vmatpush1.msra.mxu0 %v3128
        %v3130 = vand.u32 %v2728, 4294901760
        %v3131 = vsub.f32 %v2728, %v3130
        %v3132 = vand.u32 %v3131, 4294901760
        %v3133 = vsub.f32 %v3131, %v3132
        %v3134 = vand.u32 %v3133, 4294901760
        %3135 = vmatprep.subr.mxu0 %v3134
        %v3136 = vand.u32 %v2727, 4294901760
        %v3137 = vsub.f32 %v2727, %v3136
        %v3138 = vand.u32 %v3137, 4294901760
        %v3139 = vsub.f32 %v3137, %v3138
        %v3140 = vand.u32 %v3139, 4294901760
        %3141 = vmatpush1.msra.mxu0 %v3140
        %v3142 = vand.u32 %v2726, 4294901760
        %v3143 = vsub.f32 %v2726, %v3142
        %v3144 = vand.u32 %v3143, 4294901760
        %v3145 = vsub.f32 %v3143, %v3144
        %v3146 = vand.u32 %v3145, 4294901760
        %3147 = vmatprep.subr.mxu0 %v3146
        %v3148 = vand.u32 %v2725, 4294901760
        %v3149 = vsub.f32 %v2725, %v3148
        %v3150 = vand.u32 %v3149, 4294901760
        %v3151 = vsub.f32 %v3149, %v3150
        %v3152 = vand.u32 %v3151, 4294901760
        %3153 = vmatpush1.msra.mxu0 %v3152
        %v3154 = vand.u32 %v2788, 4294901760
        %v3155 = vsub.f32 %v2788, %v3154
        %v3156 = vand.u32 %v3155, 4294901760
        %v3157 = vsub.f32 %v3155, %v3156
        %v3158 = vand.u32 %v3157, 4294901760
        %3159 = vmatprep.subr.mxu0 %v3158
        %v3160 = vand.u32 %v2787, 4294901760
        %v3161 = vsub.f32 %v2787, %v3160
        %v3162 = vand.u32 %v3161, 4294901760
        %v3163 = vsub.f32 %v3161, %v3162
        %v3164 = vand.u32 %v3163, 4294901760
        %3165 = vmatpush2.msra.mxu0 %v3164
        %v3166 = vand.u32 %v2786, 4294901760
        %v3167 = vsub.f32 %v2786, %v3166
        %v3168 = vand.u32 %v3167, 4294901760
        %v3169 = vsub.f32 %v3167, %v3168
        %v3170 = vand.u32 %v3169, 4294901760
        %3171 = vmatprep.subr.mxu0 %v3170
        %v3172 = vand.u32 %v2785, 4294901760
        %v3173 = vsub.f32 %v2785, %v3172
        %v3174 = vand.u32 %v3173, 4294901760
        %v3175 = vsub.f32 %v3173, %v3174
        %v3176 = vand.u32 %v3175, 4294901760
        %3177 = vmatpush2.msra.mxu0 %v3176
        %v3178 = vand.u32 %v2784, 4294901760
        %v3179 = vsub.f32 %v2784, %v3178
        %v3180 = vand.u32 %v3179, 4294901760
        %v3181 = vsub.f32 %v3179, %v3180
        %v3182 = vand.u32 %v3181, 4294901760
        %3183 = vmatprep.subr.mxu0 %v3182
        %v3184 = vand.u32 %v2783, 4294901760
        %v3185 = vsub.f32 %v2783, %v3184
        %v3186 = vand.u32 %v3185, 4294901760
        %v3187 = vsub.f32 %v3185, %v3186
        %v3188 = vand.u32 %v3187, 4294901760
        %3189 = vmatpush2.msra.mxu0 %v3188
        %v3190 = vand.u32 %v2782, 4294901760
        %v3191 = vsub.f32 %v2782, %v3190
        %v3192 = vand.u32 %v3191, 4294901760
        %v3193 = vsub.f32 %v3191, %v3192
        %v3194 = vand.u32 %v3193, 4294901760
        %3195 = vmatprep.subr.mxu0 %v3194
        %v3196 = vand.u32 %v2781, 4294901760
        %v3197 = vsub.f32 %v2781, %v3196
        %v3198 = vand.u32 %v3197, 4294901760
        %v3199 = vsub.f32 %v3197, %v3198
        %v3200 = vand.u32 %v3199, 4294901760
        %3201 = vmatpush2.msra.mxu0 %v3200
        %v3202 = vand.u32 %v2780, 4294901760
        %v3203 = vsub.f32 %v2780, %v3202
        %v3204 = vand.u32 %v3203, 4294901760
        %v3205 = vsub.f32 %v3203, %v3204
        %v3206 = vand.u32 %v3205, 4294901760
        %3207 = vmatprep.subr.mxu0 %v3206
        %v3208 = vand.u32 %v2779, 4294901760
        %v3209 = vsub.f32 %v2779, %v3208
        %v3210 = vand.u32 %v3209, 4294901760
        %v3211 = vsub.f32 %v3209, %v3210
        %v3212 = vand.u32 %v3211, 4294901760
        %3213 = vmatpush2.msra.mxu0 %v3212
        %v3214 = vand.u32 %v2778, 4294901760
        %v3215 = vsub.f32 %v2778, %v3214
        %v3216 = vand.u32 %v3215, 4294901760
        %v3217 = vsub.f32 %v3215, %v3216
        %v3218 = vand.u32 %v3217, 4294901760
        %3219 = vmatprep.subr.mxu0 %v3218
        %v3220 = vand.u32 %v2777, 4294901760
        %v3221 = vsub.f32 %v2777, %v3220
        %v3222 = vand.u32 %v3221, 4294901760
        %v3223 = vsub.f32 %v3221, %v3222
        %v3224 = vand.u32 %v3223, 4294901760
        %3225 = vmatpush2.msra.mxu0 %v3224
        %v3226 = vand.u32 %v2776, 4294901760
        %v3227 = vsub.f32 %v2776, %v3226
        %v3228 = vand.u32 %v3227, 4294901760
        %v3229 = vsub.f32 %v3227, %v3228
        %v3230 = vand.u32 %v3229, 4294901760
        %3231 = vmatprep.subr.mxu0 %v3230
        %v3232 = vand.u32 %v2775, 4294901760
        %v3233 = vsub.f32 %v2775, %v3232
        %v3234 = vand.u32 %v3233, 4294901760
        %v3235 = vsub.f32 %v3233, %v3234
        %v3236 = vand.u32 %v3235, 4294901760
        %3237 = vmatpush2.msra.mxu0 %v3236
        %v3238 = vand.u32 %v2774, 4294901760
        %v3239 = vsub.f32 %v2774, %v3238
        %v3240 = vand.u32 %v3239, 4294901760
        %v3241 = vsub.f32 %v3239, %v3240
        %v3242 = vand.u32 %v3241, 4294901760
        %3243 = vmatprep.subr.mxu0 %v3242
        %v3244 = vand.u32 %v2773, 4294901760
        %v3245 = vsub.f32 %v2773, %v3244
        %v3246 = vand.u32 %v3245, 4294901760
        %v3247 = vsub.f32 %v3245, %v3246
        %v3248 = vand.u32 %v3247, 4294901760
        %3249 = vmatpush2.msra.mxu0 %v3248
        %v3250 = vand.u32 %v2772, 4294901760
        %v3251 = vsub.f32 %v2772, %v3250
        %v3252 = vand.u32 %v3251, 4294901760
        %v3253 = vsub.f32 %v3251, %v3252
        %v3254 = vand.u32 %v3253, 4294901760
        %3255 = vmatprep.subr.mxu0 %v3254
        %v3256 = vand.u32 %v2771, 4294901760
        %v3257 = vsub.f32 %v2771, %v3256
        %v3258 = vand.u32 %v3257, 4294901760
        %v3259 = vsub.f32 %v3257, %v3258
        %v3260 = vand.u32 %v3259, 4294901760
        %3261 = vmatpush2.msra.mxu0 %v3260
        %v3262 = vand.u32 %v2770, 4294901760
        %v3263 = vsub.f32 %v2770, %v3262
        %v3264 = vand.u32 %v3263, 4294901760
        %v3265 = vsub.f32 %v3263, %v3264
        %v3266 = vand.u32 %v3265, 4294901760
        %3267 = vmatprep.subr.mxu0 %v3266
        %v3268 = vand.u32 %v2769, 4294901760
        %v3269 = vsub.f32 %v2769, %v3268
        %v3270 = vand.u32 %v3269, 4294901760
        %v3271 = vsub.f32 %v3269, %v3270
        %v3272 = vand.u32 %v3271, 4294901760
        %3273 = vmatpush2.msra.mxu0 %v3272
        %v3274 = vand.u32 %v2768, 4294901760
        %v3275 = vsub.f32 %v2768, %v3274
        %v3276 = vand.u32 %v3275, 4294901760
        %v3277 = vsub.f32 %v3275, %v3276
        %v3278 = vand.u32 %v3277, 4294901760
        %3279 = vmatprep.subr.mxu0 %v3278
        %v3280 = vand.u32 %v2767, 4294901760
        %v3281 = vsub.f32 %v2767, %v3280
        %v3282 = vand.u32 %v3281, 4294901760
        %v3283 = vsub.f32 %v3281, %v3282
        %v3284 = vand.u32 %v3283, 4294901760
        %3285 = vmatpush2.msra.mxu0 %v3284
        %v3286 = vand.u32 %v2766, 4294901760
        %v3287 = vsub.f32 %v2766, %v3286
        %v3288 = vand.u32 %v3287, 4294901760
        %v3289 = vsub.f32 %v3287, %v3288
        %v3290 = vand.u32 %v3289, 4294901760
        %3291 = vmatprep.subr.mxu0 %v3290
        %v3292 = vand.u32 %v2765, 4294901760
        %v3293 = vsub.f32 %v2765, %v3292
        %v3294 = vand.u32 %v3293, 4294901760
        %v3295 = vsub.f32 %v3293, %v3294
        %v3296 = vand.u32 %v3295, 4294901760
        %3297 = vmatpush2.msra.mxu0 %v3296
        %v3298 = vand.u32 %v2764, 4294901760
        %v3299 = vsub.f32 %v2764, %v3298
        %v3300 = vand.u32 %v3299, 4294901760
        %v3301 = vsub.f32 %v3299, %v3300
        %v3302 = vand.u32 %v3301, 4294901760
        %3303 = vmatprep.subr.mxu0 %v3302
        %v3304 = vand.u32 %v2763, 4294901760
        %v3305 = vsub.f32 %v2763, %v3304
        %v3306 = vand.u32 %v3305, 4294901760
        %v3307 = vsub.f32 %v3305, %v3306
        %v3308 = vand.u32 %v3307, 4294901760
        %3309 = vmatpush2.msra.mxu0 %v3308
        %v3310 = vand.u32 %v2762, 4294901760
        %v3311 = vsub.f32 %v2762, %v3310
        %v3312 = vand.u32 %v3311, 4294901760
        %v3313 = vsub.f32 %v3311, %v3312
        %v3314 = vand.u32 %v3313, 4294901760
        %3315 = vmatprep.subr.mxu0 %v3314
        %v3316 = vand.u32 %v2761, 4294901760
        %v3317 = vsub.f32 %v2761, %v3316
        %v3318 = vand.u32 %v3317, 4294901760
        %v3319 = vsub.f32 %v3317, %v3318
        %v3320 = vand.u32 %v3319, 4294901760
        %3321 = vmatpush2.msra.mxu0 %v3320
        %v3322 = vand.u32 %v2760, 4294901760
        %v3323 = vsub.f32 %v2760, %v3322
        %v3324 = vand.u32 %v3323, 4294901760
        %v3325 = vsub.f32 %v3323, %v3324
        %v3326 = vand.u32 %v3325, 4294901760
        %3327 = vmatprep.subr.mxu0 %v3326
        %v3328 = vand.u32 %v2759, 4294901760
        %v3329 = vsub.f32 %v2759, %v3328
        %v3330 = vand.u32 %v3329, 4294901760
        %v3331 = vsub.f32 %v3329, %v3330
        %v3332 = vand.u32 %v3331, 4294901760
        %3333 = vmatpush2.msra.mxu0 %v3332
        %v3334 = vand.u32 %v2758, 4294901760
        %v3335 = vsub.f32 %v2758, %v3334
        %v3336 = vand.u32 %v3335, 4294901760
        %v3337 = vsub.f32 %v3335, %v3336
        %v3338 = vand.u32 %v3337, 4294901760
        %3339 = vmatprep.subr.mxu0 %v3338
        %v3340 = vand.u32 %v2757, 4294901760
        %v3341 = vsub.f32 %v2757, %v3340
        %v3342 = vand.u32 %v3341, 4294901760
        %v3343 = vsub.f32 %v3341, %v3342
        %v3344 = vand.u32 %v3343, 4294901760
        %3345 = vmatpush2.msra.mxu0 %v3344
        %v3346 = vand.u32 %v2722, 4294901760
        %3347 = vmatprep.mubr.f32.mxu0 %v3346
        %v3348 = vand.u32 %v2721, 4294901760
        %3349 = vmatmul.mubr.f32.gmra.mxu0 %v3348
        %v3350 = vpop.f32.mrf.mxu0
        %v3351 = vadd.f32 %v2942, %v3350
        %v3352 = vpop.f32.mrf.mxu0
        %v3353 = vadd.f32 %v2944, %v3352
        %v3354 = vand.u32 %v2724, 4294901760
        %3355 = vmatprep.mubr.f32.mxu0 %v3354
        %v3356 = vand.u32 %v2723, 4294901760
        %3357 = vmatmul.mubr.f32.gmra.mxu0 %v3356
        %v3358 = vpop.f32.mrf.mxu0
        %v3359 = vadd.f32 %v2958, %v3358
        %v3360 = vpop.f32.mrf.mxu0
        %v3361 = vadd.f32 %v2960, %v3360
        %3362 = vdwg.mxu0
        %v3363 = vand.u32 %v2756, 4294901760
        %v3364 = vsub.f32 %v2756, %v3363
        %3365 = vmatprep.subr.mxu0 %v3364
        %v3366 = vand.u32 %v2755, 4294901760
        %v3367 = vsub.f32 %v2755, %v3366
        %3368 = vmatpush1.msra.mxu0 %v3367
        %v3369 = vand.u32 %v2754, 4294901760
        %v3370 = vsub.f32 %v2754, %v3369
        %3371 = vmatprep.subr.mxu0 %v3370
        %v3372 = vand.u32 %v2753, 4294901760
        %v3373 = vsub.f32 %v2753, %v3372
        %3374 = vmatpush1.msra.mxu0 %v3373
        %v3375 = vand.u32 %v2752, 4294901760
        %v3376 = vsub.f32 %v2752, %v3375
        %3377 = vmatprep.subr.mxu0 %v3376
        %v3378 = vand.u32 %v2751, 4294901760
        %v3379 = vsub.f32 %v2751, %v3378
        %3380 = vmatpush1.msra.mxu0 %v3379
        %v3381 = vand.u32 %v2750, 4294901760
        %v3382 = vsub.f32 %v2750, %v3381
        %3383 = vmatprep.subr.mxu0 %v3382
        %v3384 = vand.u32 %v2749, 4294901760
        %v3385 = vsub.f32 %v2749, %v3384
        %3386 = vmatpush1.msra.mxu0 %v3385
        %v3387 = vand.u32 %v2748, 4294901760
        %v3388 = vsub.f32 %v2748, %v3387
        %3389 = vmatprep.subr.mxu0 %v3388
        %v3390 = vand.u32 %v2747, 4294901760
        %v3391 = vsub.f32 %v2747, %v3390
        %3392 = vmatpush1.msra.mxu0 %v3391
        %v3393 = vand.u32 %v2746, 4294901760
        %v3394 = vsub.f32 %v2746, %v3393
        %3395 = vmatprep.subr.mxu0 %v3394
        %v3396 = vand.u32 %v2745, 4294901760
        %v3397 = vsub.f32 %v2745, %v3396
        %3398 = vmatpush1.msra.mxu0 %v3397
        %v3399 = vand.u32 %v2744, 4294901760
        %v3400 = vsub.f32 %v2744, %v3399
        %3401 = vmatprep.subr.mxu0 %v3400
        %v3402 = vand.u32 %v2743, 4294901760
        %v3403 = vsub.f32 %v2743, %v3402
        %3404 = vmatpush1.msra.mxu0 %v3403
        %v3405 = vand.u32 %v2742, 4294901760
        %v3406 = vsub.f32 %v2742, %v3405
        %3407 = vmatprep.subr.mxu0 %v3406
        %v3408 = vand.u32 %v2741, 4294901760
        %v3409 = vsub.f32 %v2741, %v3408
        %3410 = vmatpush1.msra.mxu0 %v3409
        %v3411 = vand.u32 %v2740, 4294901760
        %v3412 = vsub.f32 %v2740, %v3411
        %3413 = vmatprep.subr.mxu0 %v3412
        %v3414 = vand.u32 %v2739, 4294901760
        %v3415 = vsub.f32 %v2739, %v3414
        %3416 = vmatpush1.msra.mxu0 %v3415
        %v3417 = vand.u32 %v2738, 4294901760
        %v3418 = vsub.f32 %v2738, %v3417
        %3419 = vmatprep.subr.mxu0 %v3418
        %v3420 = vand.u32 %v2737, 4294901760
        %v3421 = vsub.f32 %v2737, %v3420
        %3422 = vmatpush1.msra.mxu0 %v3421
        %v3423 = vand.u32 %v2736, 4294901760
        %v3424 = vsub.f32 %v2736, %v3423
        %3425 = vmatprep.subr.mxu0 %v3424
        %v3426 = vand.u32 %v2735, 4294901760
        %v3427 = vsub.f32 %v2735, %v3426
        %3428 = vmatpush1.msra.mxu0 %v3427
        %v3429 = vand.u32 %v2734, 4294901760
        %v3430 = vsub.f32 %v2734, %v3429
        %3431 = vmatprep.subr.mxu0 %v3430
        %v3432 = vand.u32 %v2733, 4294901760
        %v3433 = vsub.f32 %v2733, %v3432
        %3434 = vmatpush1.msra.mxu0 %v3433
        %v3435 = vand.u32 %v2732, 4294901760
        %v3436 = vsub.f32 %v2732, %v3435
        %3437 = vmatprep.subr.mxu0 %v3436
        %v3438 = vand.u32 %v2731, 4294901760
        %v3439 = vsub.f32 %v2731, %v3438
        %3440 = vmatpush1.msra.mxu0 %v3439
        %v3441 = vand.u32 %v2730, 4294901760
        %v3442 = vsub.f32 %v2730, %v3441
        %3443 = vmatprep.subr.mxu0 %v3442
        %v3444 = vand.u32 %v2729, 4294901760
        %v3445 = vsub.f32 %v2729, %v3444
        %3446 = vmatpush1.msra.mxu0 %v3445
        %v3447 = vand.u32 %v2728, 4294901760
        %v3448 = vsub.f32 %v2728, %v3447
        %3449 = vmatprep.subr.mxu0 %v3448
        %v3450 = vand.u32 %v2727, 4294901760
        %v3451 = vsub.f32 %v2727, %v3450
        %3452 = vmatpush1.msra.mxu0 %v3451
        %v3453 = vand.u32 %v2726, 4294901760
        %v3454 = vsub.f32 %v2726, %v3453
        %3455 = vmatprep.subr.mxu0 %v3454
        %v3456 = vand.u32 %v2725, 4294901760
        %v3457 = vsub.f32 %v2725, %v3456
        %3458 = vmatpush1.msra.mxu0 %v3457
        %v3459 = vand.u32 %v2788, 4294901760
        %v3460 = vsub.f32 %v2788, %v3459
        %3461 = vmatprep.subr.mxu0 %v3460
        %v3462 = vand.u32 %v2787, 4294901760
        %v3463 = vsub.f32 %v2787, %v3462
        %3464 = vmatpush2.msra.mxu0 %v3463
        %v3465 = vand.u32 %v2786, 4294901760
        %v3466 = vsub.f32 %v2786, %v3465
        %3467 = vmatprep.subr.mxu0 %v3466
        %v3468 = vand.u32 %v2785, 4294901760
        %v3469 = vsub.f32 %v2785, %v3468
        %3470 = vmatpush2.msra.mxu0 %v3469
        %v3471 = vand.u32 %v2784, 4294901760
        %v3472 = vsub.f32 %v2784, %v3471
        %3473 = vmatprep.subr.mxu0 %v3472
        %v3474 = vand.u32 %v2783, 4294901760
        %v3475 = vsub.f32 %v2783, %v3474
        %3476 = vmatpush2.msra.mxu0 %v3475
        %v3477 = vand.u32 %v2782, 4294901760
        %v3478 = vsub.f32 %v2782, %v3477
        %3479 = vmatprep.subr.mxu0 %v3478
        %v3480 = vand.u32 %v2781, 4294901760
        %v3481 = vsub.f32 %v2781, %v3480
        %3482 = vmatpush2.msra.mxu0 %v3481
        %v3483 = vand.u32 %v2780, 4294901760
        %v3484 = vsub.f32 %v2780, %v3483
        %3485 = vmatprep.subr.mxu0 %v3484
        %v3486 = vand.u32 %v2779, 4294901760
        %v3487 = vsub.f32 %v2779, %v3486
        %3488 = vmatpush2.msra.mxu0 %v3487
        %v3489 = vand.u32 %v2778, 4294901760
        %v3490 = vsub.f32 %v2778, %v3489
        %3491 = vmatprep.subr.mxu0 %v3490
        %v3492 = vand.u32 %v2777, 4294901760
        %v3493 = vsub.f32 %v2777, %v3492
        %3494 = vmatpush2.msra.mxu0 %v3493
        %v3495 = vand.u32 %v2776, 4294901760
        %v3496 = vsub.f32 %v2776, %v3495
        %3497 = vmatprep.subr.mxu0 %v3496
        %v3498 = vand.u32 %v2775, 4294901760
        %v3499 = vsub.f32 %v2775, %v3498
        %3500 = vmatpush2.msra.mxu0 %v3499
        %v3501 = vand.u32 %v2774, 4294901760
        %v3502 = vsub.f32 %v2774, %v3501
        %3503 = vmatprep.subr.mxu0 %v3502
        %v3504 = vand.u32 %v2773, 4294901760
        %v3505 = vsub.f32 %v2773, %v3504
        %3506 = vmatpush2.msra.mxu0 %v3505
        %v3507 = vand.u32 %v2772, 4294901760
        %v3508 = vsub.f32 %v2772, %v3507
        %3509 = vmatprep.subr.mxu0 %v3508
        %v3510 = vand.u32 %v2771, 4294901760
        %v3511 = vsub.f32 %v2771, %v3510
        %3512 = vmatpush2.msra.mxu0 %v3511
        %v3513 = vand.u32 %v2770, 4294901760
        %v3514 = vsub.f32 %v2770, %v3513
        %3515 = vmatprep.subr.mxu0 %v3514
        %v3516 = vand.u32 %v2769, 4294901760
        %v3517 = vsub.f32 %v2769, %v3516
        %3518 = vmatpush2.msra.mxu0 %v3517
        %v3519 = vand.u32 %v2768, 4294901760
        %v3520 = vsub.f32 %v2768, %v3519
        %3521 = vmatprep.subr.mxu0 %v3520
        %v3522 = vand.u32 %v2767, 4294901760
        %v3523 = vsub.f32 %v2767, %v3522
        %3524 = vmatpush2.msra.mxu0 %v3523
        %v3525 = vand.u32 %v2766, 4294901760
        %v3526 = vsub.f32 %v2766, %v3525
        %3527 = vmatprep.subr.mxu0 %v3526
        %v3528 = vand.u32 %v2765, 4294901760
        %v3529 = vsub.f32 %v2765, %v3528
        %3530 = vmatpush2.msra.mxu0 %v3529
        %v3531 = vand.u32 %v2764, 4294901760
        %v3532 = vsub.f32 %v2764, %v3531
        %3533 = vmatprep.subr.mxu0 %v3532
        %v3534 = vand.u32 %v2763, 4294901760
        %v3535 = vsub.f32 %v2763, %v3534
        %3536 = vmatpush2.msra.mxu0 %v3535
        %v3537 = vand.u32 %v2762, 4294901760
        %v3538 = vsub.f32 %v2762, %v3537
        %3539 = vmatprep.subr.mxu0 %v3538
        %v3540 = vand.u32 %v2761, 4294901760
        %v3541 = vsub.f32 %v2761, %v3540
        %3542 = vmatpush2.msra.mxu0 %v3541
        %v3543 = vand.u32 %v2760, 4294901760
        %v3544 = vsub.f32 %v2760, %v3543
        %3545 = vmatprep.subr.mxu0 %v3544
        %v3546 = vand.u32 %v2759, 4294901760
        %v3547 = vsub.f32 %v2759, %v3546
        %3548 = vmatpush2.msra.mxu0 %v3547
        %v3549 = vand.u32 %v2758, 4294901760
        %v3550 = vsub.f32 %v2758, %v3549
        %3551 = vmatprep.subr.mxu0 %v3550
        %v3552 = vand.u32 %v2757, 4294901760
        %v3553 = vsub.f32 %v2757, %v3552
        %3554 = vmatpush2.msra.mxu0 %v3553
        %v3555 = vand.u32 %v2722, 4294901760
        %v3556 = vsub.f32 %v2722, %v3555
        %3557 = vmatprep.mubr.f32.mxu0 %v3556
        %v3558 = vand.u32 %v2721, 4294901760
        %v3559 = vsub.f32 %v2721, %v3558
        %3560 = vmatmul.mubr.f32.gmra.mxu0 %v3559
        %v3561 = vpop.f32.mrf.mxu0
        %v3562 = vadd.f32 %v3351, %v3561
        %v3563 = vpop.f32.mrf.mxu0
        %v3564 = vadd.f32 %v3353, %v3563
        %v3565 = vand.u32 %v2724, 4294901760
        %v3566 = vsub.f32 %v2724, %v3565
        %3567 = vmatprep.mubr.f32.mxu0 %v3566
        %v3568 = vand.u32 %v2723, 4294901760
        %v3569 = vsub.f32 %v2723, %v3568
        %3570 = vmatmul.mubr.f32.gmra.mxu0 %v3569
        %v3571 = vpop.f32.mrf.mxu0
        %v3572 = vadd.f32 %v3359, %v3571
        %v3573 = vpop.f32.mrf.mxu0
        %v3574 = vadd.f32 %v3361, %v3573
        %3575 = vdwg.mxu0
        %v3576 = vand.u32 %v2756, 4294901760
        %3577 = vmatprep.subr.mxu0 %v3576
        %v3578 = vand.u32 %v2755, 4294901760
        %3579 = vmatpush1.msra.mxu0 %v3578
        %v3580 = vand.u32 %v2754, 4294901760
        %3581 = vmatprep.subr.mxu0 %v3580
        %v3582 = vand.u32 %v2753, 4294901760
        %3583 = vmatpush1.msra.mxu0 %v3582
        %v3584 = vand.u32 %v2752, 4294901760
        %3585 = vmatprep.subr.mxu0 %v3584
        %v3586 = vand.u32 %v2751, 4294901760
        %3587 = vmatpush1.msra.mxu0 %v3586
        %v3588 = vand.u32 %v2750, 4294901760
        %3589 = vmatprep.subr.mxu0 %v3588
        %v3590 = vand.u32 %v2749, 4294901760
        %3591 = vmatpush1.msra.mxu0 %v3590
        %v3592 = vand.u32 %v2748, 4294901760
        %3593 = vmatprep.subr.mxu0 %v3592
        %v3594 = vand.u32 %v2747, 4294901760
        %3595 = vmatpush1.msra.mxu0 %v3594
        %v3596 = vand.u32 %v2746, 4294901760
        %3597 = vmatprep.subr.mxu0 %v3596
        %v3598 = vand.u32 %v2745, 4294901760
        %3599 = vmatpush1.msra.mxu0 %v3598
        %v3600 = vand.u32 %v2744, 4294901760
        %3601 = vmatprep.subr.mxu0 %v3600
        %v3602 = vand.u32 %v2743, 4294901760
        %3603 = vmatpush1.msra.mxu0 %v3602
        %v3604 = vand.u32 %v2742, 4294901760
        %3605 = vmatprep.subr.mxu0 %v3604
        %v3606 = vand.u32 %v2741, 4294901760
        %3607 = vmatpush1.msra.mxu0 %v3606
        %v3608 = vand.u32 %v2740, 4294901760
        %3609 = vmatprep.subr.mxu0 %v3608
        %v3610 = vand.u32 %v2739, 4294901760
        %3611 = vmatpush1.msra.mxu0 %v3610
        %v3612 = vand.u32 %v2738, 4294901760
        %3613 = vmatprep.subr.mxu0 %v3612
        %v3614 = vand.u32 %v2737, 4294901760
        %3615 = vmatpush1.msra.mxu0 %v3614
        %v3616 = vand.u32 %v2736, 4294901760
        %3617 = vmatprep.subr.mxu0 %v3616
        %v3618 = vand.u32 %v2735, 4294901760
        %3619 = vmatpush1.msra.mxu0 %v3618
        %v3620 = vand.u32 %v2734, 4294901760
        %3621 = vmatprep.subr.mxu0 %v3620
        %v3622 = vand.u32 %v2733, 4294901760
        %3623 = vmatpush1.msra.mxu0 %v3622
        %v3624 = vand.u32 %v2732, 4294901760
        %3625 = vmatprep.subr.mxu0 %v3624
        %v3626 = vand.u32 %v2731, 4294901760
        %3627 = vmatpush1.msra.mxu0 %v3626
        %v3628 = vand.u32 %v2730, 4294901760
        %3629 = vmatprep.subr.mxu0 %v3628
        %v3630 = vand.u32 %v2729, 4294901760
        %3631 = vmatpush1.msra.mxu0 %v3630
        %v3632 = vand.u32 %v2728, 4294901760
        %3633 = vmatprep.subr.mxu0 %v3632
        %v3634 = vand.u32 %v2727, 4294901760
        %3635 = vmatpush1.msra.mxu0 %v3634
        %v3636 = vand.u32 %v2726, 4294901760
        %3637 = vmatprep.subr.mxu0 %v3636
        %v3638 = vand.u32 %v2725, 4294901760
        %3639 = vmatpush1.msra.mxu0 %v3638
        %v3640 = vand.u32 %v2788, 4294901760
        %3641 = vmatprep.subr.mxu0 %v3640
        %v3642 = vand.u32 %v2787, 4294901760
        %3643 = vmatpush2.msra.mxu0 %v3642
        %v3644 = vand.u32 %v2786, 4294901760
        %3645 = vmatprep.subr.mxu0 %v3644
        %v3646 = vand.u32 %v2785, 4294901760
        %3647 = vmatpush2.msra.mxu0 %v3646
        %v3648 = vand.u32 %v2784, 4294901760
        %3649 = vmatprep.subr.mxu0 %v3648
        %v3650 = vand.u32 %v2783, 4294901760
        %3651 = vmatpush2.msra.mxu0 %v3650
        %v3652 = vand.u32 %v2782, 4294901760
        %3653 = vmatprep.subr.mxu0 %v3652
        %v3654 = vand.u32 %v2781, 4294901760
        %3655 = vmatpush2.msra.mxu0 %v3654
        %v3656 = vand.u32 %v2780, 4294901760
        %3657 = vmatprep.subr.mxu0 %v3656
        %v3658 = vand.u32 %v2779, 4294901760
        %3659 = vmatpush2.msra.mxu0 %v3658
        %v3660 = vand.u32 %v2778, 4294901760
        %3661 = vmatprep.subr.mxu0 %v3660
        %v3662 = vand.u32 %v2777, 4294901760
        %3663 = vmatpush2.msra.mxu0 %v3662
        %v3664 = vand.u32 %v2776, 4294901760
        %3665 = vmatprep.subr.mxu0 %v3664
        %v3666 = vand.u32 %v2775, 4294901760
        %3667 = vmatpush2.msra.mxu0 %v3666
        %v3668 = vand.u32 %v2774, 4294901760
        %3669 = vmatprep.subr.mxu0 %v3668
        %v3670 = vand.u32 %v2773, 4294901760
        %3671 = vmatpush2.msra.mxu0 %v3670
        %v3672 = vand.u32 %v2772, 4294901760
        %3673 = vmatprep.subr.mxu0 %v3672
        %v3674 = vand.u32 %v2771, 4294901760
        %3675 = vmatpush2.msra.mxu0 %v3674
        %v3676 = vand.u32 %v2770, 4294901760
        %3677 = vmatprep.subr.mxu0 %v3676
        %v3678 = vand.u32 %v2769, 4294901760
        %3679 = vmatpush2.msra.mxu0 %v3678
        %v3680 = vand.u32 %v2768, 4294901760
        %3681 = vmatprep.subr.mxu0 %v3680
        %v3682 = vand.u32 %v2767, 4294901760
        %3683 = vmatpush2.msra.mxu0 %v3682
        %v3684 = vand.u32 %v2766, 4294901760
        %3685 = vmatprep.subr.mxu0 %v3684
        %v3686 = vand.u32 %v2765, 4294901760
        %3687 = vmatpush2.msra.mxu0 %v3686
        %v3688 = vand.u32 %v2764, 4294901760
        %3689 = vmatprep.subr.mxu0 %v3688
        %v3690 = vand.u32 %v2763, 4294901760
        %3691 = vmatpush2.msra.mxu0 %v3690
        %v3692 = vand.u32 %v2762, 4294901760
        %3693 = vmatprep.subr.mxu0 %v3692
        %v3694 = vand.u32 %v2761, 4294901760
        %3695 = vmatpush2.msra.mxu0 %v3694
        %v3696 = vand.u32 %v2760, 4294901760
        %3697 = vmatprep.subr.mxu0 %v3696
        %v3698 = vand.u32 %v2759, 4294901760
        %3699 = vmatpush2.msra.mxu0 %v3698
        %v3700 = vand.u32 %v2758, 4294901760
        %3701 = vmatprep.subr.mxu0 %v3700
        %v3702 = vand.u32 %v2757, 4294901760
        %3703 = vmatpush2.msra.mxu0 %v3702
        %v3704 = vand.u32 %v2722, 4294901760
        %v3705 = vsub.f32 %v2722, %v3704
        %v3706 = vand.u32 %v3705, 4294901760
        %3707 = vmatprep.mubr.f32.mxu0 %v3706
        %v3708 = vand.u32 %v2721, 4294901760
        %v3709 = vsub.f32 %v2721, %v3708
        %v3710 = vand.u32 %v3709, 4294901760
        %3711 = vmatmul.mubr.f32.gmra.mxu0 %v3710
        %v3712 = vpop.f32.mrf.mxu0
        %v3713 = vadd.f32 %v3562, %v3712
        %v3714 = vpop.f32.mrf.mxu0
        %v3715 = vadd.f32 %v3564, %v3714
        %v3716 = vand.u32 %v2724, 4294901760
        %v3717 = vsub.f32 %v2724, %v3716
        %v3718 = vand.u32 %v3717, 4294901760
        %3719 = vmatprep.mubr.f32.mxu0 %v3718
        %v3720 = vand.u32 %v2723, 4294901760
        %v3721 = vsub.f32 %v2723, %v3720
        %v3722 = vand.u32 %v3721, 4294901760
        %3723 = vmatmul.mubr.f32.gmra.mxu0 %v3722
        %v3724 = vpop.f32.mrf.mxu0
        %v3725 = vadd.f32 %v3572, %v3724
        %v3726 = vpop.f32.mrf.mxu0
        %v3727 = vadd.f32 %v3574, %v3726
        %3728 = vdwg.mxu0
        %v3729 = vand.u32 %v2756, 4294901760
        %v3730 = vsub.f32 %v2756, %v3729
        %v3731 = vand.u32 %v3730, 4294901760
        %3732 = vmatprep.subr.mxu0 %v3731
        %v3733 = vand.u32 %v2755, 4294901760
        %v3734 = vsub.f32 %v2755, %v3733
        %v3735 = vand.u32 %v3734, 4294901760
        %3736 = vmatpush1.msra.mxu0 %v3735
        %v3737 = vand.u32 %v2754, 4294901760
        %v3738 = vsub.f32 %v2754, %v3737
        %v3739 = vand.u32 %v3738, 4294901760
        %3740 = vmatprep.subr.mxu0 %v3739
        %v3741 = vand.u32 %v2753, 4294901760
        %v3742 = vsub.f32 %v2753, %v3741
        %v3743 = vand.u32 %v3742, 4294901760
        %3744 = vmatpush1.msra.mxu0 %v3743
        %v3745 = vand.u32 %v2752, 4294901760
        %v3746 = vsub.f32 %v2752, %v3745
        %v3747 = vand.u32 %v3746, 4294901760
        %3748 = vmatprep.subr.mxu0 %v3747
        %v3749 = vand.u32 %v2751, 4294901760
        %v3750 = vsub.f32 %v2751, %v3749
        %v3751 = vand.u32 %v3750, 4294901760
        %3752 = vmatpush1.msra.mxu0 %v3751
        %v3753 = vand.u32 %v2750, 4294901760
        %v3754 = vsub.f32 %v2750, %v3753
        %v3755 = vand.u32 %v3754, 4294901760
        %3756 = vmatprep.subr.mxu0 %v3755
        %v3757 = vand.u32 %v2749, 4294901760
        %v3758 = vsub.f32 %v2749, %v3757
        %v3759 = vand.u32 %v3758, 4294901760
        %3760 = vmatpush1.msra.mxu0 %v3759
        %v3761 = vand.u32 %v2748, 4294901760
        %v3762 = vsub.f32 %v2748, %v3761
        %v3763 = vand.u32 %v3762, 4294901760
        %3764 = vmatprep.subr.mxu0 %v3763
        %v3765 = vand.u32 %v2747, 4294901760
        %v3766 = vsub.f32 %v2747, %v3765
        %v3767 = vand.u32 %v3766, 4294901760
        %3768 = vmatpush1.msra.mxu0 %v3767
        %v3769 = vand.u32 %v2746, 4294901760
        %v3770 = vsub.f32 %v2746, %v3769
        %v3771 = vand.u32 %v3770, 4294901760
        %3772 = vmatprep.subr.mxu0 %v3771
        %v3773 = vand.u32 %v2745, 4294901760
        %v3774 = vsub.f32 %v2745, %v3773
        %v3775 = vand.u32 %v3774, 4294901760
        %3776 = vmatpush1.msra.mxu0 %v3775
        %v3777 = vand.u32 %v2744, 4294901760
        %v3778 = vsub.f32 %v2744, %v3777
        %v3779 = vand.u32 %v3778, 4294901760
        %3780 = vmatprep.subr.mxu0 %v3779
        %v3781 = vand.u32 %v2743, 4294901760
        %v3782 = vsub.f32 %v2743, %v3781
        %v3783 = vand.u32 %v3782, 4294901760
        %3784 = vmatpush1.msra.mxu0 %v3783
        %v3785 = vand.u32 %v2742, 4294901760
        %v3786 = vsub.f32 %v2742, %v3785
        %v3787 = vand.u32 %v3786, 4294901760
        %3788 = vmatprep.subr.mxu0 %v3787
        %v3789 = vand.u32 %v2741, 4294901760
        %v3790 = vsub.f32 %v2741, %v3789
        %v3791 = vand.u32 %v3790, 4294901760
        %3792 = vmatpush1.msra.mxu0 %v3791
        %v3793 = vand.u32 %v2740, 4294901760
        %v3794 = vsub.f32 %v2740, %v3793
        %v3795 = vand.u32 %v3794, 4294901760
        %3796 = vmatprep.subr.mxu0 %v3795
        %v3797 = vand.u32 %v2739, 4294901760
        %v3798 = vsub.f32 %v2739, %v3797
        %v3799 = vand.u32 %v3798, 4294901760
        %3800 = vmatpush1.msra.mxu0 %v3799
        %v3801 = vand.u32 %v2738, 4294901760
        %v3802 = vsub.f32 %v2738, %v3801
        %v3803 = vand.u32 %v3802, 4294901760
        %3804 = vmatprep.subr.mxu0 %v3803
        %v3805 = vand.u32 %v2737, 4294901760
        %v3806 = vsub.f32 %v2737, %v3805
        %v3807 = vand.u32 %v3806, 4294901760
        %3808 = vmatpush1.msra.mxu0 %v3807
        %v3809 = vand.u32 %v2736, 4294901760
        %v3810 = vsub.f32 %v2736, %v3809
        %v3811 = vand.u32 %v3810, 4294901760
        %3812 = vmatprep.subr.mxu0 %v3811
        %v3813 = vand.u32 %v2735, 4294901760
        %v3814 = vsub.f32 %v2735, %v3813
        %v3815 = vand.u32 %v3814, 4294901760
        %3816 = vmatpush1.msra.mxu0 %v3815
        %v3817 = vand.u32 %v2734, 4294901760
        %v3818 = vsub.f32 %v2734, %v3817
        %v3819 = vand.u32 %v3818, 4294901760
        %3820 = vmatprep.subr.mxu0 %v3819
        %v3821 = vand.u32 %v2733, 4294901760
        %v3822 = vsub.f32 %v2733, %v3821
        %v3823 = vand.u32 %v3822, 4294901760
        %3824 = vmatpush1.msra.mxu0 %v3823
        %v3825 = vand.u32 %v2732, 4294901760
        %v3826 = vsub.f32 %v2732, %v3825
        %v3827 = vand.u32 %v3826, 4294901760
        %3828 = vmatprep.subr.mxu0 %v3827
        %v3829 = vand.u32 %v2731, 4294901760
        %v3830 = vsub.f32 %v2731, %v3829
        %v3831 = vand.u32 %v3830, 4294901760
        %3832 = vmatpush1.msra.mxu0 %v3831
        %v3833 = vand.u32 %v2730, 4294901760
        %v3834 = vsub.f32 %v2730, %v3833
        %v3835 = vand.u32 %v3834, 4294901760
        %3836 = vmatprep.subr.mxu0 %v3835
        %v3837 = vand.u32 %v2729, 4294901760
        %v3838 = vsub.f32 %v2729, %v3837
        %v3839 = vand.u32 %v3838, 4294901760
        %3840 = vmatpush1.msra.mxu0 %v3839
        %v3841 = vand.u32 %v2728, 4294901760
        %v3842 = vsub.f32 %v2728, %v3841
        %v3843 = vand.u32 %v3842, 4294901760
        %3844 = vmatprep.subr.mxu0 %v3843
        %v3845 = vand.u32 %v2727, 4294901760
        %v3846 = vsub.f32 %v2727, %v3845
        %v3847 = vand.u32 %v3846, 4294901760
        %3848 = vmatpush1.msra.mxu0 %v3847
        %v3849 = vand.u32 %v2726, 4294901760
        %v3850 = vsub.f32 %v2726, %v3849
        %v3851 = vand.u32 %v3850, 4294901760
        %3852 = vmatprep.subr.mxu0 %v3851
        %v3853 = vand.u32 %v2725, 4294901760
        %v3854 = vsub.f32 %v2725, %v3853
        %v3855 = vand.u32 %v3854, 4294901760
        %3856 = vmatpush1.msra.mxu0 %v3855
        %v3857 = vand.u32 %v2788, 4294901760
        %v3858 = vsub.f32 %v2788, %v3857
        %v3859 = vand.u32 %v3858, 4294901760
        %3860 = vmatprep.subr.mxu0 %v3859
        %v3861 = vand.u32 %v2787, 4294901760
        %v3862 = vsub.f32 %v2787, %v3861
        %v3863 = vand.u32 %v3862, 4294901760
        %3864 = vmatpush2.msra.mxu0 %v3863
        %v3865 = vand.u32 %v2786, 4294901760
        %v3866 = vsub.f32 %v2786, %v3865
        %v3867 = vand.u32 %v3866, 4294901760
        %3868 = vmatprep.subr.mxu0 %v3867
        %v3869 = vand.u32 %v2785, 4294901760
        %v3870 = vsub.f32 %v2785, %v3869
        %v3871 = vand.u32 %v3870, 4294901760
        %3872 = vmatpush2.msra.mxu0 %v3871
        %v3873 = vand.u32 %v2784, 4294901760
        %v3874 = vsub.f32 %v2784, %v3873
        %v3875 = vand.u32 %v3874, 4294901760
        %3876 = vmatprep.subr.mxu0 %v3875
        %v3877 = vand.u32 %v2783, 4294901760
        %v3878 = vsub.f32 %v2783, %v3877
        %v3879 = vand.u32 %v3878, 4294901760
        %3880 = vmatpush2.msra.mxu0 %v3879
        %v3881 = vand.u32 %v2782, 4294901760
        %v3882 = vsub.f32 %v2782, %v3881
        %v3883 = vand.u32 %v3882, 4294901760
        %3884 = vmatprep.subr.mxu0 %v3883
        %v3885 = vand.u32 %v2781, 4294901760
        %v3886 = vsub.f32 %v2781, %v3885
        %v3887 = vand.u32 %v3886, 4294901760
        %3888 = vmatpush2.msra.mxu0 %v3887
        %v3889 = vand.u32 %v2780, 4294901760
        %v3890 = vsub.f32 %v2780, %v3889
        %v3891 = vand.u32 %v3890, 4294901760
        %3892 = vmatprep.subr.mxu0 %v3891
        %v3893 = vand.u32 %v2779, 4294901760
        %v3894 = vsub.f32 %v2779, %v3893
        %v3895 = vand.u32 %v3894, 4294901760
        %3896 = vmatpush2.msra.mxu0 %v3895
        %v3897 = vand.u32 %v2778, 4294901760
        %v3898 = vsub.f32 %v2778, %v3897
        %v3899 = vand.u32 %v3898, 4294901760
        %3900 = vmatprep.subr.mxu0 %v3899
        %v3901 = vand.u32 %v2777, 4294901760
        %v3902 = vsub.f32 %v2777, %v3901
        %v3903 = vand.u32 %v3902, 4294901760
        %3904 = vmatpush2.msra.mxu0 %v3903
        %v3905 = vand.u32 %v2776, 4294901760
        %v3906 = vsub.f32 %v2776, %v3905
        %v3907 = vand.u32 %v3906, 4294901760
        %3908 = vmatprep.subr.mxu0 %v3907
        %v3909 = vand.u32 %v2775, 4294901760
        %v3910 = vsub.f32 %v2775, %v3909
        %v3911 = vand.u32 %v3910, 4294901760
        %3912 = vmatpush2.msra.mxu0 %v3911
        %v3913 = vand.u32 %v2774, 4294901760
        %v3914 = vsub.f32 %v2774, %v3913
        %v3915 = vand.u32 %v3914, 4294901760
        %3916 = vmatprep.subr.mxu0 %v3915
        %v3917 = vand.u32 %v2773, 4294901760
        %v3918 = vsub.f32 %v2773, %v3917
        %v3919 = vand.u32 %v3918, 4294901760
        %3920 = vmatpush2.msra.mxu0 %v3919
        %v3921 = vand.u32 %v2772, 4294901760
        %v3922 = vsub.f32 %v2772, %v3921
        %v3923 = vand.u32 %v3922, 4294901760
        %3924 = vmatprep.subr.mxu0 %v3923
        %v3925 = vand.u32 %v2771, 4294901760
        %v3926 = vsub.f32 %v2771, %v3925
        %v3927 = vand.u32 %v3926, 4294901760
        %3928 = vmatpush2.msra.mxu0 %v3927
        %v3929 = vand.u32 %v2770, 4294901760
        %v3930 = vsub.f32 %v2770, %v3929
        %v3931 = vand.u32 %v3930, 4294901760
        %3932 = vmatprep.subr.mxu0 %v3931
        %v3933 = vand.u32 %v2769, 4294901760
        %v3934 = vsub.f32 %v2769, %v3933
        %v3935 = vand.u32 %v3934, 4294901760
        %3936 = vmatpush2.msra.mxu0 %v3935
        %v3937 = vand.u32 %v2768, 4294901760
        %v3938 = vsub.f32 %v2768, %v3937
        %v3939 = vand.u32 %v3938, 4294901760
        %3940 = vmatprep.subr.mxu0 %v3939
        %v3941 = vand.u32 %v2767, 4294901760
        %v3942 = vsub.f32 %v2767, %v3941
        %v3943 = vand.u32 %v3942, 4294901760
        %3944 = vmatpush2.msra.mxu0 %v3943
        %v3945 = vand.u32 %v2766, 4294901760
        %v3946 = vsub.f32 %v2766, %v3945
        %v3947 = vand.u32 %v3946, 4294901760
        %3948 = vmatprep.subr.mxu0 %v3947
        %v3949 = vand.u32 %v2765, 4294901760
        %v3950 = vsub.f32 %v2765, %v3949
        %v3951 = vand.u32 %v3950, 4294901760
        %3952 = vmatpush2.msra.mxu0 %v3951
        %v3953 = vand.u32 %v2764, 4294901760
        %v3954 = vsub.f32 %v2764, %v3953
        %v3955 = vand.u32 %v3954, 4294901760
        %3956 = vmatprep.subr.mxu0 %v3955
        %v3957 = vand.u32 %v2763, 4294901760
        %v3958 = vsub.f32 %v2763, %v3957
        %v3959 = vand.u32 %v3958, 4294901760
        %3960 = vmatpush2.msra.mxu0 %v3959
        %v3961 = vand.u32 %v2762, 4294901760
        %v3962 = vsub.f32 %v2762, %v3961
        %v3963 = vand.u32 %v3962, 4294901760
        %3964 = vmatprep.subr.mxu0 %v3963
        %v3965 = vand.u32 %v2761, 4294901760
        %v3966 = vsub.f32 %v2761, %v3965
        %v3967 = vand.u32 %v3966, 4294901760
        %3968 = vmatpush2.msra.mxu0 %v3967
        %v3969 = vand.u32 %v2760, 4294901760
        %v3970 = vsub.f32 %v2760, %v3969
        %v3971 = vand.u32 %v3970, 4294901760
        %3972 = vmatprep.subr.mxu0 %v3971
        %v3973 = vand.u32 %v2759, 4294901760
        %v3974 = vsub.f32 %v2759, %v3973
        %v3975 = vand.u32 %v3974, 4294901760
        %3976 = vmatpush2.msra.mxu0 %v3975
        %v3977 = vand.u32 %v2758, 4294901760
        %v3978 = vsub.f32 %v2758, %v3977
        %v3979 = vand.u32 %v3978, 4294901760
        %3980 = vmatprep.subr.mxu0 %v3979
        %v3981 = vand.u32 %v2757, 4294901760
        %v3982 = vsub.f32 %v2757, %v3981
        %v3983 = vand.u32 %v3982, 4294901760
        %3984 = vmatpush2.msra.mxu0 %v3983
        %v3985 = vand.u32 %v2722, 4294901760
        %3986 = vmatprep.mubr.f32.mxu0 %v3985
        %v3987 = vand.u32 %v2721, 4294901760
        %3988 = vmatmul.mubr.f32.gmra.mxu0 %v3987
        %v3989 = vpop.f32.mrf.mxu0
        %v3990 = vadd.f32 %v3713, %v3989
        %v3991 = vpop.f32.mrf.mxu0
        %v3992 = vadd.f32 %v3715, %v3991
        %v3993 = vand.u32 %v2724, 4294901760
        %3994 = vmatprep.mubr.f32.mxu0 %v3993
        %v3995 = vand.u32 %v2723, 4294901760
        %3996 = vmatmul.mubr.f32.gmra.mxu0 %v3995
        %v3997 = vpop.f32.mrf.mxu0
        %v3998 = vadd.f32 %v3725, %v3997
        %v3999 = vpop.f32.mrf.mxu0
        %v4000 = vadd.f32 %v3727, %v3999
        %4001 = vdwg.mxu0
        %v4002 = vand.u32 %v2756, 4294901760
        %4003 = vmatprep.subr.mxu0 %v4002
        %v4004 = vand.u32 %v2755, 4294901760
        %4005 = vmatpush1.msra.mxu0 %v4004
        %v4006 = vand.u32 %v2754, 4294901760
        %4007 = vmatprep.subr.mxu0 %v4006
        %v4008 = vand.u32 %v2753, 4294901760
        %4009 = vmatpush1.msra.mxu0 %v4008
        %v4010 = vand.u32 %v2752, 4294901760
        %4011 = vmatprep.subr.mxu0 %v4010
        %v4012 = vand.u32 %v2751, 4294901760
        %4013 = vmatpush1.msra.mxu0 %v4012
        %v4014 = vand.u32 %v2750, 4294901760
        %4015 = vmatprep.subr.mxu0 %v4014
        %v4016 = vand.u32 %v2749, 4294901760
        %4017 = vmatpush1.msra.mxu0 %v4016
        %v4018 = vand.u32 %v2748, 4294901760
        %4019 = vmatprep.subr.mxu0 %v4018
        %v4020 = vand.u32 %v2747, 4294901760
        %4021 = vmatpush1.msra.mxu0 %v4020
        %v4022 = vand.u32 %v2746, 4294901760
        %4023 = vmatprep.subr.mxu0 %v4022
        %v4024 = vand.u32 %v2745, 4294901760
        %4025 = vmatpush1.msra.mxu0 %v4024
        %v4026 = vand.u32 %v2744, 4294901760
        %4027 = vmatprep.subr.mxu0 %v4026
        %v4028 = vand.u32 %v2743, 4294901760
        %4029 = vmatpush1.msra.mxu0 %v4028
        %v4030 = vand.u32 %v2742, 4294901760
        %4031 = vmatprep.subr.mxu0 %v4030
        %v4032 = vand.u32 %v2741, 4294901760
        %4033 = vmatpush1.msra.mxu0 %v4032
        %v4034 = vand.u32 %v2740, 4294901760
        %4035 = vmatprep.subr.mxu0 %v4034
        %v4036 = vand.u32 %v2739, 4294901760
        %4037 = vmatpush1.msra.mxu0 %v4036
        %v4038 = vand.u32 %v2738, 4294901760
        %4039 = vmatprep.subr.mxu0 %v4038
        %v4040 = vand.u32 %v2737, 4294901760
        %4041 = vmatpush1.msra.mxu0 %v4040
        %v4042 = vand.u32 %v2736, 4294901760
        %4043 = vmatprep.subr.mxu0 %v4042
        %v4044 = vand.u32 %v2735, 4294901760
        %4045 = vmatpush1.msra.mxu0 %v4044
        %v4046 = vand.u32 %v2734, 4294901760
        %4047 = vmatprep.subr.mxu0 %v4046
        %v4048 = vand.u32 %v2733, 4294901760
        %4049 = vmatpush1.msra.mxu0 %v4048
        %v4050 = vand.u32 %v2732, 4294901760
        %4051 = vmatprep.subr.mxu0 %v4050
        %v4052 = vand.u32 %v2731, 4294901760
        %4053 = vmatpush1.msra.mxu0 %v4052
        %v4054 = vand.u32 %v2730, 4294901760
        %4055 = vmatprep.subr.mxu0 %v4054
        %v4056 = vand.u32 %v2729, 4294901760
        %4057 = vmatpush1.msra.mxu0 %v4056
        %v4058 = vand.u32 %v2728, 4294901760
        %4059 = vmatprep.subr.mxu0 %v4058
        %v4060 = vand.u32 %v2727, 4294901760
        %4061 = vmatpush1.msra.mxu0 %v4060
        %v4062 = vand.u32 %v2726, 4294901760
        %4063 = vmatprep.subr.mxu0 %v4062
        %v4064 = vand.u32 %v2725, 4294901760
        %4065 = vmatpush1.msra.mxu0 %v4064
        %v4066 = vand.u32 %v2788, 4294901760
        %4067 = vmatprep.subr.mxu0 %v4066
        %v4068 = vand.u32 %v2787, 4294901760
        %4069 = vmatpush2.msra.mxu0 %v4068
        %v4070 = vand.u32 %v2786, 4294901760
        %4071 = vmatprep.subr.mxu0 %v4070
        %v4072 = vand.u32 %v2785, 4294901760
        %4073 = vmatpush2.msra.mxu0 %v4072
        %v4074 = vand.u32 %v2784, 4294901760
        %4075 = vmatprep.subr.mxu0 %v4074
        %v4076 = vand.u32 %v2783, 4294901760
        %4077 = vmatpush2.msra.mxu0 %v4076
        %v4078 = vand.u32 %v2782, 4294901760
        %4079 = vmatprep.subr.mxu0 %v4078
        %v4080 = vand.u32 %v2781, 4294901760
        %4081 = vmatpush2.msra.mxu0 %v4080
        %v4082 = vand.u32 %v2780, 4294901760
        %4083 = vmatprep.subr.mxu0 %v4082
        %v4084 = vand.u32 %v2779, 4294901760
        %4085 = vmatpush2.msra.mxu0 %v4084
        %v4086 = vand.u32 %v2778, 4294901760
        %4087 = vmatprep.subr.mxu0 %v4086
        %v4088 = vand.u32 %v2777, 4294901760
        %4089 = vmatpush2.msra.mxu0 %v4088
        %v4090 = vand.u32 %v2776, 4294901760
        %4091 = vmatprep.subr.mxu0 %v4090
        %v4092 = vand.u32 %v2775, 4294901760
        %4093 = vmatpush2.msra.mxu0 %v4092
        %v4094 = vand.u32 %v2774, 4294901760
        %4095 = vmatprep.subr.mxu0 %v4094
        %v4096 = vand.u32 %v2773, 4294901760
        %4097 = vmatpush2.msra.mxu0 %v4096
        %v4098 = vand.u32 %v2772, 4294901760
        %4099 = vmatprep.subr.mxu0 %v4098
        %v4100 = vand.u32 %v2771, 4294901760
        %4101 = vmatpush2.msra.mxu0 %v4100
        %v4102 = vand.u32 %v2770, 4294901760
        %4103 = vmatprep.subr.mxu0 %v4102
        %v4104 = vand.u32 %v2769, 4294901760
        %4105 = vmatpush2.msra.mxu0 %v4104
        %v4106 = vand.u32 %v2768, 4294901760
        %4107 = vmatprep.subr.mxu0 %v4106
        %v4108 = vand.u32 %v2767, 4294901760
        %4109 = vmatpush2.msra.mxu0 %v4108
        %v4110 = vand.u32 %v2766, 4294901760
        %4111 = vmatprep.subr.mxu0 %v4110
        %v4112 = vand.u32 %v2765, 4294901760
        %4113 = vmatpush2.msra.mxu0 %v4112
        %v4114 = vand.u32 %v2764, 4294901760
        %4115 = vmatprep.subr.mxu0 %v4114
        %v4116 = vand.u32 %v2763, 4294901760
        %4117 = vmatpush2.msra.mxu0 %v4116
        %v4118 = vand.u32 %v2762, 4294901760
        %4119 = vmatprep.subr.mxu0 %v4118
        %v4120 = vand.u32 %v2761, 4294901760
        %4121 = vmatpush2.msra.mxu0 %v4120
        %v4122 = vand.u32 %v2760, 4294901760
        %4123 = vmatprep.subr.mxu0 %v4122
        %v4124 = vand.u32 %v2759, 4294901760
        %4125 = vmatpush2.msra.mxu0 %v4124
        %v4126 = vand.u32 %v2758, 4294901760
        %4127 = vmatprep.subr.mxu0 %v4126
        %v4128 = vand.u32 %v2757, 4294901760
        %4129 = vmatpush2.msra.mxu0 %v4128
        %v4130 = vand.u32 %v2722, 4294901760
        %4131 = vmatprep.mubr.f32.mxu0 %v4130
        %v4132 = vand.u32 %v2721, 4294901760
        %4133 = vmatmul.mubr.f32.gmra.mxu0 %v4132
        %v4134 = vpop.f32.mrf.mxu0
        %v4135 = vadd.f32 %v3990, %v4134
        %v4136 = vpop.f32.mrf.mxu0
        %v4137 = vadd.f32 %v3992, %v4136
        %v4138 = vand.u32 %v2724, 4294901760
        %4139 = vmatprep.mubr.f32.mxu0 %v4138
        %v4140 = vand.u32 %v2723, 4294901760
        %4141 = vmatmul.mubr.f32.gmra.mxu0 %v4140
        %v4142 = vpop.f32.mrf.mxu0
        %v4143 = vadd.f32 %v3998, %v4142
        %v4144 = vpop.f32.mrf.mxu0
        %v4145 = vadd.f32 %v4000, %v4144
        %4146 = vdwg.mxu0
        %4147 = vst [vmem:[%s344] sm:$0xff] %v4135
        %4148 = vst [vmem:[%s344 + $0x8] sm:$0xff] %v4137
        %4149 = vst [vmem:[%s344 + $0x10] sm:$0xff] %v4143
        %4150 = vst [vmem:[%s344 + $0x18] sm:$0xff] %v4145
        %v4151 = vld [vmem:[%s356] sm:$0xff]
        %v4152 = vld [vmem:[%s356 + $0x8] sm:$0xff]
        %4154 = vset.pattern.permute.xlu0 0
        %4155 = vperm.xlu0 %4154, %v4151
        %v4156 = vpop.permute.xlu0 %4155
        %4159 = vset.pattern.permute.xlu0 0
        %4160 = vperm.xlu0 %4159, %v4152
        %v4161 = vpop.permute.xlu0 %4160
        %v4163 = vmul.f32 %v357, %v4156
        %v4164 = vmul.f32 %v358, %v4156
        %v4165 = vmul.f32 %v360, %v4161
        %v4166 = vmul.f32 %v361, %v4161
        %4167 = vst [vmem:[%s351] sm:$0xff] %v4163
        %4168 = vst [vmem:[%s351 + $0x8] sm:$0xff] %v4164
        %4169 = vst [vmem:[%s351 + $0x10] sm:$0xff] %v4165
        %4170 = vst [vmem:[%s351 + $0x18] sm:$0xff] %v4166
        %s4171 = sand.u32 %s173, 1
        %s4172 = scalar_lea.sflag [#allocation4], %s4171
        %s4173 = sand.u32 %s173, 1
        %s4174 = smul.addr %s4173, 32
        %s4175 = scalar_lea.vmem [#allocation8], %s4174
        %s4176 = sand.u32 %s199, 1
        %s4177 = scalar_lea.sflag [#allocation10], %s4176
        %s4178 = sand.u32 %s199, 1
        %s4179 = smul.addr %s4178, 32
        %s4180 = scalar_lea.vmem [#allocation9], %s4179
        // Predicated region
        $region57: #{tpu_custom_call.1} parent=43 // pred_check
          %p4181 = pneg %p183
        $region58: #{tpu_custom_call.1} parent=43 // pred_check_branch
          %4183 = sbr.rel (%p4181) target = $region60
        $region59: #{tpu_custom_call.1} parent=43 // pred_region
          %s4185 = ssub.s32 512, 512
          %4186 = vsyncadd %s4172, %s4185
          %s4187 = smul.addr %s29, 4
          %s4188 = smul.addr %s4187, 128
          %s4189 = scalar_lea.hbm %s6, %s4188
          %s4190 = sshll.u32 %s4175, 4
          %s4191 = int_to_ptr.vmem [resolvable:$true] %s4190
          %4196 = dma.vmem_to_hbm [thread:$0]  %s4191, 512, %s4189, %s4172, 256, 256, 16
        $region60: #{tpu_custom_call.1} parent=43 // pred_fallthru
          _
        // Predicated region
        $region61: #{tpu_custom_call.1} parent=43 // pred_check
          %p4197 = pneg %p209
        $region62: #{tpu_custom_call.1} parent=43 // pred_check_branch
          %4199 = sbr.rel (%p4197) target = $region64
        $region63: #{tpu_custom_call.1} parent=43 // pred_region
          %s4201 = ssub.s32 512, 512
          %4202 = vsyncadd %s4177, %s4201
          %s4203 = smul.addr %s29, 4
          %s4204 = smul.addr %s4203, 128
          %s4205 = scalar_lea.hbm %s7, %s4204
          %s4206 = sshll.u32 %s4180, 4
          %s4207 = int_to_ptr.vmem [resolvable:$true] %s4206
          %4212 = dma.vmem_to_hbm [thread:$0]  %s4207, 512, %s4205, %s4177, 256, 256, 16
        $region64: #{tpu_custom_call.1} parent=43 // pred_fallthru
          _
      $region44: #{tpu_custom_call.1} parent=5 // pred_fallthru
        _
      %p4213 = scmp.le.s32.totalorder 2, %s24
      // Predicated region
      $region65: #{tpu_custom_call.1} parent=5 // pred_check
        %p4214 = pneg %p4213
      $region66: #{tpu_custom_call.1} parent=5 // pred_check_branch
        %4216 = sbr.rel (%p4214) target = $region68
      $region67: #{tpu_custom_call.1} parent=5 // pred_region
        %s4217 = ssub.s32 %s24, 2
        // Predicated region
        $region69: #{tpu_custom_call.1} parent=67 // pred_check
          %p4218 = pneg %p189
        $region70: #{tpu_custom_call.1} parent=67 // pred_check_branch
          %4220 = sbr.rel (%p4218) target = $region72
        $region71: #{tpu_custom_call.1} parent=67 // pred_region
          %s4221 = sand.u32 %s174, 1
          %s4222 = scalar_lea.sflag [#allocation4], %s4221
          %s4223 = sand.u32 %s174, 1
          %s4224 = smul.addr %s4223, 32
          %s4225 = scalar_lea.vmem [#allocation8], %s4224
          %4226 = dma.done %s4222, 512
        $region72: #{tpu_custom_call.1} parent=67 // pred_fallthru
          _
        // Predicated region
        $region73: #{tpu_custom_call.1} parent=67 // pred_check
          %p4227 = pneg %p215
        $region74: #{tpu_custom_call.1} parent=67 // pred_check_branch
          %4229 = sbr.rel (%p4227) target = $region76
        $region75: #{tpu_custom_call.1} parent=67 // pred_region
          %s4230 = sand.u32 %s200, 1
          %s4231 = scalar_lea.sflag [#allocation10], %s4230
          %s4232 = sand.u32 %s200, 1
          %s4233 = smul.addr %s4232, 32
          %s4234 = scalar_lea.vmem [#allocation9], %s4233
          %4235 = dma.done %s4231, 512
        $region76: #{tpu_custom_call.1} parent=67 // pred_fallthru
          _
      $region68: #{tpu_custom_call.1} parent=5 // pred_fallthru
        _
    $region6: #{tpu_custom_call.1} parent=1 // loop_footer
      %s28 = sadd.s32 1, %s24
    $region7: #{tpu_custom_call.1} parent=1 // loop_footer_branch
      %23 = sbr.rel target = $region3
    $region8: #{tpu_custom_call.1} parent=1 // loop_exit
      _
    %4236 = vsyncpa [#allocation3], 1
    %s4237 = scalar_lea.sflag [#allocation3], 1
    %4238 = vsyncpa %s4237, 1
    %4239 = vsyncpa [#allocation6], 1
    %4240 = vsyncpa [#allocation4], 1
    %s4241 = scalar_lea.sflag [#allocation4], 1
    %4242 = vsyncpa %s4241, 1
    %4243 = vsyncpa [#allocation10], 1
    %s4244 = scalar_lea.sflag [#allocation10], 1
    %4245 = vsyncpa %s4244, 1

</llo_original>
